<compile_context>
chip_gen: v7x
topology: tpu7x:2x2x1
jax: 0.10.0
libtpu: 0.0.40
codegen_flags: <defaults>
</compile_context>

<pallas_src>
import functools

import jax
import jax.numpy as jnp
from jax import lax
from jax.experimental import pallas as pl
from jax.experimental.pallas import tpu as pltpu

NHIDDEN = 128
EPS = 1e-5
PAD = 8  # scratch guard rows (top/bottom); keeps stores sublane-aligned


def _round_up(x, m):
    return ((x + m - 1) // m) * m


def _pick_block_h(H, W, norm_nc, k9p, cgb, vmem_budget_bytes=12 * 1024 * 1024):
    """Largest divisor of H whose strip footprint stays under the VMEM budget."""
    per_row = 16 * norm_nc + 4 * k9p + 8 * cgb + 4096   # rough bytes per flat row
    target_rows = max(8, min(4096, vmem_budget_bytes // per_row))
    best = 1
    for d in range(1, H + 1):
        if H % d == 0 and d * W <= target_rows:
            best = d
    return best


# ----------------------------- Pallas kernel ------------------------------
def _spade_kernel(x_ref, mean_ref, rstd_ref, segc_ref, sega_ref, segb_ref,
                  ws_ref, bs_ref, wgb_ref, bgb_ref, out_ref, actv_ref,
                  *, block_h, W, norm_nc, ncpad):
    s = pl.program_id(1)
    n_strips = pl.num_programs(1)
    thw = block_h * W
    mxu_dtype = ws_ref.dtype
    f32 = jnp.float32
    bias_s = bs_ref[...]                                          # (1, 128) f32

    # ---- mlp_shared (3x3 conv + bias + ReLU): one im2col matmul per region ----
    actv_c = jnp.maximum(
        jnp.dot(segc_ref[0], ws_ref[...], preferred_element_type=f32) + bias_s,
        0.0)                                                      # (thw, 128)
    actv_a = jnp.maximum(
        jnp.dot(sega_ref[0], ws_ref[...], preferred_element_type=f32) + bias_s,
        0.0)                                                      # (W, 128)
    actv_b = jnp.maximum(
        jnp.dot(segb_ref[0], ws_ref[...], preferred_element_type=f32) + bias_s,
        0.0)                                                      # (W, 128)

    # Halo activation rows outside the image are zero (zero padding of the
    # second conv's input).
    keep_top = (s > 0).astype(f32)
    keep_bot = (s < n_strips - 1).astype(f32)
    actv_ref[pl.ds(PAD, W), :] = actv_a * keep_top
    actv_ref[pl.ds(PAD + W, thw), :] = actv_c
    actv_ref[pl.ds(PAD + W + thw, W), :] = actv_b * keep_bot

    # ---- mlp_gamma / mlp_beta fused: 3x3 conv as 9 shifted K=128 matmuls.
    #      Row shifts come from the +/-1-row halo; column shifts are +/-1-row
    #      slices of the flat (rows, 128) activation with border masks.
    #      Taps that read the scratch guard rows are always masked out. ----
    col = lax.broadcasted_iota(jnp.int32, (thw, NHIDDEN), 0) % W
    keep_l = (col != 0).astype(f32)          # column x-1 exists inside the row
    keep_r = (col != W - 1).astype(f32)      # column x+1 exists inside the row

    cgb = wgb_ref.shape[-1]
    acc = jnp.zeros((thw, cgb), f32)
    for dy in range(3):
        for dx in range(3):
            lhs = actv_ref[pl.ds(PAD + dy * W + dx - 1, thw), :]  # (thw, 128)
            if dx == 0:
                lhs = lhs * keep_l
            elif dx == 2:
                lhs = lhs * keep_r
            acc = acc + jnp.dot(lhs.astype(mxu_dtype), wgb_ref[dy * 3 + dx],
                                preferred_element_type=f32)
    gb = acc + bgb_ref[...]                                       # (thw, cgb)
    gamma = gb[:, :norm_nc]                                       # lanes [0, nc)
    beta = gb[:, ncpad:ncpad + norm_nc]                           # 128-aligned slice

    # ---- param-free instance norm (precomputed per-(n,c) stats) + combine ----
    normalized = (x_ref[0] - mean_ref[0]) * rstd_ref[0]           # (thw, norm_nc)
    out_ref[0] = (normalized * (1.0 + gamma) + beta).astype(out_ref.dtype)


# ------------------------------ wrapper glue -------------------------------
def _nearest_resize_nchw(seg, H, W):
    # PyTorch F.interpolate(mode='nearest'): src_idx = floor(dst_idx * in/out)
    _, _, h, w = seg.shape
    ridx = (jnp.arange(H) * h) // H
    cidx = (jnp.arange(W) * w) // W
    return seg[:, :, ridx[:, None], cidx[None, :]]


def _im2col_3x3(x_nhwc):
    """(N, H, W, C) -> (N, H*W, 9*C) with zero padding=1, tap order (dy, dx)."""
    N, H, W, C = x_nhwc.shape
    p = jnp.pad(x_nhwc, ((0, 0), (1, 1), (1, 1), (0, 0)))
    cols = [p[:, dy:dy + H, dx:dx + W, :] for dy in range(3) for dx in range(3)]
    return jnp.concatenate(cols, axis=-1).reshape(N, H * W, 9 * C)


def spade_forward(x_nchw, seg_nchw, params, *, block_h=None, mxu_dtype=jnp.bfloat16):
    """x_nchw: (N, norm_nc, H, W); seg_nchw: (N, label_nc, h, w). Returns NCHW f32."""
    N, norm_nc, H, W = x_nchw.shape
    label_nc = seg_nchw.shape[1]
    assert W % 8 == 0, "W must be a multiple of 8 (TPU sublane)"  # TODO(synk): pad W for odd widths
    k9 = 9 * label_nc
    k9p = _round_up(k9, 8)                    # sublane-aligned im2col K
    ncpad = _round_up(norm_nc, 128)           # 128-aligned gamma/beta lane groups
    cgb = 2 * ncpad                           # fused (gamma | beta) output lanes
    if block_h is None:
        block_h = _pick_block_h(H, W, norm_nc, k9p, cgb)
    assert H % block_h == 0
    n_strips = H // block_h
    thw = block_h * W

    # nearest upsample + channel-last + im2col (label_nc -> 9*label_nc lanes)
    seg_up = _nearest_resize_nchw(seg_nchw, H, W)
    seg_nhwc = jnp.transpose(seg_up, (0, 2, 3, 1))
    segim = _im2col_3x3(seg_nhwc).astype(mxu_dtype)                 # (N, H*W, 9*Lc)
    segim = jnp.pad(segim, ((0, 0), (0, 0), (0, k9p - k9)))         # (N, H*W, k9p)

    # x channel-last + per-(sample, channel) instance-norm stats (cheap XLA
    # reduction; keeps the strip grid fully parallel)
    x_flat = jnp.transpose(x_nchw, (0, 2, 3, 1)).reshape(N, H * W, norm_nc)
    x_flat = x_flat.astype(jnp.float32)
    mean = jnp.mean(x_flat, axis=1, keepdims=True)                  # (N, 1, C)
    var = jnp.mean(jnp.square(x_flat - mean), axis=1, keepdims=True)
    rstd = lax.rsqrt(var + EPS)

    # weight re-layout: shared conv -> (k9p, 128); gamma/beta concatenated along
    # the lane (output) dim, each half zero-padded to a 128 multiple.
    ws = jnp.transpose(params["w_shared"], (2, 3, 1, 0)).reshape(k9, NHIDDEN)
    ws = jnp.pad(ws, ((0, k9p - k9), (0, 0))).astype(mxu_dtype)
    bs = params["b_shared"].reshape(1, NHIDDEN).astype(jnp.float32)
    wg = jnp.transpose(params["w_gamma"], (2, 3, 1, 0)).reshape(9, NHIDDEN, norm_nc)
    wb = jnp.transpose(params["w_beta"], (2, 3, 1, 0)).reshape(9, NHIDDEN, norm_nc)
    wgb = jnp.zeros((9, NHIDDEN, cgb), jnp.float32)
    wgb = wgb.at[:, :, :norm_nc].set(wg).at[:, :, ncpad:ncpad + norm_nc].set(wb)
    wgb = wgb.astype(mxu_dtype)
    bgb = jnp.zeros((1, cgb), jnp.float32)
    bgb = bgb.at[:, :norm_nc].set(params["b_gamma"])
    bgb = bgb.at[:, ncpad:ncpad + norm_nc].set(params["b_beta"])

    kernel = functools.partial(_spade_kernel, block_h=block_h, W=W,
                               norm_nc=norm_nc, ncpad=ncpad)

    flops = 2 * N * H * W * (k9p * NHIDDEN + 9 * NHIDDEN * cgb) + 10 * N * H * W * norm_nc
    bytes_accessed = (2 * x_flat.size * 4 + segim.size * segim.dtype.itemsize
                      + ws.size * ws.dtype.itemsize + wgb.size * wgb.dtype.itemsize
                      + (mean.size + rstd.size + bs.size + bgb.size) * 4)

    scratch_rows = (block_h + 2) * W + 2 * PAD

    out_flat = pl.pallas_call(
        kernel,
        out_shape=jax.ShapeDtypeStruct((N, H * W, norm_nc), jnp.float32),
        grid_spec=pltpu.PrefetchScalarGridSpec(
            num_scalar_prefetch=0,
            grid=(N, n_strips),
            in_specs=[
                # x strip
                pl.BlockSpec((1, thw, norm_nc), lambda n, s: (n, s, 0)),
                # per-sample instance-norm stats
                pl.BlockSpec((1, 1, norm_nc), lambda n, s: (n, 0, 0)),
                pl.BlockSpec((1, 1, norm_nc), lambda n, s: (n, 0, 0)),
                # seg im2col: strip body + clamped 1-row halos above/below
                pl.BlockSpec((1, thw, k9p), lambda n, s: (n, s, 0)),
                pl.BlockSpec((1, W, k9p),
                             lambda n, s: (n, jnp.maximum(s * block_h - 1, 0), 0)),
                pl.BlockSpec((1, W, k9p),
                             lambda n, s: (n, jnp.minimum(s * block_h + block_h, H - 1), 0)),
                # weights/biases: constant index_map -> fetched once by the pipeline
                pl.BlockSpec((k9p, NHIDDEN), lambda n, s: (0, 0)),
                pl.BlockSpec((1, NHIDDEN), lambda n, s: (0, 0)),
                pl.BlockSpec((9, NHIDDEN, cgb), lambda n, s: (0, 0, 0)),
                pl.BlockSpec((1, cgb), lambda n, s: (0, 0)),
            ],
            out_specs=pl.BlockSpec((1, thw, norm_nc), lambda n, s: (n, s, 0)),
            scratch_shapes=[pltpu.VMEM((scratch_rows, NHIDDEN), jnp.float32)],
        ),
        compiler_params=pltpu.CompilerParams(
            dimension_semantics=("parallel", "parallel"),
            vmem_limit_bytes=40 * 1024 * 1024),
        cost_estimate=pl.CostEstimate(flops=int(flops), transcendentals=0,
                                      bytes_accessed=int(bytes_accessed)),
    )(x_flat, mean, rstd, segim, segim, segim, ws, bs, wgb, bgb)

    out = out_flat.reshape(N, H, W, norm_nc)
    return jnp.transpose(out, (0, 3, 1, 2))


# --------------------------- pure-JAX references ---------------------------
def _conv3x3(inp, w, b):
    y = lax.conv_general_dilated(
        inp, w, window_strides=(1, 1), padding=((1, 1), (1, 1)),
        dimension_numbers=("NCHW", "OIHW", "NCHW"),
        precision=lax.Precision.HIGHEST)
    return y + b[None, :, None, None]


def spade_reference(x, seg, params):
    mean = jnp.mean(x, axis=(2, 3), keepdims=True)
    var = jnp.mean(jnp.square(x - mean), axis=(2, 3), keepdims=True)
    normalized = (x - mean) * lax.rsqrt(var + EPS)
    seg_up = _nearest_resize_nchw(seg, x.shape[2], x.shape[3])
    actv = jnp.maximum(_conv3x3(seg_up, params["w_shared"], params["b_shared"]), 0.0)
    gamma = _conv3x3(actv, params["w_gamma"], params["b_gamma"])
    beta = _conv3x3(actv, params["w_beta"], params["b_beta"])
    return normalized * (1.0 + gamma) + beta


def spade_reference_bf16_matched(x, seg, params):
    """Same math, with operands rounded to bf16 exactly where the kernel does."""
    r = lambda a: a.astype(jnp.bfloat16).astype(jnp.float32)
    mean = jnp.mean(x, axis=(2, 3), keepdims=True)
    var = jnp.mean(jnp.square(x - mean), axis=(2, 3), keepdims=True)
    normalized = (x - mean) * lax.rsqrt(var + EPS)
    seg_up = r(_nearest_resize_nchw(seg, x.shape[2], x.shape[3]))
    actv = r(jnp.maximum(_conv3x3(seg_up, r(params["w_shared"]), params["b_shared"]), 0.0))
    gamma = _conv3x3(actv, r(params["w_gamma"]), params["b_gamma"])
    beta = _conv3x3(actv, r(params["w_beta"]), params["b_beta"])
    return normalized * (1.0 + gamma) + beta


# ----------------------------------- main -----------------------------------
if __name__ == "__main__":
    key = jax.random.PRNGKey(0)
    N, norm_nc, label_nc, H, W = 2, 4, 3, 16, 16
    seg_h, seg_w = 8, 8   # smaller than x -> exercises nearest upsample

    k = jax.random.split(key, 8)
    x = jax.random.normal(k[0], (N, norm_nc, H, W), jnp.float32)
    seg = jax.random.normal(k[1], (N, label_nc, seg_h, seg_w), jnp.float32)

    params = {
        # torch Conv2d weight layout: (Cout, Cin, kh, kw)
        "w_shared": 0.1 * jax.random.normal(k[2], (NHIDDEN, label_nc, 3, 3), jnp.float32),
        "b_shared": 0.05 * jax.random.normal(k[3], (NHIDDEN,), jnp.float32),
        "w_gamma": 0.1 * jax.random.normal(k[4], (norm_nc, NHIDDEN, 3, 3), jnp.float32),
        "b_gamma": 0.05 * jax.random.normal(k[5], (norm_nc,), jnp.float32),
        "w_beta": 0.1 * jax.random.normal(k[6], (norm_nc, NHIDDEN, 3, 3), jnp.float32),
        "b_beta": 0.05 * jax.random.normal(k[7], (norm_nc,), jnp.float32),
    }

    ref32 = jax.block_until_ready(spade_reference(x, seg, params))
    refbf = jax.block_until_ready(spade_reference_bf16_matched(x, seg, params))

    # multi-strip path (2 row strips -> exercises the halo row exchange)
    fwd_strips = jax.jit(functools.partial(spade_forward, block_h=8))
    out_a = jax.block_until_ready(fwd_strips(x, seg, params))
    # auto-tiled path (single strip at this toy size)
    fwd_auto = jax.jit(spade_forward)
    out_b = jax.block_until_ready(fwd_auto(x, seg, params))

    for out in (out_a, out_b):
        assert out.shape == (N, norm_nc, H, W)
        err_bf = float(jnp.max(jnp.abs(out - refbf)))
        err_32 = float(jnp.max(jnp.abs(out - ref32)))
        assert err_bf < 3e-2, err_bf     # vs bf16-matched reference
        assert err_32 < 1e-1, err_32     # vs full-f32 reference (bf16 MXU operands)

    print("KERNEL_OK")
</pallas_src>

<mosaic_0001>
module attributes {stable_mosaic.version = 11 : i64} {
  func.func @_spade_kernel(%arg0: i32, %arg1: i32, %arg2: memref<1x128x4xf32, #tpu.memory_space<vmem>>, %arg3: memref<1x1x4xf32, #tpu.memory_space<vmem>>, %arg4: memref<1x1x4xf32, #tpu.memory_space<vmem>>, %arg5: memref<1x128x32xbf16, #tpu.memory_space<vmem>>, %arg6: memref<1x16x32xbf16, #tpu.memory_space<vmem>>, %arg7: memref<1x16x32xbf16, #tpu.memory_space<vmem>>, %arg8: memref<32x128xbf16, #tpu.memory_space<vmem>>, %arg9: memref<1x128xf32, #tpu.memory_space<vmem>>, %arg10: memref<9x128x256xbf16, #tpu.memory_space<vmem>>, %arg11: memref<1x256xf32, #tpu.memory_space<vmem>>, %arg12: memref<1x128x4xf32, #tpu.memory_space<vmem>>, %arg13: memref<176x128xf32, #tpu.memory_space<vmem>>) attributes {dimension_semantics = [#tpu.dimension_semantics<parallel>, #tpu.dimension_semantics<parallel>], iteration_bounds = array<i64: 2, 2>, scalar_prefetch = 0 : i64, scratch_operands = 1 : i64, tpu.core_type = #tpu.core_type<tc>, window_params = [{transform_indices = @transform_0, window_bounds = array<i64: 1, 128, 4>}, {transform_indices = @transform_1, window_bounds = array<i64: 1, 1, 4>}, {transform_indices = @transform_2, window_bounds = array<i64: 1, 1, 4>}, {transform_indices = @transform_3, window_bounds = array<i64: 1, 128, 32>}, {transform_indices = @transform_4, window_bounds = array<i64: 1, 16, 32>}, {transform_indices = @transform_5, window_bounds = array<i64: 1, 16, 32>}, {pipeline_mode = #tpu.pipeline_mode<synchronous>, transform_indices = @transform_6, window_bounds = array<i64: 32, 128>}, {pipeline_mode = #tpu.pipeline_mode<synchronous>, transform_indices = @transform_7, window_bounds = array<i64: 1, 128>}, {pipeline_mode = #tpu.pipeline_mode<synchronous>, transform_indices = @transform_8, window_bounds = array<i64: 9, 128, 256>}, {pipeline_mode = #tpu.pipeline_mode<synchronous>, transform_indices = @transform_9, window_bounds = array<i64: 1, 256>}, {transform_indices = @transform_10, window_bounds = array<i64: 1, 128, 4>}]} {
    %c0 = arith.constant 0 : index
    %c0_0 = arith.constant 0 : index
    %0 = vector.load %arg9[%c0, %c0_0] : memref<1x128xf32, #tpu.memory_space<vmem>>, vector<1x128xf32>
    %c0_1 = arith.constant 0 : index
    %c0_2 = arith.constant 0 : index
    %c0_3 = arith.constant 0 : index
    %1 = vector.load %arg5[%c0_1, %c0_2, %c0_3] : memref<1x128x32xbf16, #tpu.memory_space<vmem>>, vector<1x128x32xbf16>
    %2 = vector.shape_cast %1 : vector<1x128x32xbf16> to vector<128x32xbf16>
    %c0_4 = arith.constant 0 : index
    %c0_5 = arith.constant 0 : index
    %3 = vector.load %arg8[%c0_4, %c0_5] : memref<32x128xbf16, #tpu.memory_space<vmem>>, vector<32x128xbf16>
    %cst = arith.constant dense<0.000000e+00> : vector<128x128xf32>
    %4 = tpu.matmul %2, %3, %cst {dimension_numbers = #tpu.dot_dimension_numbers<[1], [0], [0], [1], [0, 0, 1, 1], [], []>} : vector<128x32xbf16>, vector<32x128xbf16>, vector<128x128xf32> -> vector<128x128xf32>
    %5 = vector.broadcast %0 : vector<1x128xf32> to vector<128x128xf32>
    %6 = arith.addf %4, %5 : vector<128x128xf32>
    %cst_6 = arith.constant 0.000000e+00 : f32
    %7 = vector.broadcast %cst_6 : f32 to vector<128x128xf32>
    %8 = arith.maximumf %6, %7 : vector<128x128xf32>
    %c0_7 = arith.constant 0 : index
    %c0_8 = arith.constant 0 : index
    %c0_9 = arith.constant 0 : index
    %9 = vector.load %arg6[%c0_7, %c0_8, %c0_9] : memref<1x16x32xbf16, #tpu.memory_space<vmem>>, vector<1x16x32xbf16>
    %10 = vector.shape_cast %9 : vector<1x16x32xbf16> to vector<16x32xbf16>
    %c0_10 = arith.constant 0 : index
    %c0_11 = arith.constant 0 : index
    %11 = vector.load %arg8[%c0_10, %c0_11] : memref<32x128xbf16, #tpu.memory_space<vmem>>, vector<32x128xbf16>
    %cst_12 = arith.constant dense<0.000000e+00> : vector<16x128xf32>
    %12 = tpu.matmul %10, %11, %cst_12 {dimension_numbers = #tpu.dot_dimension_numbers<[1], [0], [0], [1], [0, 0, 1, 1], [], []>} : vector<16x32xbf16>, vector<32x128xbf16>, vector<16x128xf32> -> vector<16x128xf32>
    %13 = vector.broadcast %0 : vector<1x128xf32> to vector<16x128xf32>
    %14 = arith.addf %12, %13 : vector<16x128xf32>
    %cst_13 = arith.constant 0.000000e+00 : f32
    %15 = vector.broadcast %cst_13 : f32 to vector<16x128xf32>
    %16 = arith.maximumf %14, %15 : vector<16x128xf32>
    %c0_14 = arith.constant 0 : index
    %c0_15 = arith.constant 0 : index
    %c0_16 = arith.constant 0 : index
    %17 = vector.load %arg7[%c0_14, %c0_15, %c0_16] : memref<1x16x32xbf16, #tpu.memory_space<vmem>>, vector<1x16x32xbf16>
    %18 = vector.shape_cast %17 : vector<1x16x32xbf16> to vector<16x32xbf16>
    %c0_17 = arith.constant 0 : index
    %c0_18 = arith.constant 0 : index
    %19 = vector.load %arg8[%c0_17, %c0_18] : memref<32x128xbf16, #tpu.memory_space<vmem>>, vector<32x128xbf16>
    %cst_19 = arith.constant dense<0.000000e+00> : vector<16x128xf32>
    %20 = tpu.matmul %18, %19, %cst_19 {dimension_numbers = #tpu.dot_dimension_numbers<[1], [0], [0], [1], [0, 0, 1, 1], [], []>} : vector<16x32xbf16>, vector<32x128xbf16>, vector<16x128xf32> -> vector<16x128xf32>
    %21 = vector.broadcast %0 : vector<1x128xf32> to vector<16x128xf32>
    %22 = arith.addf %20, %21 : vector<16x128xf32>
    %cst_20 = arith.constant 0.000000e+00 : f32
    %23 = vector.broadcast %cst_20 : f32 to vector<16x128xf32>
    %24 = arith.maximumf %22, %23 : vector<16x128xf32>
    %c0_i32 = arith.constant 0 : i32
    %25 = arith.cmpi sgt, %arg1, %c0_i32 : i32
    %26 = arith.extui %25 : i1 to i32
    %27 = arith.sitofp %26 : i32 to f32
    %c1_i32 = arith.constant 1 : i32
    %28 = arith.cmpi slt, %arg1, %c1_i32 : i32
    %29 = arith.extui %28 : i1 to i32
    %30 = arith.sitofp %29 : i32 to f32
    %31 = vector.broadcast %27 : f32 to vector<16x128xf32>
    %32 = arith.mulf %16, %31 : vector<16x128xf32>
    %c8 = arith.constant 8 : index
    %c0_21 = arith.constant 0 : index
    %33 = vector.load %arg13[%c8, %c0_21] : memref<176x128xf32, #tpu.memory_space<vmem>>, vector<16x128xf32>
    tpu.vector_store %arg13[%c8, %c0_21], %32 {strides = array<i32>} : memref<176x128xf32, #tpu.memory_space<vmem>>, vector<16x128xf32>,
    %c24 = arith.constant 24 : index
    %c0_22 = arith.constant 0 : index
    %34 = vector.load %arg13[%c24, %c0_22] : memref<176x128xf32, #tpu.memory_space<vmem>>, vector<128x128xf32>
    tpu.vector_store %arg13[%c24, %c0_22], %8 {strides = array<i32>} : memref<176x128xf32, #tpu.memory_space<vmem>>, vector<128x128xf32>,
    %35 = vector.broadcast %30 : f32 to vector<16x128xf32>
    %36 = arith.mulf %24, %35 : vector<16x128xf32>
    %c152 = arith.constant 152 : index
    %c0_23 = arith.constant 0 : index
    %37 = vector.load %arg13[%c152, %c0_23] : memref<176x128xf32, #tpu.memory_space<vmem>>, vector<16x128xf32>
    tpu.vector_store %arg13[%c152, %c0_23], %36 {strides = array<i32>} : memref<176x128xf32, #tpu.memory_space<vmem>>, vector<16x128xf32>,
    %38 = tpu.iota {dimensions = array<i32: 0>} : vector<128x128xi32>
    %c16_i32 = arith.constant 16 : i32
    %c0_i32_24 = arith.constant 0 : i32
    %39 = arith.cmpi eq, %c16_i32, %c0_i32_24 : i32
    %c1_i32_25 = arith.constant 1 : i32
    %40 = arith.select %39, %c1_i32_25, %c16_i32 : i32
    %41 = vector.broadcast %40 : i32 to vector<128x128xi32>
    %42 = arith.remsi %38, %41 : vector<128x128xi32>
    %c0_i32_26 = arith.constant 0 : i32
    %43 = vector.broadcast %c0_i32_26 : i32 to vector<128x128xi32>
    %44 = arith.cmpi ne, %42, %43 : vector<128x128xi32>
    %c0_i32_27 = arith.constant 0 : i32
    %45 = vector.broadcast %c0_i32_27 : i32 to vector<128x128xi32>
    %46 = arith.cmpi slt, %42, %45 : vector<128x128xi32>
    %c0_i32_28 = arith.constant 0 : i32
    %47 = arith.cmpi slt, %40, %c0_i32_28 : i32
    %48 = vector.broadcast %47 : i1 to vector<128x128xi1>
    %49 = vector.broadcast %48 : vector<128x128xi1> to vector<128x128xi1>
    %50 = arith.xori %46, %49 : vector<128x128xi1>
    %51 = arith.andi %50, %44 : vector<128x128xi1>
    %52 = vector.broadcast %40 : i32 to vector<128x128xi32>
    %53 = arith.addi %42, %52 : vector<128x128xi32>
    %54 = arith.select %51, %53, %42 : vector<128x128xi1>, vector<128x128xi32>
    %c0_i32_29 = arith.constant 0 : i32
    %55 = vector.broadcast %c0_i32_29 : i32 to vector<128x128xi32>
    %56 = arith.cmpi ne, %54, %55 : vector<128x128xi32>
    %57 = arith.extui %56 : vector<128x128xi1> to vector<128x128xi32>
    %58 = arith.sitofp %57 : vector<128x128xi32> to vector<128x128xf32>
    %c15_i32 = arith.constant 15 : i32
    %59 = vector.broadcast %c15_i32 : i32 to vector<128x128xi32>
    %60 = arith.cmpi ne, %54, %59 : vector<128x128xi32>
    %61 = arith.extui %60 : vector<128x128xi1> to vector<128x128xi32>
    %62 = arith.sitofp %61 : vector<128x128xi32> to vector<128x128xf32>
    %cst_30 = arith.constant 0.000000e+00 : f32
    %63 = vector.broadcast %cst_30 : f32 to vector<128x256xf32>
    %c7 = arith.constant 7 : index
    %c0_31 = arith.constant 0 : index
    %64 = vector.load %arg13[%c7, %c0_31] : memref<176x128xf32, #tpu.memory_space<vmem>>, vector<128x128xf32>
    %65 = arith.mulf %64, %58 : vector<128x128xf32>
    %66 = arith.truncf %65 : vector<128x128xf32> to vector<128x128xbf16>
    %c0_32 = arith.constant 0 : index
    %c0_33 = arith.constant 0 : index
    %c0_34 = arith.constant 0 : index
    %67 = vector.load %arg10[%c0_32, %c0_33, %c0_34] : memref<9x128x256xbf16, #tpu.memory_space<vmem>>, vector<1x128x256xbf16>
    %68 = vector.shape_cast %67 : vector<1x128x256xbf16> to vector<128x256xbf16>
    %cst_35 = arith.constant dense<0.000000e+00> : vector<128x256xf32>
    %69 = tpu.matmul %66, %68, %cst_35 {dimension_numbers = #tpu.dot_dimension_numbers<[1], [0], [0], [1], [0, 0, 1, 1], [], []>} : vector<128x128xbf16>, vector<128x256xbf16>, vector<128x256xf32> -> vector<128x256xf32>
    %70 = arith.addf %63, %69 : vector<128x256xf32>
    %c8_36 = arith.constant 8 : index
    %c0_37 = arith.constant 0 : index
    %71 = vector.load %arg13[%c8_36, %c0_37] : memref<176x128xf32, #tpu.memory_space<vmem>>, vector<128x128xf32>
    %72 = arith.truncf %71 : vector<128x128xf32> to vector<128x128xbf16>
    %c1 = arith.constant 1 : index
    %c0_38 = arith.constant 0 : index
    %c0_39 = arith.constant 0 : index
    %73 = vector.load %arg10[%c1, %c0_38, %c0_39] : memref<9x128x256xbf16, #tpu.memory_space<vmem>>, vector<1x128x256xbf16>
    %74 = vector.shape_cast %73 : vector<1x128x256xbf16> to vector<128x256xbf16>
    %cst_40 = arith.constant dense<0.000000e+00> : vector<128x256xf32>
    %75 = tpu.matmul %72, %74, %cst_40 {dimension_numbers = #tpu.dot_dimension_numbers<[1], [0], [0], [1], [0, 0, 1, 1], [], []>} : vector<128x128xbf16>, vector<128x256xbf16>, vector<128x256xf32> -> vector<128x256xf32>
    %76 = arith.addf %70, %75 : vector<128x256xf32>
    %c9 = arith.constant 9 : index
    %c0_41 = arith.constant 0 : index
    %77 = vector.load %arg13[%c9, %c0_41] : memref<176x128xf32, #tpu.memory_space<vmem>>, vector<128x128xf32>
    %78 = arith.mulf %77, %62 : vector<128x128xf32>
    %79 = arith.truncf %78 : vector<128x128xf32> to vector<128x128xbf16>
    %c2 = arith.constant 2 : index
    %c0_42 = arith.constant 0 : index
    %c0_43 = arith.constant 0 : index
    %80 = vector.load %arg10[%c2, %c0_42, %c0_43] : memref<9x128x256xbf16, #tpu.memory_space<vmem>>, vector<1x128x256xbf16>
    %81 = vector.shape_cast %80 : vector<1x128x256xbf16> to vector<128x256xbf16>
    %cst_44 = arith.constant dense<0.000000e+00> : vector<128x256xf32>
    %82 = tpu.matmul %79, %81, %cst_44 {dimension_numbers = #tpu.dot_dimension_numbers<[1], [0], [0], [1], [0, 0, 1, 1], [], []>} : vector<128x128xbf16>, vector<128x256xbf16>, vector<128x256xf32> -> vector<128x256xf32>
    %83 = arith.addf %76, %82 : vector<128x256xf32>
    %c23 = arith.constant 23 : index
    %c0_45 = arith.constant 0 : index
    %84 = vector.load %arg13[%c23, %c0_45] : memref<176x128xf32, #tpu.memory_space<vmem>>, vector<128x128xf32>
    %85 = arith.mulf %84, %58 : vector<128x128xf32>
    %86 = arith.truncf %85 : vector<128x128xf32> to vector<128x128xbf16>
    %c3 = arith.constant 3 : index
    %c0_46 = arith.constant 0 : index
    %c0_47 = arith.constant 0 : index
    %87 = vector.load %arg10[%c3, %c0_46, %c0_47] : memref<9x128x256xbf16, #tpu.memory_space<vmem>>, vector<1x128x256xbf16>
    %88 = vector.shape_cast %87 : vector<1x128x256xbf16> to vector<128x256xbf16>
    %cst_48 = arith.constant dense<0.000000e+00> : vector<128x256xf32>
    %89 = tpu.matmul %86, %88, %cst_48 {dimension_numbers = #tpu.dot_dimension_numbers<[1], [0], [0], [1], [0, 0, 1, 1], [], []>} : vector<128x128xbf16>, vector<128x256xbf16>, vector<128x256xf32> -> vector<128x256xf32>
    %90 = arith.addf %83, %89 : vector<128x256xf32>
    %c24_49 = arith.constant 24 : index
    %c0_50 = arith.constant 0 : index
    %91 = vector.load %arg13[%c24_49, %c0_50] : memref<176x128xf32, #tpu.memory_space<vmem>>, vector<128x128xf32>
    %92 = arith.truncf %91 : vector<128x128xf32> to vector<128x128xbf16>
    %c4 = arith.constant 4 : index
    %c0_51 = arith.constant 0 : index
    %c0_52 = arith.constant 0 : index
    %93 = vector.load %arg10[%c4, %c0_51, %c0_52] : memref<9x128x256xbf16, #tpu.memory_space<vmem>>, vector<1x128x256xbf16>
    %94 = vector.shape_cast %93 : vector<1x128x256xbf16> to vector<128x256xbf16>
    %cst_53 = arith.constant dense<0.000000e+00> : vector<128x256xf32>
    %95 = tpu.matmul %92, %94, %cst_53 {dimension_numbers = #tpu.dot_dimension_numbers<[1], [0], [0], [1], [0, 0, 1, 1], [], []>} : vector<128x128xbf16>, vector<128x256xbf16>, vector<128x256xf32> -> vector<128x256xf32>
    %96 = arith.addf %90, %95 : vector<128x256xf32>
    %c25 = arith.constant 25 : index
    %c0_54 = arith.constant 0 : index
    %97 = vector.load %arg13[%c25, %c0_54] : memref<176x128xf32, #tpu.memory_space<vmem>>, vector<128x128xf32>
    %98 = arith.mulf %97, %62 : vector<128x128xf32>
    %99 = arith.truncf %98 : vector<128x128xf32> to vector<128x128xbf16>
    %c5 = arith.constant 5 : index
    %c0_55 = arith.constant 0 : index
    %c0_56 = arith.constant 0 : index
    %100 = vector.load %arg10[%c5, %c0_55, %c0_56] : memref<9x128x256xbf16, #tpu.memory_space<vmem>>, vector<1x128x256xbf16>
    %101 = vector.shape_cast %100 : vector<1x128x256xbf16> to vector<128x256xbf16>
    %cst_57 = arith.constant dense<0.000000e+00> : vector<128x256xf32>
    %102 = tpu.matmul %99, %101, %cst_57 {dimension_numbers = #tpu.dot_dimension_numbers<[1], [0], [0], [1], [0, 0, 1, 1], [], []>} : vector<128x128xbf16>, vector<128x256xbf16>, vector<128x256xf32> -> vector<128x256xf32>
    %103 = arith.addf %96, %102 : vector<128x256xf32>
    %c39 = arith.constant 39 : index
    %c0_58 = arith.constant 0 : index
    %104 = vector.load %arg13[%c39, %c0_58] : memref<176x128xf32, #tpu.memory_space<vmem>>, vector<128x128xf32>
    %105 = arith.mulf %104, %58 : vector<128x128xf32>
    %106 = arith.truncf %105 : vector<128x128xf32> to vector<128x128xbf16>
    %c6 = arith.constant 6 : index
    %c0_59 = arith.constant 0 : index
    %c0_60 = arith.constant 0 : index
    %107 = vector.load %arg10[%c6, %c0_59, %c0_60] : memref<9x128x256xbf16, #tpu.memory_space<vmem>>, vector<1x128x256xbf16>
    %108 = vector.shape_cast %107 : vector<1x128x256xbf16> to vector<128x256xbf16>
    %cst_61 = arith.constant dense<0.000000e+00> : vector<128x256xf32>
    %109 = tpu.matmul %106, %108, %cst_61 {dimension_numbers = #tpu.dot_dimension_numbers<[1], [0], [0], [1], [0, 0, 1, 1], [], []>} : vector<128x128xbf16>, vector<128x256xbf16>, vector<128x256xf32> -> vector<128x256xf32>
    %110 = arith.addf %103, %109 : vector<128x256xf32>
    %c40 = arith.constant 40 : index
    %c0_62 = arith.constant 0 : index
    %111 = vector.load %arg13[%c40, %c0_62] : memref<176x128xf32, #tpu.memory_space<vmem>>, vector<128x128xf32>
    %112 = arith.truncf %111 : vector<128x128xf32> to vector<128x128xbf16>
    %c7_63 = arith.constant 7 : index
    %c0_64 = arith.constant 0 : index
    %c0_65 = arith.constant 0 : index
    %113 = vector.load %arg10[%c7_63, %c0_64, %c0_65] : memref<9x128x256xbf16, #tpu.memory_space<vmem>>, vector<1x128x256xbf16>
    %114 = vector.shape_cast %113 : vector<1x128x256xbf16> to vector<128x256xbf16>
    %cst_66 = arith.constant dense<0.000000e+00> : vector<128x256xf32>
    %115 = tpu.matmul %112, %114, %cst_66 {dimension_numbers = #tpu.dot_dimension_numbers<[1], [0], [0], [1], [0, 0, 1, 1], [], []>} : vector<128x128xbf16>, vector<128x256xbf16>, vector<128x256xf32> -> vector<128x256xf32>
    %116 = arith.addf %110, %115 : vector<128x256xf32>
    %c41 = arith.constant 41 : index
    %c0_67 = arith.constant 0 : index
    %117 = vector.load %arg13[%c41, %c0_67] : memref<176x128xf32, #tpu.memory_space<vmem>>, vector<128x128xf32>
    %118 = arith.mulf %117, %62 : vector<128x128xf32>
    %119 = arith.truncf %118 : vector<128x128xf32> to vector<128x128xbf16>
    %c8_68 = arith.constant 8 : index
    %c0_69 = arith.constant 0 : index
    %c0_70 = arith.constant 0 : index
    %120 = vector.load %arg10[%c8_68, %c0_69, %c0_70] : memref<9x128x256xbf16, #tpu.memory_space<vmem>>, vector<1x128x256xbf16>
    %121 = vector.shape_cast %120 : vector<1x128x256xbf16> to vector<128x256xbf16>
    %cst_71 = arith.constant dense<0.000000e+00> : vector<128x256xf32>
    %122 = tpu.matmul %119, %121, %cst_71 {dimension_numbers = #tpu.dot_dimension_numbers<[1], [0], [0], [1], [0, 0, 1, 1], [], []>} : vector<128x128xbf16>, vector<128x256xbf16>, vector<128x256xf32> -> vector<128x256xf32>
    %123 = arith.addf %116, %122 : vector<128x256xf32>
    %c0_72 = arith.constant 0 : index
    %c0_73 = arith.constant 0 : index
    %124 = vector.load %arg11[%c0_72, %c0_73] : memref<1x256xf32, #tpu.memory_space<vmem>>, vector<1x256xf32>
    %125 = vector.broadcast %124 : vector<1x256xf32> to vector<128x256xf32>
    %126 = arith.addf %123, %125 : vector<128x256xf32>
    %127 = vector.extract_strided_slice %126 {offsets = [0, 0], sizes = [128, 4], strides = [1, 1]} : vector<128x256xf32> to vector<128x4xf32>
    %128 = vector.extract_strided_slice %126 {offsets = [0, 128], sizes = [128, 4], strides = [1, 1]} : vector<128x256xf32> to vector<128x4xf32>
    %c0_74 = arith.constant 0 : index
    %c0_75 = arith.constant 0 : index
    %c0_76 = arith.constant 0 : index
    %129 = vector.load %arg2[%c0_74, %c0_75, %c0_76] : memref<1x128x4xf32, #tpu.memory_space<vmem>>, vector<1x128x4xf32>
    %130 = vector.shape_cast %129 : vector<1x128x4xf32> to vector<128x4xf32>
    %c0_77 = arith.constant 0 : index
    %c0_78 = arith.constant 0 : index
    %c0_79 = arith.constant 0 : index
    %131 = vector.load %arg3[%c0_77, %c0_78, %c0_79] : memref<1x1x4xf32, #tpu.memory_space<vmem>>, vector<1x1x4xf32>
    %132 = vector.shape_cast %131 : vector<1x1x4xf32> to vector<1x4xf32>
    %133 = vector.broadcast %132 : vector<1x4xf32> to vector<128x4xf32>
    %134 = arith.subf %130, %133 : vector<128x4xf32>
    %c0_80 = arith.constant 0 : index
    %c0_81 = arith.constant 0 : index
    %c0_82 = arith.constant 0 : index
    %135 = vector.load %arg4[%c0_80, %c0_81, %c0_82] : memref<1x1x4xf32, #tpu.memory_space<vmem>>, vector<1x1x4xf32>
    %136 = vector.shape_cast %135 : vector<1x1x4xf32> to vector<1x4xf32>
    %137 = vector.broadcast %136 : vector<1x4xf32> to vector<128x4xf32>
    %138 = arith.mulf %134, %137 : vector<128x4xf32>
    %cst_83 = arith.constant 1.000000e+00 : f32
    %139 = vector.broadcast %cst_83 : f32 to vector<128x4xf32>
    %140 = arith.addf %139, %127 : vector<128x4xf32>
    %141 = arith.mulf %138, %140 : vector<128x4xf32>
    %142 = arith.addf %141, %128 : vector<128x4xf32>
    %c0_84 = arith.constant 0 : index
    %c0_85 = arith.constant 0 : index
    %c0_86 = arith.constant 0 : index
    %143 = vector.load %arg12[%c0_84, %c0_85, %c0_86] : memref<1x128x4xf32, #tpu.memory_space<vmem>>, vector<1x128x4xf32>
    %144 = vector.shape_cast %143 : vector<1x128x4xf32> to vector<128x4xf32>
    %145 = vector.shape_cast %142 : vector<128x4xf32> to vector<1x128x4xf32>
    tpu.vector_store %arg12[%c0_84, %c0_85, %c0_86], %145 {strides = array<i32>} : memref<1x128x4xf32, #tpu.memory_space<vmem>>, vector<1x128x4xf32>,
    return
  }
  func.func @transform_0(%arg0: i32, %arg1: i32) -> (i32, i32, i32) {
    %c0_i32 = arith.constant 0 : i32
    %c0_i32_0 = arith.constant 0 : i32
    return %arg0, %arg1, %c0_i32 : i32, i32, i32
  }
  func.func @transform_1(%arg0: i32, %arg1: i32) -> (i32, i32, i32) {
    %c0_i32 = arith.constant 0 : i32
    %c0_i32_0 = arith.constant 0 : i32
    %c0_i32_1 = arith.constant 0 : i32
    return %arg0, %c0_i32, %c0_i32_0 : i32, i32, i32
  }
  func.func @transform_2(%arg0: i32, %arg1: i32) -> (i32, i32, i32) {
    %c0_i32 = arith.constant 0 : i32
    %c0_i32_0 = arith.constant 0 : i32
    %c0_i32_1 = arith.constant 0 : i32
    return %arg0, %c0_i32, %c0_i32_0 : i32, i32, i32
  }
  func.func @transform_3(%arg0: i32, %arg1: i32) -> (i32, i32, i32) {
    %c0_i32 = arith.constant 0 : i32
    %c0_i32_0 = arith.constant 0 : i32
    return %arg0, %arg1, %c0_i32 : i32, i32, i32
  }
  func.func @transform_4(%arg0: i32, %arg1: i32) -> (i32, i32, i32) {
    %c8_i32 = arith.constant 8 : i32
    %0 = arith.muli %arg1, %c8_i32 : i32
    %c1_i32 = arith.constant 1 : i32
    %1 = arith.subi %0, %c1_i32 : i32
    %c0_i32 = arith.constant 0 : i32
    %2 = arith.maxsi %1, %c0_i32 : i32
    %c0_i32_0 = arith.constant 0 : i32
    %c0_i32_1 = arith.constant 0 : i32
    return %arg0, %2, %c0_i32_0 : i32, i32, i32
  }
  func.func @transform_5(%arg0: i32, %arg1: i32) -> (i32, i32, i32) {
    %c8_i32 = arith.constant 8 : i32
    %0 = arith.muli %arg1, %c8_i32 : i32
    %c8_i32_0 = arith.constant 8 : i32
    %1 = arith.addi %0, %c8_i32_0 : i32
    %c15_i32 = arith.constant 15 : i32
    %2 = arith.minsi %1, %c15_i32 : i32
    %c0_i32 = arith.constant 0 : i32
    %c0_i32_1 = arith.constant 0 : i32
    return %arg0, %2, %c0_i32 : i32, i32, i32
  }
  func.func @transform_6(%arg0: i32, %arg1: i32) -> (i32, i32) {
    %c0_i32 = arith.constant 0 : i32
    %c0_i32_0 = arith.constant 0 : i32
    %c0_i32_1 = arith.constant 0 : i32
    return %c0_i32, %c0_i32_0 : i32, i32
  }
  func.func @transform_7(%arg0: i32, %arg1: i32) -> (i32, i32) {
    %c0_i32 = arith.constant 0 : i32
    %c0_i32_0 = arith.constant 0 : i32
    %c0_i32_1 = arith.constant 0 : i32
    return %c0_i32, %c0_i32_0 : i32, i32
  }
  func.func @transform_8(%arg0: i32, %arg1: i32) -> (i32, i32, i32) {
    %c0_i32 = arith.constant 0 : i32
    %c0_i32_0 = arith.constant 0 : i32
    %c0_i32_1 = arith.constant 0 : i32
    %c0_i32_2 = arith.constant 0 : i32
    return %c0_i32, %c0_i32_0, %c0_i32_1 : i32, i32, i32
  }
  func.func @transform_9(%arg0: i32, %arg1: i32) -> (i32, i32) {
    %c0_i32 = arith.constant 0 : i32
    %c0_i32_0 = arith.constant 0 : i32
    %c0_i32_1 = arith.constant 0 : i32
    return %c0_i32, %c0_i32_0 : i32, i32
  }
  func.func @transform_10(%arg0: i32, %arg1: i32) -> (i32, i32, i32) {
    %c0_i32 = arith.constant 0 : i32
    %c0_i32_0 = arith.constant 0 : i32
    return %arg0, %arg1, %c0_i32 : i32, i32, i32
  }
}

</mosaic_0001>

<llo_original>
// kernel: spade_forward.1
$region0: #{spade_forward.1}
  #allocation0 [shape = 'u32[]', space=smem, size = 0x4, offset = 0x4, fixed_abs, tag = 'smem constant byte address 0x4 - core index']
  #allocation1 [shape = 'u32[144,128]{1,0:T(1,128)}', space=vmem, size = 0x12000, scoped, tag = 'internal scratch']
  #allocation2 [shape = 'f32[176,128]{1,0:T(8,128)}', space=vmem, size = 0x16000, scoped, tag = 'scratch operand']
  %s0 = inlined_call_operand.vmem [shape: f32[2,256,4], index: 0, kind: input, shape index: {}]
  %s1 = inlined_call_operand.vmem [shape: f32[2,1,4], index: 1, kind: input, shape index: {}]
  %s2 = inlined_call_operand.vmem [shape: f32[2,1,4], index: 2, kind: input, shape index: {}]
  %s3 = inlined_call_operand.vmem [shape: bf16[2,256,32], index: 3, kind: input, shape index: {}, may-alias: {3,4,5}]
  %s4 = inlined_call_operand.vmem [shape: bf16[2,256,32], index: 4, kind: input, shape index: {}, may-alias: {3,4,5}]
  %s5 = inlined_call_operand.vmem [shape: bf16[2,256,32], index: 5, kind: input, shape index: {}, may-alias: {3,4,5}]
  %s6 = inlined_call_operand.vmem [shape: bf16[32,128], index: 6, kind: input, shape index: {}]
  %s7 = inlined_call_operand.vmem [shape: f32[1,128], index: 7, kind: input, shape index: {}]
  %s8 = inlined_call_operand.vmem [shape: bf16[9,128,256], index: 8, kind: input, shape index: {}]
  %s9 = inlined_call_operand.vmem [shape: f32[1,256], index: 9, kind: input, shape index: {}]
  %s10 = inlined_call_operand.vmem [shape: f32[2,256,4], index: 10, kind: output, shape index: {}]
  %s11 = sld [smem:[#allocation0]]
  $region73: #{spade_forward.1} parent=0
    _
  %s13 = ssub.s32 1, %s11
  %s14 = scalar_select 0, %s13, %s11
  loop: start=0, step=1, limit=6
  $region2: #{spade_forward.1} parent=0 // loop_pre_header
    _
  $region3: #{spade_forward.1} parent=0 // loop_header
    %s16 = sphi 0, %s20
    %p17 = scmp.ge.s32.totalorder %s16, 6
    %s23 = sphi 0, %s35
    %s24 = sphi 0, %s31
    %s25 = sphi 0, %s23
    %s26 = sphi 0, %s24
    %s27 = sphi 0, %s25
    %s28 = sphi 0, %s26
    %s40 = sphi 0, %s42
    %s43 = sphi 0, %s40
    %s44 = sphi 0, %s43
    %s60 = sphi 0, %s44
    %s66 = sphi 0, %s68
    %s69 = sphi 0, %s66
    %s70 = sphi 0, %s69
    %s86 = sphi 0, %s70
    %s92 = sphi 0, %s94
    %s95 = sphi 0, %s92
    %s96 = sphi 0, %s95
    %s112 = sphi 0, %s96
    %s120 = sphi 0, %s122
    %s123 = sphi 0, %s120
    %s124 = sphi 0, %s123
    %s140 = sphi 0, %s124
    %s156 = sphi 0, %s158
    %s159 = sphi 0, %s156
    %s160 = sphi 0, %s159
    %s176 = sphi 0, %s160
    %s192 = sphi 0, %s194
    %s195 = sphi 0, %s192
    %s196 = sphi 0, %s195
    %s212 = sphi 0, %s196
    %s216 = sphi 0, %s216
    %s218 = sphi 0, %s216
    %s219 = sphi 0, %s218
    %s233 = sphi 0, %s219
    %s237 = sphi 0, %s237
    %s239 = sphi 0, %s237
    %s240 = sphi 0, %s239
    %s254 = sphi 0, %s240
    %s258 = sphi 0, %s258
    %s260 = sphi 0, %s258
    %s261 = sphi 0, %s260
    %s275 = sphi 0, %s261
    %s279 = sphi 0, %s279
    %s281 = sphi 0, %s279
    %s282 = sphi 0, %s281
    %s296 = sphi 0, %s282
    %s304 = sphi 0, %s306
    %s307 = sphi 0, %s304
    %s308 = sphi 0, %s307
    %s324 = sphi 0, %s308
  $region4: #{spade_forward.1} parent=0 // loop_header_branch
    %19 = sbr.rel (%p17) target = $region8
  $region5: #{spade_forward.1} parent=0 // loop_body
    %s21 = ssub.s32 %s16, 1
    %s22 = ssub.s32 %s16, 2
    %s29 = sadd.s32 1, %s24
    %p30 = scmp.ge.s32.totalorder %s29, 2
    %s31 = scalar_select %p30, 0, %s29
    %s32 = sadd.s32 1, %s23
    %s33 = scalar_select %p30, %s32, %s23
    %p34 = scmp.ge.s32.totalorder %s33, 2
    %s35 = scalar_select %p34, 0, %s33
    %s36 = ssub.s32 %s23, %s35
    %s37 = ssub.s32 %s24, %s31
    %s38 = sor.u32 %s36, %s37
    %p39 = scmp.eq.s32.totalorder %s38, 0
    %s41 = sadd.s32 %s40, 1
    %s42 = scalar_select %p39, %s40, %s41
    %p45 = pneg %p39
    %p46 = scmp.eq.s32.totalorder %s16, 3
    %p47 = por %p45, %p46
    %p48 = scmp.ne.s32.totalorder %s40, %s43
    %p49 = scmp.eq.s32.totalorder %s16, 0
    %p50 = por %p48, %p49
    %p51 = scmp.ne.s32.totalorder %s40, %s43
    %p52 = scmp.eq.s32.totalorder %s21, 3
    %p53 = por %p51, %p52
    %p54 = scmp.ne.s32.totalorder %s43, %s44
    %p55 = scmp.eq.s32.totalorder %s21, 0
    %p56 = por %p54, %p55
    %p57 = scmp.ne.s32.totalorder %s43, %s44
    %p58 = scmp.eq.s32.totalorder %s22, 3
    %p59 = por %p57, %p58
    %p61 = scmp.ne.s32.totalorder %s44, %s60
    %p62 = scmp.eq.s32.totalorder %s22, 0
    %p63 = por %p61, %p62
    %s64 = ssub.s32 %s23, %s35
    %p65 = scmp.eq.s32.totalorder %s64, 0
    %s67 = sadd.s32 %s66, 1
    %s68 = scalar_select %p65, %s66, %s67
    %p71 = pneg %p65
    %p72 = scmp.eq.s32.totalorder %s16, 3
    %p73 = por %p71, %p72
    %p74 = scmp.ne.s32.totalorder %s66, %s69
    %p75 = scmp.eq.s32.totalorder %s16, 0
    %p76 = por %p74, %p75
    %p77 = scmp.ne.s32.totalorder %s66, %s69
    %p78 = scmp.eq.s32.totalorder %s21, 3
    %p79 = por %p77, %p78
    %p80 = scmp.ne.s32.totalorder %s69, %s70
    %p81 = scmp.eq.s32.totalorder %s21, 0
    %p82 = por %p80, %p81
    %p83 = scmp.ne.s32.totalorder %s69, %s70
    %p84 = scmp.eq.s32.totalorder %s22, 3
    %p85 = por %p83, %p84
    %p87 = scmp.ne.s32.totalorder %s70, %s86
    %p88 = scmp.eq.s32.totalorder %s22, 0
    %p89 = por %p87, %p88
    %s90 = ssub.s32 %s23, %s35
    %p91 = scmp.eq.s32.totalorder %s90, 0
    %s93 = sadd.s32 %s92, 1
    %s94 = scalar_select %p91, %s92, %s93
    %p97 = pneg %p91
    %p98 = scmp.eq.s32.totalorder %s16, 3
    %p99 = por %p97, %p98
    %p100 = scmp.ne.s32.totalorder %s92, %s95
    %p101 = scmp.eq.s32.totalorder %s16, 0
    %p102 = por %p100, %p101
    %p103 = scmp.ne.s32.totalorder %s92, %s95
    %p104 = scmp.eq.s32.totalorder %s21, 3
    %p105 = por %p103, %p104
    %p106 = scmp.ne.s32.totalorder %s95, %s96
    %p107 = scmp.eq.s32.totalorder %s21, 0
    %p108 = por %p106, %p107
    %p109 = scmp.ne.s32.totalorder %s95, %s96
    %p110 = scmp.eq.s32.totalorder %s22, 3
    %p111 = por %p109, %p110
    %p113 = scmp.ne.s32.totalorder %s96, %s112
    %p114 = scmp.eq.s32.totalorder %s22, 0
    %p115 = por %p113, %p114
    %s116 = ssub.s32 %s23, %s35
    %s117 = ssub.s32 %s24, %s31
    %s118 = sor.u32 %s116, %s117
    %p119 = scmp.eq.s32.totalorder %s118, 0
    %s121 = sadd.s32 %s120, 1
    %s122 = scalar_select %p119, %s120, %s121
    %p125 = pneg %p119
    %p126 = scmp.eq.s32.totalorder %s16, 3
    %p127 = por %p125, %p126
    %p128 = scmp.ne.s32.totalorder %s120, %s123
    %p129 = scmp.eq.s32.totalorder %s16, 0
    %p130 = por %p128, %p129
    %p131 = scmp.ne.s32.totalorder %s120, %s123
    %p132 = scmp.eq.s32.totalorder %s21, 3
    %p133 = por %p131, %p132
    %p134 = scmp.ne.s32.totalorder %s123, %s124
    %p135 = scmp.eq.s32.totalorder %s21, 0
    %p136 = por %p134, %p135
    %p137 = scmp.ne.s32.totalorder %s123, %s124
    %p138 = scmp.eq.s32.totalorder %s22, 3
    %p139 = por %p137, %p138
    %p141 = scmp.ne.s32.totalorder %s124, %s140
    %p142 = scmp.eq.s32.totalorder %s22, 0
    %p143 = por %p141, %p142
    %s144 = smul.u32 %s24, 8
    %s145 = ssub.s32 %s144, 1
    %p146 = scmp.gt.s32.totalorder %s145, 0
    %s147 = scalar_select %p146, %s145, 0
    %s148 = smul.u32 %s31, 8
    %s149 = ssub.s32 %s148, 1
    %p150 = scmp.gt.s32.totalorder %s149, 0
    %s151 = scalar_select %p150, %s149, 0
    %s152 = ssub.s32 %s23, %s35
    %s153 = ssub.s32 %s147, %s151
    %s154 = sor.u32 %s152, %s153
    %p155 = scmp.eq.s32.totalorder %s154, 0
    %s157 = sadd.s32 %s156, 1
    %s158 = scalar_select %p155, %s156, %s157
    %p161 = pneg %p155
    %p162 = scmp.eq.s32.totalorder %s16, 3
    %p163 = por %p161, %p162
    %p164 = scmp.ne.s32.totalorder %s156, %s159
    %p165 = scmp.eq.s32.totalorder %s16, 0
    %p166 = por %p164, %p165
    %p167 = scmp.ne.s32.totalorder %s156, %s159
    %p168 = scmp.eq.s32.totalorder %s21, 3
    %p169 = por %p167, %p168
    %p170 = scmp.ne.s32.totalorder %s159, %s160
    %p171 = scmp.eq.s32.totalorder %s21, 0
    %p172 = por %p170, %p171
    %p173 = scmp.ne.s32.totalorder %s159, %s160
    %p174 = scmp.eq.s32.totalorder %s22, 3
    %p175 = por %p173, %p174
    %p177 = scmp.ne.s32.totalorder %s160, %s176
    %p178 = scmp.eq.s32.totalorder %s22, 0
    %p179 = por %p177, %p178
    %s180 = smul.u32 %s24, 8
    %s181 = sadd.s32 %s180, 8
    %p182 = scmp.lt.s32.totalorder %s181, 15
    %s183 = scalar_select %p182, %s181, 15
    %s184 = smul.u32 %s31, 8
    %s185 = sadd.s32 %s184, 8
    %p186 = scmp.lt.s32.totalorder %s185, 15
    %s187 = scalar_select %p186, %s185, 15
    %s188 = ssub.s32 %s23, %s35
    %s189 = ssub.s32 %s183, %s187
    %s190 = sor.u32 %s188, %s189
    %p191 = scmp.eq.s32.totalorder %s190, 0
    %s193 = sadd.s32 %s192, 1
    %s194 = scalar_select %p191, %s192, %s193
    %p197 = pneg %p191
    %p198 = scmp.eq.s32.totalorder %s16, 3
    %p199 = por %p197, %p198
    %p200 = scmp.ne.s32.totalorder %s192, %s195
    %p201 = scmp.eq.s32.totalorder %s16, 0
    %p202 = por %p200, %p201
    %p203 = scmp.ne.s32.totalorder %s192, %s195
    %p204 = scmp.eq.s32.totalorder %s21, 3
    %p205 = por %p203, %p204
    %p206 = scmp.ne.s32.totalorder %s195, %s196
    %p207 = scmp.eq.s32.totalorder %s21, 0
    %p208 = por %p206, %p207
    %p209 = scmp.ne.s32.totalorder %s195, %s196
    %p210 = scmp.eq.s32.totalorder %s22, 3
    %p211 = por %p209, %p210
    %p213 = scmp.ne.s32.totalorder %s196, %s212
    %p214 = scmp.eq.s32.totalorder %s22, 0
    %p215 = por %p213, %p214
    %s217 = sadd.s32 %s216, 1
    %p220 = scmp.eq.s32.totalorder %s16, 3
    %p221 = scmp.ne.s32.totalorder %s216, %s218
    %p222 = scmp.eq.s32.totalorder %s16, 0
    %p223 = por %p221, %p222
    %p224 = scmp.ne.s32.totalorder %s216, %s218
    %p225 = scmp.eq.s32.totalorder %s21, 3
    %p226 = por %p224, %p225
    %p227 = scmp.ne.s32.totalorder %s218, %s219
    %p228 = scmp.eq.s32.totalorder %s21, 0
    %p229 = por %p227, %p228
    %p230 = scmp.ne.s32.totalorder %s218, %s219
    %p231 = scmp.eq.s32.totalorder %s22, 3
    %p232 = por %p230, %p231
    %p234 = scmp.ne.s32.totalorder %s219, %s233
    %p235 = scmp.eq.s32.totalorder %s22, 0
    %p236 = por %p234, %p235
    %s238 = sadd.s32 %s237, 1
    %p241 = scmp.eq.s32.totalorder %s16, 3
    %p242 = scmp.ne.s32.totalorder %s237, %s239
    %p243 = scmp.eq.s32.totalorder %s16, 0
    %p244 = por %p242, %p243
    %p245 = scmp.ne.s32.totalorder %s237, %s239
    %p246 = scmp.eq.s32.totalorder %s21, 3
    %p247 = por %p245, %p246
    %p248 = scmp.ne.s32.totalorder %s239, %s240
    %p249 = scmp.eq.s32.totalorder %s21, 0
    %p250 = por %p248, %p249
    %p251 = scmp.ne.s32.totalorder %s239, %s240
    %p252 = scmp.eq.s32.totalorder %s22, 3
    %p253 = por %p251, %p252
    %p255 = scmp.ne.s32.totalorder %s240, %s254
    %p256 = scmp.eq.s32.totalorder %s22, 0
    %p257 = por %p255, %p256
    %s259 = sadd.s32 %s258, 1
    %p262 = scmp.eq.s32.totalorder %s16, 3
    %p263 = scmp.ne.s32.totalorder %s258, %s260
    %p264 = scmp.eq.s32.totalorder %s16, 0
    %p265 = por %p263, %p264
    %p266 = scmp.ne.s32.totalorder %s258, %s260
    %p267 = scmp.eq.s32.totalorder %s21, 3
    %p268 = por %p266, %p267
    %p269 = scmp.ne.s32.totalorder %s260, %s261
    %p270 = scmp.eq.s32.totalorder %s21, 0
    %p271 = por %p269, %p270
    %p272 = scmp.ne.s32.totalorder %s260, %s261
    %p273 = scmp.eq.s32.totalorder %s22, 3
    %p274 = por %p272, %p273
    %p276 = scmp.ne.s32.totalorder %s261, %s275
    %p277 = scmp.eq.s32.totalorder %s22, 0
    %p278 = por %p276, %p277
    %s280 = sadd.s32 %s279, 1
    %p283 = scmp.eq.s32.totalorder %s16, 3
    %p284 = scmp.ne.s32.totalorder %s279, %s281
    %p285 = scmp.eq.s32.totalorder %s16, 0
    %p286 = por %p284, %p285
    %p287 = scmp.ne.s32.totalorder %s279, %s281
    %p288 = scmp.eq.s32.totalorder %s21, 3
    %p289 = por %p287, %p288
    %p290 = scmp.ne.s32.totalorder %s281, %s282
    %p291 = scmp.eq.s32.totalorder %s21, 0
    %p292 = por %p290, %p291
    %p293 = scmp.ne.s32.totalorder %s281, %s282
    %p294 = scmp.eq.s32.totalorder %s22, 3
    %p295 = por %p293, %p294
    %p297 = scmp.ne.s32.totalorder %s282, %s296
    %p298 = scmp.eq.s32.totalorder %s22, 0
    %p299 = por %p297, %p298
    %s300 = ssub.s32 %s23, %s35
    %s301 = ssub.s32 %s24, %s31
    %s302 = sor.u32 %s300, %s301
    %p303 = scmp.eq.s32.totalorder %s302, 0
    %s305 = sadd.s32 %s304, 1
    %s306 = scalar_select %p303, %s304, %s305
    %p309 = pneg %p303
    %p310 = scmp.eq.s32.totalorder %s16, 3
    %p311 = por %p309, %p310
    %p312 = scmp.ne.s32.totalorder %s304, %s307
    %p313 = scmp.eq.s32.totalorder %s16, 0
    %p314 = por %p312, %p313
    %p315 = scmp.ne.s32.totalorder %s304, %s307
    %p316 = scmp.eq.s32.totalorder %s21, 3
    %p317 = por %p315, %p316
    %p318 = scmp.ne.s32.totalorder %s307, %s308
    %p319 = scmp.eq.s32.totalorder %s21, 0
    %p320 = por %p318, %p319
    %p321 = scmp.ne.s32.totalorder %s307, %s308
    %p322 = scmp.eq.s32.totalorder %s22, 3
    %p323 = por %p321, %p322
    %p325 = scmp.ne.s32.totalorder %s308, %s324
    %p326 = scmp.eq.s32.totalorder %s22, 0
    %p327 = por %p325, %p326
    %p328 = scmp.le.s32.totalorder 1, %s16
    %p329 = scmp.lt.s32.totalorder %s16, 5
    %p330 = pnand %p328, %p329
    %p331 = pneg %p330
    // Predicated region
    $region9: #{spade_forward.1} parent=5 // pred_check
      _
    $region10: #{spade_forward.1} parent=5 // pred_check_branch
      %333 = sbr.rel (%p330) target = $region12
    $region11: #{spade_forward.1} parent=5 // pred_region
      %s334 = ssub.s32 %s16, 1
      // Predicated region
      $region13: #{spade_forward.1} parent=11 // pred_check
        %p335 = pneg %p229
      $region14: #{spade_forward.1} parent=11 // pred_check_branch
        %337 = sbr.rel (%p335) target = $region16
      $region15: #{spade_forward.1} parent=11 // pred_region
        _
      $region16: #{spade_forward.1} parent=11 // pred_fallthru
        _
      // Predicated region
      $region17: #{spade_forward.1} parent=11 // pred_check
        %p338 = pneg %p250
      $region18: #{spade_forward.1} parent=11 // pred_check_branch
        %340 = sbr.rel (%p338) target = $region20
      $region19: #{spade_forward.1} parent=11 // pred_region
        _
      $region20: #{spade_forward.1} parent=11 // pred_fallthru
        _
      // Predicated region
      $region21: #{spade_forward.1} parent=11 // pred_check
        %p341 = pneg %p271
      $region22: #{spade_forward.1} parent=11 // pred_check_branch
        %343 = sbr.rel (%p341) target = $region24
      $region23: #{spade_forward.1} parent=11 // pred_region
        _
      $region24: #{spade_forward.1} parent=11 // pred_fallthru
        _
      // Predicated region
      $region25: #{spade_forward.1} parent=11 // pred_check
        %p344 = pneg %p292
      $region26: #{spade_forward.1} parent=11 // pred_check_branch
        %346 = sbr.rel (%p344) target = $region28
      $region27: #{spade_forward.1} parent=11 // pred_region
        _
      $region28: #{spade_forward.1} parent=11 // pred_fallthru
        _
    $region12: #{spade_forward.1} parent=5 // pred_fallthru
      _
    %p347 = scmp.lt.s32.totalorder %s16, 4
    // Predicated region
    $region29: #{spade_forward.1} parent=5 // pred_check
      %p348 = pneg %p347
    $region30: #{spade_forward.1} parent=5 // pred_check_branch
      %350 = sbr.rel (%p348) target = $region32
    $region31: #{spade_forward.1} parent=5 // pred_region
      // Predicated region
      $region33: #{spade_forward.1} parent=31 // pred_check
        %p351 = pneg %p50
      $region34: #{spade_forward.1} parent=31 // pred_check_branch
        %353 = sbr.rel (%p351) target = $region36
      $region35: #{spade_forward.1} parent=31 // pred_region
        %s354 = smul.u32 16, %s24
        %p355 = scmp.lt.s32.totalorder %s23, 1
        %s356 = scalar_select %p355, %s23, 1
        %p357 = scmp.lt.s32.totalorder %s354, 31
        %s358 = scalar_select %p357, %s354, 31
        %s359 = smul.addr %s356, 32
        %s360 = sadd.s32 %s358, %s359
        %s361 = smul.addr %s360, 8
        %s362 = scalar_lea.vmem %s0, %s361
        %s363 = smul.u32 16, %s24
      $region36: #{spade_forward.1} parent=31 // pred_fallthru
        _
      // Predicated region
      $region37: #{spade_forward.1} parent=31 // pred_check
        %p364 = pneg %p76
      $region38: #{spade_forward.1} parent=31 // pred_check_branch
        %366 = sbr.rel (%p364) target = $region40
      $region39: #{spade_forward.1} parent=31 // pred_region
        %p367 = scmp.lt.s32.totalorder %s23, 1
        %s368 = scalar_select %p367, %s23, 1
        %s369 = scalar_lea.vmem %s1, %s368
      $region40: #{spade_forward.1} parent=31 // pred_fallthru
        _
      // Predicated region
      $region41: #{spade_forward.1} parent=31 // pred_check
        %p370 = pneg %p102
      $region42: #{spade_forward.1} parent=31 // pred_check_branch
        %372 = sbr.rel (%p370) target = $region44
      $region43: #{spade_forward.1} parent=31 // pred_region
        %p373 = scmp.lt.s32.totalorder %s23, 1
        %s374 = scalar_select %p373, %s23, 1
        %s375 = scalar_lea.vmem %s2, %s374
      $region44: #{spade_forward.1} parent=31 // pred_fallthru
        _
      // Predicated region
      $region45: #{spade_forward.1} parent=31 // pred_check
        %p376 = pneg %p130
      $region46: #{spade_forward.1} parent=31 // pred_check_branch
        %378 = sbr.rel (%p376) target = $region48
      $region47: #{spade_forward.1} parent=31 // pred_region
        %s379 = smul.u32 16, %s24
        %p380 = scmp.lt.s32.totalorder %s23, 1
        %s381 = scalar_select %p380, %s23, 1
        %p382 = scmp.lt.s32.totalorder %s379, 31
        %s383 = scalar_select %p382, %s379, 31
        %s384 = smul.addr %s381, 32
        %s385 = sadd.s32 %s383, %s384
        %s386 = smul.addr %s385, 4
        %s387 = scalar_lea.vmem %s3, %s386
        %s388 = smul.u32 16, %s24
      $region48: #{spade_forward.1} parent=31 // pred_fallthru
        _
      // Predicated region
      $region49: #{spade_forward.1} parent=31 // pred_check
        %p389 = pneg %p166
      $region50: #{spade_forward.1} parent=31 // pred_check_branch
        %391 = sbr.rel (%p389) target = $region52
      $region51: #{spade_forward.1} parent=31 // pred_region
        %s392 = smul.u32 %s24, 8
        %s393 = ssub.s32 %s392, 1
        %p394 = scmp.gt.s32.totalorder %s393, 0
        %s395 = scalar_select %p394, %s393, 0
        %s396 = smul.u32 2, %s395
        %p397 = scmp.lt.s32.totalorder %s23, 1
        %s398 = scalar_select %p397, %s23, 1
        %p399 = scmp.lt.s32.totalorder %s396, 31
        %s400 = scalar_select %p399, %s396, 31
        %s401 = smul.addr %s398, 32
        %s402 = sadd.s32 %s400, %s401
        %s403 = smul.addr %s402, 4
        %s404 = scalar_lea.vmem %s4, %s403
        %s405 = smul.u32 %s24, 8
        %s406 = ssub.s32 %s405, 1
        %p407 = scmp.gt.s32.totalorder %s406, 0
        %s408 = scalar_select %p407, %s406, 0
        %s409 = smul.u32 2, %s408
      $region52: #{spade_forward.1} parent=31 // pred_fallthru
        _
      // Predicated region
      $region53: #{spade_forward.1} parent=31 // pred_check
        %p410 = pneg %p202
      $region54: #{spade_forward.1} parent=31 // pred_check_branch
        %412 = sbr.rel (%p410) target = $region56
      $region55: #{spade_forward.1} parent=31 // pred_region
        %s413 = smul.u32 %s24, 8
        %s414 = sadd.s32 %s413, 8
        %p415 = scmp.lt.s32.totalorder %s414, 15
        %s416 = scalar_select %p415, %s414, 15
        %s417 = smul.u32 2, %s416
        %p418 = scmp.lt.s32.totalorder %s23, 1
        %s419 = scalar_select %p418, %s23, 1
        %p420 = scmp.lt.s32.totalorder %s417, 31
        %s421 = scalar_select %p420, %s417, 31
        %s422 = smul.addr %s419, 32
        %s423 = sadd.s32 %s421, %s422
        %s424 = smul.addr %s423, 4
        %s425 = scalar_lea.vmem %s5, %s424
        %s426 = smul.u32 %s24, 8
        %s427 = sadd.s32 %s426, 8
        %p428 = scmp.lt.s32.totalorder %s427, 15
        %s429 = scalar_select %p428, %s427, 15
        %s430 = smul.u32 2, %s429
      $region56: #{spade_forward.1} parent=31 // pred_fallthru
        _
    $region32: #{spade_forward.1} parent=5 // pred_fallthru
      _
    %p431 = scmp.le.s32.totalorder 1, %s16
    %p432 = scmp.lt.s32.totalorder %s16, 5
    %p433 = pnand %p431, %p432
    %p434 = pneg %p433
    // Predicated region
    $region57: #{spade_forward.1} parent=5 // pred_check
      _
    $region58: #{spade_forward.1} parent=5 // pred_check_branch
      %436 = sbr.rel (%p433) target = $region60
    $region59: #{spade_forward.1} parent=5 // pred_region
      %s437 = ssub.s32 %s16, 1
      %s438 = smul.u32 16, %s26
      %p439 = scmp.lt.s32.totalorder %s25, 1
      %s440 = scalar_select %p439, %s25, 1
      %p441 = scmp.lt.s32.totalorder %s438, 31
      %s442 = scalar_select %p441, %s438, 31
      %s443 = smul.addr %s440, 32
      %s444 = sadd.s32 %s442, %s443
      %s445 = smul.addr %s444, 8
      %s446 = scalar_lea.vmem %s0, %s445
      %p447 = pneg %p56
      %p448 = pneg %p53
      %p449 = scmp.lt.s32.totalorder %s25, 1
      %s450 = scalar_select %p449, %s25, 1
      %s451 = scalar_lea.vmem %s1, %s450
      %p452 = pneg %p82
      %p453 = pneg %p79
      %p454 = scmp.lt.s32.totalorder %s25, 1
      %s455 = scalar_select %p454, %s25, 1
      %s456 = scalar_lea.vmem %s2, %s455
      %p457 = pneg %p108
      %p458 = pneg %p105
      %s459 = smul.u32 16, %s26
      %p460 = scmp.lt.s32.totalorder %s25, 1
      %s461 = scalar_select %p460, %s25, 1
      %p462 = scmp.lt.s32.totalorder %s459, 31
      %s463 = scalar_select %p462, %s459, 31
      %s464 = smul.addr %s461, 32
      %s465 = sadd.s32 %s463, %s464
      %s466 = smul.addr %s465, 4
      %s467 = scalar_lea.vmem %s3, %s466
      %p468 = pneg %p136
      %p469 = pneg %p133
      %s470 = smul.u32 %s26, 8
      %s471 = ssub.s32 %s470, 1
      %p472 = scmp.gt.s32.totalorder %s471, 0
      %s473 = scalar_select %p472, %s471, 0
      %s474 = smul.u32 2, %s473
      %p475 = scmp.lt.s32.totalorder %s25, 1
      %s476 = scalar_select %p475, %s25, 1
      %p477 = scmp.lt.s32.totalorder %s474, 31
      %s478 = scalar_select %p477, %s474, 31
      %s479 = smul.addr %s476, 32
      %s480 = sadd.s32 %s478, %s479
      %s481 = smul.addr %s480, 4
      %s482 = scalar_lea.vmem %s4, %s481
      %p483 = pneg %p172
      %p484 = pneg %p169
      %s485 = smul.u32 %s26, 8
      %s486 = sadd.s32 %s485, 8
      %p487 = scmp.lt.s32.totalorder %s486, 15
      %s488 = scalar_select %p487, %s486, 15
      %s489 = smul.u32 2, %s488
      %p490 = scmp.lt.s32.totalorder %s25, 1
      %s491 = scalar_select %p490, %s25, 1
      %p492 = scmp.lt.s32.totalorder %s489, 31
      %s493 = scalar_select %p492, %s489, 31
      %s494 = smul.addr %s491, 32
      %s495 = sadd.s32 %s493, %s494
      %s496 = smul.addr %s495, 4
      %s497 = scalar_lea.vmem %s5, %s496
      %p498 = pneg %p208
      %p499 = pneg %p205
      %p500 = pneg %p229
      %p501 = pneg %p226
      %p502 = pneg %p250
      %p503 = pneg %p247
      %p504 = pneg %p271
      %p505 = pneg %p268
      %p506 = pneg %p292
      %p507 = pneg %p289
      %p508 = pneg %p320
      %p509 = pneg %p317
      %s510 = smul.u32 16, %s26
      %p511 = scmp.lt.s32.totalorder %s25, 1
      %s512 = scalar_select %p511, %s25, 1
      %p513 = scmp.lt.s32.totalorder %s510, 31
      %s514 = scalar_select %p513, %s510, 31
      %s515 = smul.addr %s512, 32
      %s516 = sadd.s32 %s514, %s515
      %s517 = smul.addr %s516, 8
      %s518 = scalar_lea.vmem %s10, %s517
      %s519 = smul.u32 16, %s26
      %p520 = scmp.lt.s32.totalorder %s25, 1
      %s521 = scalar_select %p520, %s25, 1
      %p522 = scmp.lt.s32.totalorder %s519, 31
      %s523 = scalar_select %p522, %s519, 31
      %s524 = smul.addr %s521, 32
      %s525 = sadd.s32 %s523, %s524
      %s526 = smul.addr %s525, 8
      %s527 = scalar_lea.vmem %s0, %s526
      %s528 = smul.u32 16, %s26
      %p529 = scmp.lt.s32.totalorder %s25, 1
      %s530 = scalar_select %p529, %s25, 1
      %s531 = scalar_lea.vmem %s1, %s530
      %p532 = scmp.lt.s32.totalorder %s25, 1
      %s533 = scalar_select %p532, %s25, 1
      %s534 = scalar_lea.vmem %s2, %s533
      %s535 = smul.u32 16, %s26
      %p536 = scmp.lt.s32.totalorder %s25, 1
      %s537 = scalar_select %p536, %s25, 1
      %p538 = scmp.lt.s32.totalorder %s535, 31
      %s539 = scalar_select %p538, %s535, 31
      %s540 = smul.addr %s537, 32
      %s541 = sadd.s32 %s539, %s540
      %s542 = smul.addr %s541, 4
      %s543 = scalar_lea.vmem %s3, %s542
      %s544 = smul.u32 16, %s26
      %s545 = smul.u32 %s26, 8
      %s546 = ssub.s32 %s545, 1
      %p547 = scmp.gt.s32.totalorder %s546, 0
      %s548 = scalar_select %p547, %s546, 0
      %s549 = smul.u32 2, %s548
      %p550 = scmp.lt.s32.totalorder %s25, 1
      %s551 = scalar_select %p550, %s25, 1
      %p552 = scmp.lt.s32.totalorder %s549, 31
      %s553 = scalar_select %p552, %s549, 31
      %s554 = smul.addr %s551, 32
      %s555 = sadd.s32 %s553, %s554
      %s556 = smul.addr %s555, 4
      %s557 = scalar_lea.vmem %s4, %s556
      %s558 = smul.u32 %s26, 8
      %s559 = ssub.s32 %s558, 1
      %p560 = scmp.gt.s32.totalorder %s559, 0
      %s561 = scalar_select %p560, %s559, 0
      %s562 = smul.u32 2, %s561
      %s563 = smul.u32 %s26, 8
      %s564 = sadd.s32 %s563, 8
      %p565 = scmp.lt.s32.totalorder %s564, 15
      %s566 = scalar_select %p565, %s564, 15
      %s567 = smul.u32 2, %s566
      %p568 = scmp.lt.s32.totalorder %s25, 1
      %s569 = scalar_select %p568, %s25, 1
      %p570 = scmp.lt.s32.totalorder %s567, 31
      %s571 = scalar_select %p570, %s567, 31
      %s572 = smul.addr %s569, 32
      %s573 = sadd.s32 %s571, %s572
      %s574 = smul.addr %s573, 4
      %s575 = scalar_lea.vmem %s5, %s574
      %s576 = smul.u32 %s26, 8
      %s577 = sadd.s32 %s576, 8
      %p578 = scmp.lt.s32.totalorder %s577, 15
      %s579 = scalar_select %p578, %s577, 15
      %s580 = smul.u32 2, %s579
      %s581 = smul.u32 16, %s26
      %p582 = scmp.lt.s32.totalorder %s25, 1
      %s583 = scalar_select %p582, %s25, 1
      %p584 = scmp.lt.s32.totalorder %s581, 31
      %s585 = scalar_select %p584, %s581, 31
      %s586 = smul.addr %s583, 32
      %s587 = sadd.s32 %s585, %s586
      %s588 = smul.addr %s587, 8
      %s589 = scalar_lea.vmem %s10, %s588
      %s590 = smul.u32 16, %s26
      %v592 = vld [vmem:[%s7] sm:$0x1]
      %v593 = vld [vmem:[%s543] sm:$0xf]
      %v594 = vld [vmem:[%s543 + $0x4] sm:$0xf]
      %v595 = vld [vmem:[%s543 + $0x8] sm:$0xf]
      %v596 = vld [vmem:[%s543 + $0xc] sm:$0xf]
      %v597 = vld [vmem:[%s543 + $0x10] sm:$0xf]
      %v598 = vld [vmem:[%s543 + $0x14] sm:$0xf]
      %v599 = vld [vmem:[%s543 + $0x18] sm:$0xf]
      %v600 = vld [vmem:[%s543 + $0x1c] sm:$0xf]
      %v601 = vld [vmem:[%s543 + $0x20] sm:$0xf]
      %v602 = vld [vmem:[%s543 + $0x24] sm:$0xf]
      %v603 = vld [vmem:[%s543 + $0x28] sm:$0xf]
      %v604 = vld [vmem:[%s543 + $0x2c] sm:$0xf]
      %v605 = vld [vmem:[%s543 + $0x30] sm:$0xf]
      %v606 = vld [vmem:[%s543 + $0x34] sm:$0xf]
      %v607 = vld [vmem:[%s543 + $0x38] sm:$0xf]
      %v608 = vld [vmem:[%s543 + $0x3c] sm:$0xf]
      %v609 = vld [vmem:[%s6] sm:$0xf]
      %v610 = vld [vmem:[%s6 + $0x4] sm:$0xf]
      %v611 = vld [vmem:[%s6 + $0x8] sm:$0xf]
      %v612 = vld [vmem:[%s6 + $0xc] sm:$0xf]
      %v614 = vlaneseq
      %v615 = vshrl.u32 %v614, 7
      %v616 = vsub.s32 0, %v615
      %v617 = vrot.slane %v592, %v616
      %v635 = vunpack.c.l.b16 %v593
      %v636 = vunpack.c.l.b16 %v594
      %v637 = vunpack.c.l.b16 %v595
      %v638 = vunpack.c.l.b16 %v596
      %v639 = vunpack.c.l.b16 %v597
      %v640 = vunpack.c.l.b16 %v598
      %v641 = vunpack.c.l.b16 %v599
      %v642 = vunpack.c.l.b16 %v600
      %v643 = vunpack.c.l.b16 %v601
      %v644 = vunpack.c.l.b16 %v602
      %v645 = vunpack.c.l.b16 %v603
      %v646 = vunpack.c.l.b16 %v604
      %v647 = vunpack.c.l.b16 %v605
      %v648 = vunpack.c.l.b16 %v606
      %v649 = vunpack.c.l.b16 %v607
      %v650 = vunpack.c.l.b16 %v608
      %v651 = vpack.c.b16 %v636, %v635
      %v652 = vpack.c.b16 %v638, %v637
      %v653 = vpack.c.b16 %v640, %v639
      %v654 = vpack.c.b16 %v642, %v641
      %v655 = vpack.c.b16 %v644, %v643
      %v656 = vpack.c.b16 %v646, %v645
      %v657 = vpack.c.b16 %v648, %v647
      %v658 = vpack.c.b16 %v650, %v649
      %v663 = vunpack.c.l.b16 %v609
      %v664 = vunpack.c.l.b16 %v610
      %v665 = vunpack.c.l.b16 %v611
      %v666 = vunpack.c.l.b16 %v612
      %v667 = vpack.c.b16 %v664, %v663
      %v668 = vpack.c.b16 %v666, %v665
      %vm671 = vcmask 261120
      %v673 = vsel %vm671, %v651, 0
      %v676 = vsel %vm671, %v652, 0
      %v679 = vsel %vm671, %v653, 0
      %v682 = vsel %vm671, %v654, 0
      %v685 = vsel %vm671, %v655, 0
      %v688 = vsel %vm671, %v656, 0
      %v691 = vsel %vm671, %v657, 0
      %v694 = vsel %vm671, %v658, 0
      %696 = vmatprep.subr.bf16.mxu0 0
      %697 = vmatpush1.bf16.msra.mxu0 %v667
      %698 = vmatprep.subr.bf16.mxu0 0
      %699 = vmatpush1.bf16.msra.mxu0 %v668
      %700 = vmatprep.subr.bf16.mxu0 0
      %701 = vmatpush1.bf16.msra.mxu0 0
      %702 = vmatprep.subr.bf16.mxu0 0
      %703 = vmatpush1.bf16.msra.mxu0 0
      %704 = vmatprep.subr.bf16.mxu0 0
      %705 = vmatpush1.bf16.msra.mxu0 0
      %706 = vmatprep.subr.bf16.mxu0 0
      %707 = vmatpush1.bf16.msra.mxu0 0
      %708 = vmatprep.subr.bf16.mxu0 0
      %709 = vmatpush1.bf16.msra.mxu0 0
      %710 = vmatprep.subr.bf16.mxu0 0
      %711 = vmatpush1.bf16.msra.mxu0 0
      %712 = vmatprep.subr.bf16.mxu0 0
      %713 = vmatpush1.bf16.msra.mxu0 0
      %714 = vmatprep.subr.bf16.mxu0 0
      %715 = vmatpush1.bf16.msra.mxu0 0
      %716 = vmatprep.subr.bf16.mxu0 0
      %717 = vmatpush1.bf16.msra.mxu0 0
      %718 = vmatprep.subr.bf16.mxu0 0
      %719 = vmatpush1.bf16.msra.mxu0 0
      %720 = vmatprep.subr.bf16.mxu0 0
      %721 = vmatpush1.bf16.msra.mxu0 0
      %722 = vmatprep.subr.bf16.mxu0 0
      %723 = vmatpush1.bf16.msra.mxu0 0
      %724 = vmatprep.subr.bf16.mxu0 0
      %725 = vmatpush1.bf16.msra.mxu0 0
      %726 = vmatprep.subr.bf16.mxu0 0
      %727 = vmatpush1.bf16.msra.mxu0 0
      %728 = vmatprep.mubr.bf16.mxu0 0
      %729 = vmatmul.mubr.bf16.gmra.mrb[0].mxu0 %v673
      %v730 = vpop.f32.mrb[0].mxu0
      %v731 = vadd.f32 %v617, %v730
      %v732 = vpop.f32.mrb[0].mxu0
      %v733 = vpop.f32.mrb[0].mxu0
      %v734 = vadd.f32 %v617, %v733
      %v735 = vpop.f32.mrb[0].mxu0
      %736 = vmatprep.mubr.bf16.mxu0 0
      %737 = vmatmul.mubr.bf16.gmra.mrb[0].mxu0 %v676
      %v738 = vpop.f32.mrb[0].mxu0
      %v739 = vadd.f32 %v617, %v738
      %v740 = vpop.f32.mrb[0].mxu0
      %v741 = vpop.f32.mrb[0].mxu0
      %v742 = vadd.f32 %v617, %v741
      %v743 = vpop.f32.mrb[0].mxu0
      %744 = vmatprep.mubr.bf16.mxu0 0
      %745 = vmatmul.mubr.bf16.gmra.mrb[0].mxu0 %v679
      %v746 = vpop.f32.mrb[0].mxu0
      %v747 = vadd.f32 %v617, %v746
      %v748 = vpop.f32.mrb[0].mxu0
      %v749 = vpop.f32.mrb[0].mxu0
      %v750 = vadd.f32 %v617, %v749
      %v751 = vpop.f32.mrb[0].mxu0
      %752 = vmatprep.mubr.bf16.mxu0 0
      %753 = vmatmul.mubr.bf16.gmra.mrb[0].mxu0 %v682
      %v754 = vpop.f32.mrb[0].mxu0
      %v755 = vadd.f32 %v617, %v754
      %v756 = vpop.f32.mrb[0].mxu0
      %v757 = vpop.f32.mrb[0].mxu0
      %v758 = vadd.f32 %v617, %v757
      %v759 = vpop.f32.mrb[0].mxu0
      %760 = vmatprep.mubr.bf16.mxu0 0
      %761 = vmatmul.mubr.bf16.gmra.mrb[0].mxu0 %v685
      %v762 = vpop.f32.mrb[0].mxu0
      %v763 = vadd.f32 %v617, %v762
      %v764 = vpop.f32.mrb[0].mxu0
      %v765 = vpop.f32.mrb[0].mxu0
      %v766 = vadd.f32 %v617, %v765
      %v767 = vpop.f32.mrb[0].mxu0
      %768 = vmatprep.mubr.bf16.mxu0 0
      %769 = vmatmul.mubr.bf16.gmra.mrb[0].mxu0 %v688
      %v770 = vpop.f32.mrb[0].mxu0
      %v771 = vadd.f32 %v617, %v770
      %v772 = vpop.f32.mrb[0].mxu0
      %v773 = vpop.f32.mrb[0].mxu0
      %v774 = vadd.f32 %v617, %v773
      %v775 = vpop.f32.mrb[0].mxu0
      %776 = vmatprep.mubr.bf16.mxu0 0
      %777 = vmatmul.mubr.bf16.gmra.mrb[0].mxu0 %v691
      %v778 = vpop.f32.mrb[0].mxu0
      %v779 = vadd.f32 %v617, %v778
      %v780 = vpop.f32.mrb[0].mxu0
      %v781 = vpop.f32.mrb[0].mxu0
      %v782 = vadd.f32 %v617, %v781
      %v783 = vpop.f32.mrb[0].mxu0
      %784 = vmatprep.mubr.bf16.mxu0 0
      %785 = vmatmul.mubr.bf16.gmra.mrb[0].mxu0 %v694
      %v786 = vpop.f32.mrb[0].mxu0
      %v787 = vadd.f32 %v617, %v786
      %v788 = vpop.f32.mrb[0].mxu0
      %v789 = vpop.f32.mrb[0].mxu0
      %v790 = vadd.f32 %v617, %v789
      %v791 = vpop.f32.mrb[0].mxu0
      %792 = vdwg.mxu0
      %v793 = vmax.f32 %v731, 0.0
      %v794 = vmax.f32 %v734, 0.0
      %v795 = vmax.f32 %v739, 0.0
      %v796 = vmax.f32 %v742, 0.0
      %v797 = vmax.f32 %v747, 0.0
      %v798 = vmax.f32 %v750, 0.0
      %v799 = vmax.f32 %v755, 0.0
      %v800 = vmax.f32 %v758, 0.0
      %v801 = vmax.f32 %v763, 0.0
      %v802 = vmax.f32 %v766, 0.0
      %v803 = vmax.f32 %v771, 0.0
      %v804 = vmax.f32 %v774, 0.0
      %v805 = vmax.f32 %v779, 0.0
      %v806 = vmax.f32 %v782, 0.0
      %v807 = vmax.f32 %v787, 0.0
      %v808 = vmax.f32 %v790, 0.0
      %v809 = vld [vmem:[%s557] sm:$0xf]
      %v810 = vld [vmem:[%s557 + $0x4] sm:$0xf]
      %v813 = vunpack.c.l.b16 %v809
      %v814 = vunpack.c.l.b16 %v810
      %v815 = vpack.c.b16 %v814, %v813
      %v817 = vsel %vm671, %v815, 0
      %819 = vmatprep.subr.bf16.mxu0 0
      %820 = vmatpush1.bf16.msra.mxu0 %v667
      %821 = vmatprep.subr.bf16.mxu0 0
      %822 = vmatpush1.bf16.msra.mxu0 %v668
      %823 = vmatprep.subr.bf16.mxu0 0
      %824 = vmatpush1.bf16.msra.mxu0 0
      %825 = vmatprep.subr.bf16.mxu0 0
      %826 = vmatpush1.bf16.msra.mxu0 0
      %827 = vmatprep.subr.bf16.mxu0 0
      %828 = vmatpush1.bf16.msra.mxu0 0
      %829 = vmatprep.subr.bf16.mxu0 0
      %830 = vmatpush1.bf16.msra.mxu0 0
      %831 = vmatprep.subr.bf16.mxu0 0
      %832 = vmatpush1.bf16.msra.mxu0 0
      %833 = vmatprep.subr.bf16.mxu0 0
      %834 = vmatpush1.bf16.msra.mxu0 0
      %835 = vmatprep.subr.bf16.mxu0 0
      %836 = vmatpush1.bf16.msra.mxu0 0
      %837 = vmatprep.subr.bf16.mxu0 0
      %838 = vmatpush1.bf16.msra.mxu0 0
      %839 = vmatprep.subr.bf16.mxu0 0
      %840 = vmatpush1.bf16.msra.mxu0 0
      %841 = vmatprep.subr.bf16.mxu0 0
      %842 = vmatpush1.bf16.msra.mxu0 0
      %843 = vmatprep.subr.bf16.mxu0 0
      %844 = vmatpush1.bf16.msra.mxu0 0
      %845 = vmatprep.subr.bf16.mxu0 0
      %846 = vmatpush1.bf16.msra.mxu0 0
      %847 = vmatprep.subr.bf16.mxu0 0
      %848 = vmatpush1.bf16.msra.mxu0 0
      %849 = vmatprep.subr.bf16.mxu0 0
      %850 = vmatpush1.bf16.msra.mxu0 0
      %851 = vmatprep.mubr.bf16.mxu0 0
      %852 = vmatmul.mubr.bf16.gmra.mrb[0].mxu0 %v817
      %v853 = vpop.f32.mrb[0].mxu0
      %v854 = vadd.f32 %v617, %v853
      %v855 = vpop.f32.mrb[0].mxu0
      %v856 = vpop.f32.mrb[0].mxu0
      %v857 = vadd.f32 %v617, %v856
      %v858 = vpop.f32.mrb[0].mxu0
      %859 = vdwg.mxu0
      %v860 = vmax.f32 %v854, 0.0
      %v861 = vmax.f32 %v857, 0.0
      %v862 = vld [vmem:[%s575] sm:$0xf]
      %v863 = vld [vmem:[%s575 + $0x4] sm:$0xf]
      %v866 = vunpack.c.l.b16 %v862
      %v867 = vunpack.c.l.b16 %v863
      %v868 = vpack.c.b16 %v867, %v866
      %v870 = vsel %vm671, %v868, 0
      %872 = vmatprep.subr.bf16.mxu0 0
      %873 = vmatpush1.bf16.msra.mxu0 %v667
      %874 = vmatprep.subr.bf16.mxu0 0
      %875 = vmatpush1.bf16.msra.mxu0 %v668
      %876 = vmatprep.subr.bf16.mxu0 0
      %877 = vmatpush1.bf16.msra.mxu0 0
      %878 = vmatprep.subr.bf16.mxu0 0
      %879 = vmatpush1.bf16.msra.mxu0 0
      %880 = vmatprep.subr.bf16.mxu0 0
      %881 = vmatpush1.bf16.msra.mxu0 0
      %882 = vmatprep.subr.bf16.mxu0 0
      %883 = vmatpush1.bf16.msra.mxu0 0
      %884 = vmatprep.subr.bf16.mxu0 0
      %885 = vmatpush1.bf16.msra.mxu0 0
      %886 = vmatprep.subr.bf16.mxu0 0
      %887 = vmatpush1.bf16.msra.mxu0 0
      %888 = vmatprep.subr.bf16.mxu0 0
      %889 = vmatpush1.bf16.msra.mxu0 0
      %890 = vmatprep.subr.bf16.mxu0 0
      %891 = vmatpush1.bf16.msra.mxu0 0
      %892 = vmatprep.subr.bf16.mxu0 0
      %893 = vmatpush1.bf16.msra.mxu0 0
      %894 = vmatprep.subr.bf16.mxu0 0
      %895 = vmatpush1.bf16.msra.mxu0 0
      %896 = vmatprep.subr.bf16.mxu0 0
      %897 = vmatpush1.bf16.msra.mxu0 0
      %898 = vmatprep.subr.bf16.mxu0 0
      %899 = vmatpush1.bf16.msra.mxu0 0
      %900 = vmatprep.subr.bf16.mxu0 0
      %901 = vmatpush1.bf16.msra.mxu0 0
      %902 = vmatprep.subr.bf16.mxu0 0
      %903 = vmatpush1.bf16.msra.mxu0 0
      %904 = vmatprep.mubr.bf16.mxu0 0
      %905 = vmatmul.mubr.bf16.gmra.mrb[0].mxu0 %v870
      %v906 = vpop.f32.mrb[0].mxu0
      %v907 = vadd.f32 %v617, %v906
      %v908 = vpop.f32.mrb[0].mxu0
      %v909 = vpop.f32.mrb[0].mxu0
      %v910 = vadd.f32 %v617, %v909
      %v911 = vpop.f32.mrb[0].mxu0
      %912 = vdwg.mxu0
      %v913 = vmax.f32 %v907, 0.0
      %v914 = vmax.f32 %v910, 0.0
      %p915 = scmp.gt.s32.totalorder %s26, 0
      %s916 = scalar_select %p915, 1, 0
      %s917 = scvt.s32.f32 %s916
      %p918 = scmp.lt.s32.totalorder %s26, 1
      %s919 = scalar_select %p918, 1, 0
      %s920 = scvt.s32.f32 %s919
      %v921 = vstv %s917
      %v922 = vmul.f32 %v860, %v921
      %v923 = vmul.f32 %v861, %v921
      %924 = vst [vmem:[#allocation2 + $0x8] sm:$0xff] %v922
      %925 = vst [vmem:[#allocation2 + $0x10] sm:$0xff] %v923
      %926 = vst [vmem:[#allocation2 + $0x18] sm:$0xff] %v793
      %927 = vst [vmem:[#allocation2 + $0x20] sm:$0xff] %v794
      %928 = vst [vmem:[#allocation2 + $0x28] sm:$0xff] %v795
      %929 = vst [vmem:[#allocation2 + $0x30] sm:$0xff] %v796
      %930 = vst [vmem:[#allocation2 + $0x38] sm:$0xff] %v797
      %931 = vst [vmem:[#allocation2 + $0x40] sm:$0xff] %v798
      %932 = vst [vmem:[#allocation2 + $0x48] sm:$0xff] %v799
      %933 = vst [vmem:[#allocation2 + $0x50] sm:$0xff] %v800
      %934 = vst [vmem:[#allocation2 + $0x58] sm:$0xff] %v801
      %935 = vst [vmem:[#allocation2 + $0x60] sm:$0xff] %v802
      %936 = vst [vmem:[#allocation2 + $0x68] sm:$0xff] %v803
      %937 = vst [vmem:[#allocation2 + $0x70] sm:$0xff] %v804
      %938 = vst [vmem:[#allocation2 + $0x78] sm:$0xff] %v805
      %939 = vst [vmem:[#allocation2 + $0x80] sm:$0xff] %v806
      %940 = vst [vmem:[#allocation2 + $0x88] sm:$0xff] %v807
      %941 = vst [vmem:[#allocation2 + $0x90] sm:$0xff] %v808
      %v942 = vstv %s920
      %v943 = vmul.f32 %v913, %v942
      %v944 = vmul.f32 %v914, %v942
      %945 = vst [vmem:[#allocation2 + $0x98] sm:$0xff] %v943
      %946 = vst [vmem:[#allocation2 + $0xa0] sm:$0xff] %v944
      %v947 = vlaneseq
      %v948 = vshrl.u32 %v947, 7
      %v949 = vadd.s32 %v948, 8
      %v950 = vadd.s32 %v948, 16
      %v951 = vadd.s32 %v948, 24
      %v952 = vadd.s32 %v948, 32
      %v953 = vadd.s32 %v948, 40
      %v954 = vadd.s32 %v948, 48
      %v955 = vadd.s32 %v948, 56
      %v956 = vadd.s32 %v948, 64
      %v957 = vadd.s32 %v948, 72
      %v958 = vadd.s32 %v948, 80
      %v959 = vadd.s32 %v948, 88
      %v960 = vadd.s32 %v948, 96
      %v961 = vadd.s32 %v948, 104
      %v962 = vadd.s32 %v948, 112
      %v963 = vadd.s32 %v948, 120
      %vm964 = vcmp.lt.s32.totalorder %v948, 0
      %v965 = vsub.s32 0, %v948
      %v966 = vsel %vm964, %v965, %v948
      %v967 = vshrl.u32 %v966, 4
      %v968 = vand.u32 %v966, 15
      %v969 = vsub.s32 0, %v968
      %v970 = vsel %vm964, %v969, %v968
      %vm971 = vcmp.lt.s32.totalorder %v949, 0
      %v972 = vsub.s32 0, %v949
      %v973 = vsel %vm971, %v972, %v949
      %v974 = vshrl.u32 %v973, 4
      %v975 = vand.u32 %v973, 15
      %v976 = vsub.s32 0, %v975
      %v977 = vsel %vm971, %v976, %v975
      %vm978 = vcmp.lt.s32.totalorder %v950, 0
      %v979 = vsub.s32 0, %v950
      %v980 = vsel %vm978, %v979, %v950
      %v981 = vshrl.u32 %v980, 4
      %v982 = vand.u32 %v980, 15
      %v983 = vsub.s32 0, %v982
      %v984 = vsel %vm978, %v983, %v982
      %vm985 = vcmp.lt.s32.totalorder %v951, 0
      %v986 = vsub.s32 0, %v951
      %v987 = vsel %vm985, %v986, %v951
      %v988 = vshrl.u32 %v987, 4
      %v989 = vand.u32 %v987, 15
      %v990 = vsub.s32 0, %v989
      %v991 = vsel %vm985, %v990, %v989
      %vm992 = vcmp.lt.s32.totalorder %v952, 0
      %v993 = vsub.s32 0, %v952
      %v994 = vsel %vm992, %v993, %v952
      %v995 = vshrl.u32 %v994, 4
      %v996 = vand.u32 %v994, 15
      %v997 = vsub.s32 0, %v996
      %v998 = vsel %vm992, %v997, %v996
      %vm999 = vcmp.lt.s32.totalorder %v953, 0
      %v1000 = vsub.s32 0, %v953
      %v1001 = vsel %vm999, %v1000, %v953
      %v1002 = vshrl.u32 %v1001, 4
      %v1003 = vand.u32 %v1001, 15
      %v1004 = vsub.s32 0, %v1003
      %v1005 = vsel %vm999, %v1004, %v1003
      %vm1006 = vcmp.lt.s32.totalorder %v954, 0
      %v1007 = vsub.s32 0, %v954
      %v1008 = vsel %vm1006, %v1007, %v954
      %v1009 = vshrl.u32 %v1008, 4
      %v1010 = vand.u32 %v1008, 15
      %v1011 = vsub.s32 0, %v1010
      %v1012 = vsel %vm1006, %v1011, %v1010
      %vm1013 = vcmp.lt.s32.totalorder %v955, 0
      %v1014 = vsub.s32 0, %v955
      %v1015 = vsel %vm1013, %v1014, %v955
      %v1016 = vshrl.u32 %v1015, 4
      %v1017 = vand.u32 %v1015, 15
      %v1018 = vsub.s32 0, %v1017
      %v1019 = vsel %vm1013, %v1018, %v1017
      %vm1020 = vcmp.lt.s32.totalorder %v956, 0
      %v1021 = vsub.s32 0, %v956
      %v1022 = vsel %vm1020, %v1021, %v956
      %v1023 = vshrl.u32 %v1022, 4
      %v1024 = vand.u32 %v1022, 15
      %v1025 = vsub.s32 0, %v1024
      %v1026 = vsel %vm1020, %v1025, %v1024
      %vm1027 = vcmp.lt.s32.totalorder %v957, 0
      %v1028 = vsub.s32 0, %v957
      %v1029 = vsel %vm1027, %v1028, %v957
      %v1030 = vshrl.u32 %v1029, 4
      %v1031 = vand.u32 %v1029, 15
      %v1032 = vsub.s32 0, %v1031
      %v1033 = vsel %vm1027, %v1032, %v1031
      %vm1034 = vcmp.lt.s32.totalorder %v958, 0
      %v1035 = vsub.s32 0, %v958
      %v1036 = vsel %vm1034, %v1035, %v958
      %v1037 = vshrl.u32 %v1036, 4
      %v1038 = vand.u32 %v1036, 15
      %v1039 = vsub.s32 0, %v1038
      %v1040 = vsel %vm1034, %v1039, %v1038
      %vm1041 = vcmp.lt.s32.totalorder %v959, 0
      %v1042 = vsub.s32 0, %v959
      %v1043 = vsel %vm1041, %v1042, %v959
      %v1044 = vshrl.u32 %v1043, 4
      %v1045 = vand.u32 %v1043, 15
      %v1046 = vsub.s32 0, %v1045
      %v1047 = vsel %vm1041, %v1046, %v1045
      %vm1048 = vcmp.lt.s32.totalorder %v960, 0
      %v1049 = vsub.s32 0, %v960
      %v1050 = vsel %vm1048, %v1049, %v960
      %v1051 = vshrl.u32 %v1050, 4
      %v1052 = vand.u32 %v1050, 15
      %v1053 = vsub.s32 0, %v1052
      %v1054 = vsel %vm1048, %v1053, %v1052
      %vm1055 = vcmp.lt.s32.totalorder %v961, 0
      %v1056 = vsub.s32 0, %v961
      %v1057 = vsel %vm1055, %v1056, %v961
      %v1058 = vshrl.u32 %v1057, 4
      %v1059 = vand.u32 %v1057, 15
      %v1060 = vsub.s32 0, %v1059
      %v1061 = vsel %vm1055, %v1060, %v1059
      %vm1062 = vcmp.lt.s32.totalorder %v962, 0
      %v1063 = vsub.s32 0, %v962
      %v1064 = vsel %vm1062, %v1063, %v962
      %v1065 = vshrl.u32 %v1064, 4
      %v1066 = vand.u32 %v1064, 15
      %v1067 = vsub.s32 0, %v1066
      %v1068 = vsel %vm1062, %v1067, %v1066
      %vm1069 = vcmp.lt.s32.totalorder %v963, 0
      %v1070 = vsub.s32 0, %v963
      %v1071 = vsel %vm1069, %v1070, %v963
      %v1072 = vshrl.u32 %v1071, 4
      %v1073 = vand.u32 %v1071, 15
      %v1074 = vsub.s32 0, %v1073
      %v1075 = vsel %vm1069, %v1074, %v1073
      %vm1076 = vcmp.ne.s32.totalorder %v970, 0
      %vm1077 = vcmp.ne.s32.totalorder %v977, 0
      %vm1078 = vcmp.ne.s32.totalorder %v984, 0
      %vm1079 = vcmp.ne.s32.totalorder %v991, 0
      %vm1080 = vcmp.ne.s32.totalorder %v998, 0
      %vm1081 = vcmp.ne.s32.totalorder %v1005, 0
      %vm1082 = vcmp.ne.s32.totalorder %v1012, 0
      %vm1083 = vcmp.ne.s32.totalorder %v1019, 0
      %vm1084 = vcmp.ne.s32.totalorder %v1026, 0
      %vm1085 = vcmp.ne.s32.totalorder %v1033, 0
      %vm1086 = vcmp.ne.s32.totalorder %v1040, 0
      %vm1087 = vcmp.ne.s32.totalorder %v1047, 0
      %vm1088 = vcmp.ne.s32.totalorder %v1054, 0
      %vm1089 = vcmp.ne.s32.totalorder %v1061, 0
      %vm1090 = vcmp.ne.s32.totalorder %v1068, 0
      %vm1091 = vcmp.ne.s32.totalorder %v1075, 0
      %vm1092 = vcmp.lt.s32.totalorder %v970, 0
      %vm1093 = vcmp.lt.s32.totalorder %v977, 0
      %vm1094 = vcmp.lt.s32.totalorder %v984, 0
      %vm1095 = vcmp.lt.s32.totalorder %v991, 0
      %vm1096 = vcmp.lt.s32.totalorder %v998, 0
      %vm1097 = vcmp.lt.s32.totalorder %v1005, 0
      %vm1098 = vcmp.lt.s32.totalorder %v1012, 0
      %vm1099 = vcmp.lt.s32.totalorder %v1019, 0
      %vm1100 = vcmp.lt.s32.totalorder %v1026, 0
      %vm1101 = vcmp.lt.s32.totalorder %v1033, 0
      %vm1102 = vcmp.lt.s32.totalorder %v1040, 0
      %vm1103 = vcmp.lt.s32.totalorder %v1047, 0
      %vm1104 = vcmp.lt.s32.totalorder %v1054, 0
      %vm1105 = vcmp.lt.s32.totalorder %v1061, 0
      %vm1106 = vcmp.lt.s32.totalorder %v1068, 0
      %vm1107 = vcmp.lt.s32.totalorder %v1075, 0
      %vm1108 = vmand %vm1092, %vm1076
      %vm1109 = vmand %vm1093, %vm1077
      %vm1110 = vmand %vm1094, %vm1078
      %vm1111 = vmand %vm1095, %vm1079
      %vm1112 = vmand %vm1096, %vm1080
      %vm1113 = vmand %vm1097, %vm1081
      %vm1114 = vmand %vm1098, %vm1082
      %vm1115 = vmand %vm1099, %vm1083
      %vm1116 = vmand %vm1100, %vm1084
      %vm1117 = vmand %vm1101, %vm1085
      %vm1118 = vmand %vm1102, %vm1086
      %vm1119 = vmand %vm1103, %vm1087
      %vm1120 = vmand %vm1104, %vm1088
      %vm1121 = vmand %vm1105, %vm1089
      %vm1122 = vmand %vm1106, %vm1090
      %vm1123 = vmand %vm1107, %vm1091
      %v1124 = vadd.s32 %v970, 16
      %v1125 = vadd.s32 %v977, 16
      %v1126 = vadd.s32 %v984, 16
      %v1127 = vadd.s32 %v991, 16
      %v1128 = vadd.s32 %v998, 16
      %v1129 = vadd.s32 %v1005, 16
      %v1130 = vadd.s32 %v1012, 16
      %v1131 = vadd.s32 %v1019, 16
      %v1132 = vadd.s32 %v1026, 16
      %v1133 = vadd.s32 %v1033, 16
      %v1134 = vadd.s32 %v1040, 16
      %v1135 = vadd.s32 %v1047, 16
      %v1136 = vadd.s32 %v1054, 16
      %v1137 = vadd.s32 %v1061, 16
      %v1138 = vadd.s32 %v1068, 16
      %v1139 = vadd.s32 %v1075, 16
      %v1140 = vsel %vm1108, %v1124, %v970
      %v1141 = vsel %vm1109, %v1125, %v977
      %v1142 = vsel %vm1110, %v1126, %v984
      %v1143 = vsel %vm1111, %v1127, %v991
      %v1144 = vsel %vm1112, %v1128, %v998
      %v1145 = vsel %vm1113, %v1129, %v1005
      %v1146 = vsel %vm1114, %v1130, %v1012
      %v1147 = vsel %vm1115, %v1131, %v1019
      %v1148 = vsel %vm1116, %v1132, %v1026
      %v1149 = vsel %vm1117, %v1133, %v1033
      %v1150 = vsel %vm1118, %v1134, %v1040
      %v1151 = vsel %vm1119, %v1135, %v1047
      %v1152 = vsel %vm1120, %v1136, %v1054
      %v1153 = vsel %vm1121, %v1137, %v1061
      %v1154 = vsel %vm1122, %v1138, %v1068
      %v1155 = vsel %vm1123, %v1139, %v1075
      %vm1156 = vcmp.ne.s32.totalorder %v1140, 0
      %vm1157 = vcmp.ne.s32.totalorder %v1141, 0
      %vm1158 = vcmp.ne.s32.totalorder %v1142, 0
      %vm1159 = vcmp.ne.s32.totalorder %v1143, 0
      %vm1160 = vcmp.ne.s32.totalorder %v1144, 0
      %vm1161 = vcmp.ne.s32.totalorder %v1145, 0
      %vm1162 = vcmp.ne.s32.totalorder %v1146, 0
      %vm1163 = vcmp.ne.s32.totalorder %v1147, 0
      %vm1164 = vcmp.ne.s32.totalorder %v1148, 0
      %vm1165 = vcmp.ne.s32.totalorder %v1149, 0
      %vm1166 = vcmp.ne.s32.totalorder %v1150, 0
      %vm1167 = vcmp.ne.s32.totalorder %v1151, 0
      %vm1168 = vcmp.ne.s32.totalorder %v1152, 0
      %vm1169 = vcmp.ne.s32.totalorder %v1153, 0
      %vm1170 = vcmp.ne.s32.totalorder %v1154, 0
      %vm1171 = vcmp.ne.s32.totalorder %v1155, 0
      %v1172 = vsel %vm1156, 1, 0
      %v1173 = vsel %vm1157, 1, 0
      %v1174 = vsel %vm1158, 1, 0
      %v1175 = vsel %vm1159, 1, 0
      %v1176 = vsel %vm1160, 1, 0
      %v1177 = vsel %vm1161, 1, 0
      %v1178 = vsel %vm1162, 1, 0
      %v1179 = vsel %vm1163, 1, 0
      %v1180 = vsel %vm1164, 1, 0
      %v1181 = vsel %vm1165, 1, 0
      %v1182 = vsel %vm1166, 1, 0
      %v1183 = vsel %vm1167, 1, 0
      %v1184 = vsel %vm1168, 1, 0
      %v1185 = vsel %vm1169, 1, 0
      %v1186 = vsel %vm1170, 1, 0
      %v1187 = vsel %vm1171, 1, 0
      %v1188 = vcvt.s32.f32 %v1172
      %v1189 = vcvt.s32.f32 %v1173
      %v1190 = vcvt.s32.f32 %v1174
      %v1191 = vcvt.s32.f32 %v1175
      %v1192 = vcvt.s32.f32 %v1176
      %v1193 = vcvt.s32.f32 %v1177
      %v1194 = vcvt.s32.f32 %v1178
      %v1195 = vcvt.s32.f32 %v1179
      %v1196 = vcvt.s32.f32 %v1180
      %v1197 = vcvt.s32.f32 %v1181
      %v1198 = vcvt.s32.f32 %v1182
      %v1199 = vcvt.s32.f32 %v1183
      %v1200 = vcvt.s32.f32 %v1184
      %v1201 = vcvt.s32.f32 %v1185
      %v1202 = vcvt.s32.f32 %v1186
      %v1203 = vcvt.s32.f32 %v1187
      %vm1204 = vcmp.ne.s32.totalorder %v1140, 15
      %vm1205 = vcmp.ne.s32.totalorder %v1141, 15
      %vm1206 = vcmp.ne.s32.totalorder %v1142, 15
      %vm1207 = vcmp.ne.s32.totalorder %v1143, 15
      %vm1208 = vcmp.ne.s32.totalorder %v1144, 15
      %vm1209 = vcmp.ne.s32.totalorder %v1145, 15
      %vm1210 = vcmp.ne.s32.totalorder %v1146, 15
      %vm1211 = vcmp.ne.s32.totalorder %v1147, 15
      %vm1212 = vcmp.ne.s32.totalorder %v1148, 15
      %vm1213 = vcmp.ne.s32.totalorder %v1149, 15
      %vm1214 = vcmp.ne.s32.totalorder %v1150, 15
      %vm1215 = vcmp.ne.s32.totalorder %v1151, 15
      %vm1216 = vcmp.ne.s32.totalorder %v1152, 15
      %vm1217 = vcmp.ne.s32.totalorder %v1153, 15
      %vm1218 = vcmp.ne.s32.totalorder %v1154, 15
      %vm1219 = vcmp.ne.s32.totalorder %v1155, 15
      %v1220 = vsel %vm1204, 1, 0
      %v1221 = vsel %vm1205, 1, 0
      %v1222 = vsel %vm1206, 1, 0
      %v1223 = vsel %vm1207, 1, 0
      %v1224 = vsel %vm1208, 1, 0
      %v1225 = vsel %vm1209, 1, 0
      %v1226 = vsel %vm1210, 1, 0
      %v1227 = vsel %vm1211, 1, 0
      %v1228 = vsel %vm1212, 1, 0
      %v1229 = vsel %vm1213, 1, 0
      %v1230 = vsel %vm1214, 1, 0
      %v1231 = vsel %vm1215, 1, 0
      %v1232 = vsel %vm1216, 1, 0
      %v1233 = vsel %vm1217, 1, 0
      %v1234 = vsel %vm1218, 1, 0
      %v1235 = vsel %vm1219, 1, 0
      %v1236 = vcvt.s32.f32 %v1220
      %v1237 = vcvt.s32.f32 %v1221
      %v1238 = vcvt.s32.f32 %v1222
      %v1239 = vcvt.s32.f32 %v1223
      %v1240 = vcvt.s32.f32 %v1224
      %v1241 = vcvt.s32.f32 %v1225
      %v1242 = vcvt.s32.f32 %v1226
      %v1243 = vcvt.s32.f32 %v1227
      %v1244 = vcvt.s32.f32 %v1228
      %v1245 = vcvt.s32.f32 %v1229
      %v1246 = vcvt.s32.f32 %v1230
      %v1247 = vcvt.s32.f32 %v1231
      %v1248 = vcvt.s32.f32 %v1232
      %v1249 = vcvt.s32.f32 %v1233
      %v1250 = vcvt.s32.f32 %v1234
      %v1251 = vcvt.s32.f32 %v1235
      %v1252 = vld [vmem:[#allocation2 + $0x7] sm:$0xff]
      %v1253 = vld [vmem:[#allocation2 + $0xf] sm:$0xff]
      %v1254 = vld [vmem:[#allocation2 + $0x17] sm:$0xff]
      %v1255 = vld [vmem:[#allocation2 + $0x1f] sm:$0xff]
      %v1256 = vld [vmem:[#allocation2 + $0x27] sm:$0xff]
      %v1257 = vld [vmem:[#allocation2 + $0x2f] sm:$0xff]
      %v1258 = vld [vmem:[#allocation2 + $0x37] sm:$0xff]
      %v1259 = vld [vmem:[#allocation2 + $0x3f] sm:$0xff]
      %v1260 = vld [vmem:[#allocation2 + $0x47] sm:$0xff]
      %v1261 = vld [vmem:[#allocation2 + $0x4f] sm:$0xff]
      %v1262 = vld [vmem:[#allocation2 + $0x57] sm:$0xff]
      %v1263 = vld [vmem:[#allocation2 + $0x5f] sm:$0xff]
      %v1264 = vld [vmem:[#allocation2 + $0x67] sm:$0xff]
      %v1265 = vld [vmem:[#allocation2 + $0x6f] sm:$0xff]
      %v1266 = vld [vmem:[#allocation2 + $0x77] sm:$0xff]
      %v1267 = vld [vmem:[#allocation2 + $0x7f] sm:$0xff]
      %v1268 = vmul.f32 %v1252, %v1188
      %v1269 = vmul.f32 %v1253, %v1189
      %v1270 = vmul.f32 %v1254, %v1190
      %v1271 = vmul.f32 %v1255, %v1191
      %v1272 = vmul.f32 %v1256, %v1192
      %v1273 = vmul.f32 %v1257, %v1193
      %v1274 = vmul.f32 %v1258, %v1194
      %v1275 = vmul.f32 %v1259, %v1195
      %v1276 = vmul.f32 %v1260, %v1196
      %v1277 = vmul.f32 %v1261, %v1197
      %v1278 = vmul.f32 %v1262, %v1198
      %v1279 = vmul.f32 %v1263, %v1199
      %v1280 = vmul.f32 %v1264, %v1200
      %v1281 = vmul.f32 %v1265, %v1201
      %v1282 = vmul.f32 %v1266, %v1202
      %v1283 = vmul.f32 %v1267, %v1203
      %v1284 = vpack.c.bf16 %v1269, %v1268
      %v1285 = vpack.c.bf16 %v1271, %v1270
      %v1286 = vpack.c.bf16 %v1273, %v1272
      %v1287 = vpack.c.bf16 %v1275, %v1274
      %v1288 = vpack.c.bf16 %v1277, %v1276
      %v1289 = vpack.c.bf16 %v1279, %v1278
      %v1290 = vpack.c.bf16 %v1281, %v1280
      %v1291 = vpack.c.bf16 %v1283, %v1282
      %v1292 = vld [vmem:[%s8] sm:$0xff]
      %v1293 = vld [vmem:[%s8 + $0x8] sm:$0xff]
      %v1294 = vld [vmem:[%s8 + $0x10] sm:$0xff]
      %v1295 = vld [vmem:[%s8 + $0x18] sm:$0xff]
      %v1296 = vld [vmem:[%s8 + $0x20] sm:$0xff]
      %v1297 = vld [vmem:[%s8 + $0x28] sm:$0xff]
      %v1298 = vld [vmem:[%s8 + $0x30] sm:$0xff]
      %v1299 = vld [vmem:[%s8 + $0x38] sm:$0xff]
      %v1300 = vld [vmem:[%s8 + $0x40] sm:$0xff]
      %v1301 = vld [vmem:[%s8 + $0x48] sm:$0xff]
      %v1302 = vld [vmem:[%s8 + $0x50] sm:$0xff]
      %v1303 = vld [vmem:[%s8 + $0x58] sm:$0xff]
      %v1304 = vld [vmem:[%s8 + $0x60] sm:$0xff]
      %v1305 = vld [vmem:[%s8 + $0x68] sm:$0xff]
      %v1306 = vld [vmem:[%s8 + $0x70] sm:$0xff]
      %v1307 = vld [vmem:[%s8 + $0x78] sm:$0xff]
      %v1308 = vld [vmem:[#allocation2 + $0x8] sm:$0xff]
      %v1309 = vld [vmem:[#allocation2 + $0x10] sm:$0xff]
      %v1310 = vld [vmem:[#allocation2 + $0x18] sm:$0xff]
      %v1311 = vld [vmem:[#allocation2 + $0x20] sm:$0xff]
      %v1312 = vld [vmem:[#allocation2 + $0x28] sm:$0xff]
      %v1313 = vld [vmem:[#allocation2 + $0x30] sm:$0xff]
      %v1314 = vld [vmem:[#allocation2 + $0x38] sm:$0xff]
      %v1315 = vld [vmem:[#allocation2 + $0x40] sm:$0xff]
      %v1316 = vld [vmem:[#allocation2 + $0x48] sm:$0xff]
      %v1317 = vld [vmem:[#allocation2 + $0x50] sm:$0xff]
      %v1318 = vld [vmem:[#allocation2 + $0x58] sm:$0xff]
      %v1319 = vld [vmem:[#allocation2 + $0x60] sm:$0xff]
      %v1320 = vld [vmem:[#allocation2 + $0x68] sm:$0xff]
      %v1321 = vld [vmem:[#allocation2 + $0x70] sm:$0xff]
      %v1322 = vld [vmem:[#allocation2 + $0x78] sm:$0xff]
      %v1323 = vld [vmem:[#allocation2 + $0x80] sm:$0xff]
      %v1324 = vpack.c.bf16 %v1309, %v1308
      %v1325 = vpack.c.bf16 %v1311, %v1310
      %v1326 = vpack.c.bf16 %v1313, %v1312
      %v1327 = vpack.c.bf16 %v1315, %v1314
      %v1328 = vpack.c.bf16 %v1317, %v1316
      %v1329 = vpack.c.bf16 %v1319, %v1318
      %v1330 = vpack.c.bf16 %v1321, %v1320
      %v1331 = vpack.c.bf16 %v1323, %v1322
      %s1332 = scalar_lea.vmem %s8, 128
      %v1333 = vld [vmem:[%s1332] sm:$0xff]
      %v1334 = vld [vmem:[%s1332 + $0x8] sm:$0xff]
      %v1335 = vld [vmem:[%s1332 + $0x10] sm:$0xff]
      %v1336 = vld [vmem:[%s1332 + $0x18] sm:$0xff]
      %v1337 = vld [vmem:[%s1332 + $0x20] sm:$0xff]
      %v1338 = vld [vmem:[%s1332 + $0x28] sm:$0xff]
      %v1339 = vld [vmem:[%s1332 + $0x30] sm:$0xff]
      %v1340 = vld [vmem:[%s1332 + $0x38] sm:$0xff]
      %v1341 = vld [vmem:[%s1332 + $0x40] sm:$0xff]
      %v1342 = vld [vmem:[%s1332 + $0x48] sm:$0xff]
      %v1343 = vld [vmem:[%s1332 + $0x50] sm:$0xff]
      %v1344 = vld [vmem:[%s1332 + $0x58] sm:$0xff]
      %v1345 = vld [vmem:[%s1332 + $0x60] sm:$0xff]
      %v1346 = vld [vmem:[%s1332 + $0x68] sm:$0xff]
      %v1347 = vld [vmem:[%s1332 + $0x70] sm:$0xff]
      %v1348 = vld [vmem:[%s1332 + $0x78] sm:$0xff]
      %v1365 = vunpack.c.l.b16 %v1333
      %v1366 = vunpack.c.h.b16 %v1333
      %v1367 = vunpack.c.l.b16 %v1334
      %v1368 = vunpack.c.h.b16 %v1334
      %v1369 = vunpack.c.l.b16 %v1335
      %v1370 = vunpack.c.h.b16 %v1335
      %v1371 = vunpack.c.l.b16 %v1336
      %v1372 = vunpack.c.h.b16 %v1336
      %v1373 = vunpack.c.l.b16 %v1337
      %v1374 = vunpack.c.h.b16 %v1337
      %v1375 = vunpack.c.l.b16 %v1338
      %v1376 = vunpack.c.h.b16 %v1338
      %v1377 = vunpack.c.l.b16 %v1339
      %v1378 = vunpack.c.h.b16 %v1339
      %v1379 = vunpack.c.l.b16 %v1340
      %v1380 = vunpack.c.h.b16 %v1340
      %v1381 = vunpack.c.l.b16 %v1341
      %v1382 = vunpack.c.h.b16 %v1341
      %v1383 = vunpack.c.l.b16 %v1342
      %v1384 = vunpack.c.h.b16 %v1342
      %v1385 = vunpack.c.l.b16 %v1343
      %v1386 = vunpack.c.h.b16 %v1343
      %v1387 = vunpack.c.l.b16 %v1344
      %v1388 = vunpack.c.h.b16 %v1344
      %v1389 = vunpack.c.l.b16 %v1345
      %v1390 = vunpack.c.h.b16 %v1345
      %v1391 = vunpack.c.l.b16 %v1346
      %v1392 = vunpack.c.h.b16 %v1346
      %v1393 = vunpack.c.l.b16 %v1347
      %v1394 = vunpack.c.h.b16 %v1347
      %v1395 = vunpack.c.l.b16 %v1348
      %v1396 = vunpack.c.h.b16 %v1348
      %v1397 = vpack.c.b16 %v1367, %v1365
      %v1398 = vpack.c.b16 %v1368, %v1366
      %v1399 = vpack.c.b16 %v1371, %v1369
      %v1400 = vpack.c.b16 %v1372, %v1370
      %v1401 = vpack.c.b16 %v1375, %v1373
      %v1402 = vpack.c.b16 %v1376, %v1374
      %v1403 = vpack.c.b16 %v1379, %v1377
      %v1404 = vpack.c.b16 %v1380, %v1378
      %v1405 = vpack.c.b16 %v1383, %v1381
      %v1406 = vpack.c.b16 %v1384, %v1382
      %v1407 = vpack.c.b16 %v1387, %v1385
      %v1408 = vpack.c.b16 %v1388, %v1386
      %v1409 = vpack.c.b16 %v1391, %v1389
      %v1410 = vpack.c.b16 %v1392, %v1390
      %v1411 = vpack.c.b16 %v1395, %v1393
      %v1412 = vpack.c.b16 %v1396, %v1394
      %1429 = vmatprep.subr.bf16.mxu0 %v1398
      %1430 = vmatpush1.bf16.msra.mxu0 %v1397
      %1431 = vmatprep.subr.bf16.mxu0 %v1400
      %1432 = vmatpush1.bf16.msra.mxu0 %v1399
      %1433 = vmatprep.subr.bf16.mxu0 %v1402
      %1434 = vmatpush1.bf16.msra.mxu0 %v1401
      %1435 = vmatprep.subr.bf16.mxu0 %v1404
      %1436 = vmatpush1.bf16.msra.mxu0 %v1403
      %1437 = vmatprep.subr.bf16.mxu0 %v1406
      %1438 = vmatpush1.bf16.msra.mxu0 %v1405
      %1439 = vmatprep.subr.bf16.mxu0 %v1408
      %1440 = vmatpush1.bf16.msra.mxu0 %v1407
      %1441 = vmatprep.subr.bf16.mxu0 %v1410
      %1442 = vmatpush1.bf16.msra.mxu0 %v1409
      %1443 = vmatprep.subr.bf16.mxu0 %v1412
      %1444 = vmatpush1.bf16.msra.mxu0 %v1411
      %1445 = vmatprep.subr.bf16.mxu0 0
      %1446 = vmatpush1.bf16.msra.mxu0 0
      %1447 = vmatprep.subr.bf16.mxu0 0
      %1448 = vmatpush1.bf16.msra.mxu0 0
      %1449 = vmatprep.subr.bf16.mxu0 0
      %1450 = vmatpush1.bf16.msra.mxu0 0
      %1451 = vmatprep.subr.bf16.mxu0 0
      %1452 = vmatpush1.bf16.msra.mxu0 0
      %1453 = vmatprep.subr.bf16.mxu0 0
      %1454 = vmatpush1.bf16.msra.mxu0 0
      %1455 = vmatprep.subr.bf16.mxu0 0
      %1456 = vmatpush1.bf16.msra.mxu0 0
      %1457 = vmatprep.subr.bf16.mxu0 0
      %1458 = vmatpush1.bf16.msra.mxu0 0
      %1459 = vmatprep.subr.bf16.mxu0 0
      %1460 = vmatpush1.bf16.msra.mxu0 0
      %1461 = vmatprep.mubr.bf16.mxu0 0
      %1462 = vmatmul.mubr.bf16.gmra.mrb[0].mxu0 %v1324
      %v1463 = vpop.f32.mrb[0].mxu0
      %v1464 = vadd.f32 0.0, %v1463
      %v1465 = vpop.f32.mrb[0].mxu0
      %v1466 = vadd.f32 0.0, %v1465
      %v1467 = vpop.f32.mrb[0].mxu0
      %v1468 = vadd.f32 0.0, %v1467
      %v1469 = vpop.f32.mrb[0].mxu0
      %v1470 = vadd.f32 0.0, %v1469
      %1471 = vmatprep.mubr.bf16.mxu0 0
      %1472 = vmatmul.mubr.bf16.gmra.mrb[0].mxu0 %v1325
      %v1473 = vpop.f32.mrb[0].mxu0
      %v1474 = vadd.f32 0.0, %v1473
      %v1475 = vpop.f32.mrb[0].mxu0
      %v1476 = vadd.f32 0.0, %v1475
      %v1477 = vpop.f32.mrb[0].mxu0
      %v1478 = vadd.f32 0.0, %v1477
      %v1479 = vpop.f32.mrb[0].mxu0
      %v1480 = vadd.f32 0.0, %v1479
      %1481 = vmatprep.mubr.bf16.mxu0 0
      %1482 = vmatmul.mubr.bf16.gmra.mrb[0].mxu0 %v1326
      %v1483 = vpop.f32.mrb[0].mxu0
      %v1484 = vadd.f32 0.0, %v1483
      %v1485 = vpop.f32.mrb[0].mxu0
      %v1486 = vadd.f32 0.0, %v1485
      %v1487 = vpop.f32.mrb[0].mxu0
      %v1488 = vadd.f32 0.0, %v1487
      %v1489 = vpop.f32.mrb[0].mxu0
      %v1490 = vadd.f32 0.0, %v1489
      %1491 = vmatprep.mubr.bf16.mxu0 0
      %1492 = vmatmul.mubr.bf16.gmra.mrb[0].mxu0 %v1327
      %v1493 = vpop.f32.mrb[0].mxu0
      %v1494 = vadd.f32 0.0, %v1493
      %v1495 = vpop.f32.mrb[0].mxu0
      %v1496 = vadd.f32 0.0, %v1495
      %v1497 = vpop.f32.mrb[0].mxu0
      %v1498 = vadd.f32 0.0, %v1497
      %v1499 = vpop.f32.mrb[0].mxu0
      %v1500 = vadd.f32 0.0, %v1499
      %1501 = vmatprep.mubr.bf16.mxu0 0
      %1502 = vmatmul.mubr.bf16.gmra.mrb[0].mxu0 %v1328
      %v1503 = vpop.f32.mrb[0].mxu0
      %v1504 = vadd.f32 0.0, %v1503
      %v1505 = vpop.f32.mrb[0].mxu0
      %v1506 = vadd.f32 0.0, %v1505
      %v1507 = vpop.f32.mrb[0].mxu0
      %v1508 = vadd.f32 0.0, %v1507
      %v1509 = vpop.f32.mrb[0].mxu0
      %v1510 = vadd.f32 0.0, %v1509
      %1511 = vmatprep.mubr.bf16.mxu0 0
      %1512 = vmatmul.mubr.bf16.gmra.mrb[0].mxu0 %v1329
      %v1513 = vpop.f32.mrb[0].mxu0
      %v1514 = vadd.f32 0.0, %v1513
      %v1515 = vpop.f32.mrb[0].mxu0
      %v1516 = vadd.f32 0.0, %v1515
      %v1517 = vpop.f32.mrb[0].mxu0
      %v1518 = vadd.f32 0.0, %v1517
      %v1519 = vpop.f32.mrb[0].mxu0
      %v1520 = vadd.f32 0.0, %v1519
      %1521 = vmatprep.mubr.bf16.mxu0 0
      %1522 = vmatmul.mubr.bf16.gmra.mrb[0].mxu0 %v1330
      %v1523 = vpop.f32.mrb[0].mxu0
      %v1524 = vadd.f32 0.0, %v1523
      %v1525 = vpop.f32.mrb[0].mxu0
      %v1526 = vadd.f32 0.0, %v1525
      %v1527 = vpop.f32.mrb[0].mxu0
      %v1528 = vadd.f32 0.0, %v1527
      %v1529 = vpop.f32.mrb[0].mxu0
      %v1530 = vadd.f32 0.0, %v1529
      %1531 = vmatprep.mubr.bf16.mxu0 0
      %1532 = vmatmul.mubr.bf16.gmra.mrb[0].mxu0 %v1331
      %v1533 = vpop.f32.mrb[0].mxu0
      %v1534 = vadd.f32 0.0, %v1533
      %v1535 = vpop.f32.mrb[0].mxu0
      %v1536 = vadd.f32 0.0, %v1535
      %v1537 = vpop.f32.mrb[0].mxu0
      %v1538 = vadd.f32 0.0, %v1537
      %v1539 = vpop.f32.mrb[0].mxu0
      %v1540 = vadd.f32 0.0, %v1539
      %1541 = vdwg.mxu0
      %v1558 = vunpack.c.l.b16 %v1292
      %v1559 = vunpack.c.h.b16 %v1292
      %v1560 = vunpack.c.l.b16 %v1293
      %v1561 = vunpack.c.h.b16 %v1293
      %v1562 = vunpack.c.l.b16 %v1294
      %v1563 = vunpack.c.h.b16 %v1294
      %v1564 = vunpack.c.l.b16 %v1295
      %v1565 = vunpack.c.h.b16 %v1295
      %v1566 = vunpack.c.l.b16 %v1296
      %v1567 = vunpack.c.h.b16 %v1296
      %v1568 = vunpack.c.l.b16 %v1297
      %v1569 = vunpack.c.h.b16 %v1297
      %v1570 = vunpack.c.l.b16 %v1298
      %v1571 = vunpack.c.h.b16 %v1298
      %v1572 = vunpack.c.l.b16 %v1299
      %v1573 = vunpack.c.h.b16 %v1299
      %v1574 = vunpack.c.l.b16 %v1300
      %v1575 = vunpack.c.h.b16 %v1300
      %v1576 = vunpack.c.l.b16 %v1301
      %v1577 = vunpack.c.h.b16 %v1301
      %v1578 = vunpack.c.l.b16 %v1302
      %v1579 = vunpack.c.h.b16 %v1302
      %v1580 = vunpack.c.l.b16 %v1303
      %v1581 = vunpack.c.h.b16 %v1303
      %v1582 = vunpack.c.l.b16 %v1304
      %v1583 = vunpack.c.h.b16 %v1304
      %v1584 = vunpack.c.l.b16 %v1305
      %v1585 = vunpack.c.h.b16 %v1305
      %v1586 = vunpack.c.l.b16 %v1306
      %v1587 = vunpack.c.h.b16 %v1306
      %v1588 = vunpack.c.l.b16 %v1307
      %v1589 = vunpack.c.h.b16 %v1307
      %v1590 = vpack.c.b16 %v1560, %v1558
      %v1591 = vpack.c.b16 %v1561, %v1559
      %v1592 = vpack.c.b16 %v1564, %v1562
      %v1593 = vpack.c.b16 %v1565, %v1563
      %v1594 = vpack.c.b16 %v1568, %v1566
      %v1595 = vpack.c.b16 %v1569, %v1567
      %v1596 = vpack.c.b16 %v1572, %v1570
      %v1597 = vpack.c.b16 %v1573, %v1571
      %v1598 = vpack.c.b16 %v1576, %v1574
      %v1599 = vpack.c.b16 %v1577, %v1575
      %v1600 = vpack.c.b16 %v1580, %v1578
      %v1601 = vpack.c.b16 %v1581, %v1579
      %v1602 = vpack.c.b16 %v1584, %v1582
      %v1603 = vpack.c.b16 %v1585, %v1583
      %v1604 = vpack.c.b16 %v1588, %v1586
      %v1605 = vpack.c.b16 %v1589, %v1587
      %1622 = vmatprep.subr.bf16.mxu0 %v1591
      %1623 = vmatpush1.bf16.msra.mxu0 %v1590
      %1624 = vmatprep.subr.bf16.mxu0 %v1593
      %1625 = vmatpush1.bf16.msra.mxu0 %v1592
      %1626 = vmatprep.subr.bf16.mxu0 %v1595
      %1627 = vmatpush1.bf16.msra.mxu0 %v1594
      %1628 = vmatprep.subr.bf16.mxu0 %v1597
      %1629 = vmatpush1.bf16.msra.mxu0 %v1596
      %1630 = vmatprep.subr.bf16.mxu0 %v1599
      %1631 = vmatpush1.bf16.msra.mxu0 %v1598
      %1632 = vmatprep.subr.bf16.mxu0 %v1601
      %1633 = vmatpush1.bf16.msra.mxu0 %v1600
      %1634 = vmatprep.subr.bf16.mxu0 %v1603
      %1635 = vmatpush1.bf16.msra.mxu0 %v1602
      %1636 = vmatprep.subr.bf16.mxu0 %v1605
      %1637 = vmatpush1.bf16.msra.mxu0 %v1604
      %1638 = vmatprep.subr.bf16.mxu0 0
      %1639 = vmatpush1.bf16.msra.mxu0 0
      %1640 = vmatprep.subr.bf16.mxu0 0
      %1641 = vmatpush1.bf16.msra.mxu0 0
      %1642 = vmatprep.subr.bf16.mxu0 0
      %1643 = vmatpush1.bf16.msra.mxu0 0
      %1644 = vmatprep.subr.bf16.mxu0 0
      %1645 = vmatpush1.bf16.msra.mxu0 0
      %1646 = vmatprep.subr.bf16.mxu0 0
      %1647 = vmatpush1.bf16.msra.mxu0 0
      %1648 = vmatprep.subr.bf16.mxu0 0
      %1649 = vmatpush1.bf16.msra.mxu0 0
      %1650 = vmatprep.subr.bf16.mxu0 0
      %1651 = vmatpush1.bf16.msra.mxu0 0
      %1652 = vmatprep.subr.bf16.mxu0 0
      %1653 = vmatpush1.bf16.msra.mxu0 0
      %1654 = vmatprep.mubr.bf16.mxu0 0
      %1655 = vmatmul.mubr.bf16.gmra.mrb[0].mxu0 %v1284
      %v1656 = vpop.f32.mrb[0].mxu0
      %v1657 = vadd.f32 %v1464, %v1656
      %v1658 = vpop.f32.mrb[0].mxu0
      %v1659 = vadd.f32 %v1466, %v1658
      %v1660 = vpop.f32.mrb[0].mxu0
      %v1661 = vadd.f32 %v1468, %v1660
      %v1662 = vpop.f32.mrb[0].mxu0
      %v1663 = vadd.f32 %v1470, %v1662
      %1664 = vmatprep.mubr.bf16.mxu0 0
      %1665 = vmatmul.mubr.bf16.gmra.mrb[0].mxu0 %v1285
      %v1666 = vpop.f32.mrb[0].mxu0
      %v1667 = vadd.f32 %v1474, %v1666
      %v1668 = vpop.f32.mrb[0].mxu0
      %v1669 = vadd.f32 %v1476, %v1668
      %v1670 = vpop.f32.mrb[0].mxu0
      %v1671 = vadd.f32 %v1478, %v1670
      %v1672 = vpop.f32.mrb[0].mxu0
      %v1673 = vadd.f32 %v1480, %v1672
      %1674 = vmatprep.mubr.bf16.mxu0 0
      %1675 = vmatmul.mubr.bf16.gmra.mrb[0].mxu0 %v1286
      %v1676 = vpop.f32.mrb[0].mxu0
      %v1677 = vadd.f32 %v1484, %v1676
      %v1678 = vpop.f32.mrb[0].mxu0
      %v1679 = vadd.f32 %v1486, %v1678
      %v1680 = vpop.f32.mrb[0].mxu0
      %v1681 = vadd.f32 %v1488, %v1680
      %v1682 = vpop.f32.mrb[0].mxu0
      %v1683 = vadd.f32 %v1490, %v1682
      %1684 = vmatprep.mubr.bf16.mxu0 0
      %1685 = vmatmul.mubr.bf16.gmra.mrb[0].mxu0 %v1287
      %v1686 = vpop.f32.mrb[0].mxu0
      %v1687 = vadd.f32 %v1494, %v1686
      %v1688 = vpop.f32.mrb[0].mxu0
      %v1689 = vadd.f32 %v1496, %v1688
      %v1690 = vpop.f32.mrb[0].mxu0
      %v1691 = vadd.f32 %v1498, %v1690
      %v1692 = vpop.f32.mrb[0].mxu0
      %v1693 = vadd.f32 %v1500, %v1692
      %1694 = vmatprep.mubr.bf16.mxu0 0
      %1695 = vmatmul.mubr.bf16.gmra.mrb[0].mxu0 %v1288
      %v1696 = vpop.f32.mrb[0].mxu0
      %v1697 = vadd.f32 %v1504, %v1696
      %v1698 = vpop.f32.mrb[0].mxu0
      %v1699 = vadd.f32 %v1506, %v1698
      %v1700 = vpop.f32.mrb[0].mxu0
      %v1701 = vadd.f32 %v1508, %v1700
      %v1702 = vpop.f32.mrb[0].mxu0
      %v1703 = vadd.f32 %v1510, %v1702
      %1704 = vmatprep.mubr.bf16.mxu0 0
      %1705 = vmatmul.mubr.bf16.gmra.mrb[0].mxu0 %v1289
      %v1706 = vpop.f32.mrb[0].mxu0
      %v1707 = vadd.f32 %v1514, %v1706
      %v1708 = vpop.f32.mrb[0].mxu0
      %v1709 = vadd.f32 %v1516, %v1708
      %v1710 = vpop.f32.mrb[0].mxu0
      %v1711 = vadd.f32 %v1518, %v1710
      %v1712 = vpop.f32.mrb[0].mxu0
      %v1713 = vadd.f32 %v1520, %v1712
      %1714 = vmatprep.mubr.bf16.mxu0 0
      %1715 = vmatmul.mubr.bf16.gmra.mrb[0].mxu0 %v1290
      %v1716 = vpop.f32.mrb[0].mxu0
      %v1717 = vadd.f32 %v1524, %v1716
      %v1718 = vpop.f32.mrb[0].mxu0
      %v1719 = vadd.f32 %v1526, %v1718
      %v1720 = vpop.f32.mrb[0].mxu0
      %v1721 = vadd.f32 %v1528, %v1720
      %v1722 = vpop.f32.mrb[0].mxu0
      %v1723 = vadd.f32 %v1530, %v1722
      %1724 = vmatprep.mubr.bf16.mxu0 0
      %1725 = vmatmul.mubr.bf16.gmra.mrb[0].mxu0 %v1291
      %v1726 = vpop.f32.mrb[0].mxu0
      %v1727 = vadd.f32 %v1534, %v1726
      %v1728 = vpop.f32.mrb[0].mxu0
      %v1729 = vadd.f32 %v1536, %v1728
      %v1730 = vpop.f32.mrb[0].mxu0
      %v1731 = vadd.f32 %v1538, %v1730
      %v1732 = vpop.f32.mrb[0].mxu0
      %v1733 = vadd.f32 %v1540, %v1732
      %1734 = vdwg.mxu0
      %v1735 = vld [vmem:[#allocation2 + $0x9] sm:$0xff]
      %v1736 = vld [vmem:[#allocation2 + $0x11] sm:$0xff]
      %v1737 = vld [vmem:[#allocation2 + $0x19] sm:$0xff]
      %v1738 = vld [vmem:[#allocation2 + $0x21] sm:$0xff]
      %v1739 = vld [vmem:[#allocation2 + $0x29] sm:$0xff]
      %v1740 = vld [vmem:[#allocation2 + $0x31] sm:$0xff]
      %v1741 = vld [vmem:[#allocation2 + $0x39] sm:$0xff]
      %v1742 = vld [vmem:[#allocation2 + $0x41] sm:$0xff]
      %v1743 = vld [vmem:[#allocation2 + $0x49] sm:$0xff]
      %v1744 = vld [vmem:[#allocation2 + $0x51] sm:$0xff]
      %v1745 = vld [vmem:[#allocation2 + $0x59] sm:$0xff]
      %v1746 = vld [vmem:[#allocation2 + $0x61] sm:$0xff]
      %v1747 = vld [vmem:[#allocation2 + $0x69] sm:$0xff]
      %v1748 = vld [vmem:[#allocation2 + $0x71] sm:$0xff]
      %v1749 = vld [vmem:[#allocation2 + $0x79] sm:$0xff]
      %v1750 = vld [vmem:[#allocation2 + $0x81] sm:$0xff]
      %v1751 = vmul.f32 %v1735, %v1236
      %v1752 = vmul.f32 %v1736, %v1237
      %v1753 = vmul.f32 %v1737, %v1238
      %v1754 = vmul.f32 %v1738, %v1239
      %v1755 = vmul.f32 %v1739, %v1240
      %v1756 = vmul.f32 %v1740, %v1241
      %v1757 = vmul.f32 %v1741, %v1242
      %v1758 = vmul.f32 %v1742, %v1243
      %v1759 = vmul.f32 %v1743, %v1244
      %v1760 = vmul.f32 %v1744, %v1245
      %v1761 = vmul.f32 %v1745, %v1246
      %v1762 = vmul.f32 %v1746, %v1247
      %v1763 = vmul.f32 %v1747, %v1248
      %v1764 = vmul.f32 %v1748, %v1249
      %v1765 = vmul.f32 %v1749, %v1250
      %v1766 = vmul.f32 %v1750, %v1251
      %v1767 = vpack.c.bf16 %v1752, %v1751
      %v1768 = vpack.c.bf16 %v1754, %v1753
      %v1769 = vpack.c.bf16 %v1756, %v1755
      %v1770 = vpack.c.bf16 %v1758, %v1757
      %v1771 = vpack.c.bf16 %v1760, %v1759
      %v1772 = vpack.c.bf16 %v1762, %v1761
      %v1773 = vpack.c.bf16 %v1764, %v1763
      %v1774 = vpack.c.bf16 %v1766, %v1765
      %s1775 = scalar_lea.vmem %s8, 256
      %v1776 = vld [vmem:[%s1775] sm:$0xff]
      %v1777 = vld [vmem:[%s1775 + $0x8] sm:$0xff]
      %v1778 = vld [vmem:[%s1775 + $0x10] sm:$0xff]
      %v1779 = vld [vmem:[%s1775 + $0x18] sm:$0xff]
      %v1780 = vld [vmem:[%s1775 + $0x20] sm:$0xff]
      %v1781 = vld [vmem:[%s1775 + $0x28] sm:$0xff]
      %v1782 = vld [vmem:[%s1775 + $0x30] sm:$0xff]
      %v1783 = vld [vmem:[%s1775 + $0x38] sm:$0xff]
      %v1784 = vld [vmem:[%s1775 + $0x40] sm:$0xff]
      %v1785 = vld [vmem:[%s1775 + $0x48] sm:$0xff]
      %v1786 = vld [vmem:[%s1775 + $0x50] sm:$0xff]
      %v1787 = vld [vmem:[%s1775 + $0x58] sm:$0xff]
      %v1788 = vld [vmem:[%s1775 + $0x60] sm:$0xff]
      %v1789 = vld [vmem:[%s1775 + $0x68] sm:$0xff]
      %v1790 = vld [vmem:[%s1775 + $0x70] sm:$0xff]
      %v1791 = vld [vmem:[%s1775 + $0x78] sm:$0xff]
      %v1808 = vunpack.c.l.b16 %v1776
      %v1809 = vunpack.c.h.b16 %v1776
      %v1810 = vunpack.c.l.b16 %v1777
      %v1811 = vunpack.c.h.b16 %v1777
      %v1812 = vunpack.c.l.b16 %v1778
      %v1813 = vunpack.c.h.b16 %v1778
      %v1814 = vunpack.c.l.b16 %v1779
      %v1815 = vunpack.c.h.b16 %v1779
      %v1816 = vunpack.c.l.b16 %v1780
      %v1817 = vunpack.c.h.b16 %v1780
      %v1818 = vunpack.c.l.b16 %v1781
      %v1819 = vunpack.c.h.b16 %v1781
      %v1820 = vunpack.c.l.b16 %v1782
      %v1821 = vunpack.c.h.b16 %v1782
      %v1822 = vunpack.c.l.b16 %v1783
      %v1823 = vunpack.c.h.b16 %v1783
      %v1824 = vunpack.c.l.b16 %v1784
      %v1825 = vunpack.c.h.b16 %v1784
      %v1826 = vunpack.c.l.b16 %v1785
      %v1827 = vunpack.c.h.b16 %v1785
      %v1828 = vunpack.c.l.b16 %v1786
      %v1829 = vunpack.c.h.b16 %v1786
      %v1830 = vunpack.c.l.b16 %v1787
      %v1831 = vunpack.c.h.b16 %v1787
      %v1832 = vunpack.c.l.b16 %v1788
      %v1833 = vunpack.c.h.b16 %v1788
      %v1834 = vunpack.c.l.b16 %v1789
      %v1835 = vunpack.c.h.b16 %v1789
      %v1836 = vunpack.c.l.b16 %v1790
      %v1837 = vunpack.c.h.b16 %v1790
      %v1838 = vunpack.c.l.b16 %v1791
      %v1839 = vunpack.c.h.b16 %v1791
      %v1840 = vpack.c.b16 %v1810, %v1808
      %v1841 = vpack.c.b16 %v1811, %v1809
      %v1842 = vpack.c.b16 %v1814, %v1812
      %v1843 = vpack.c.b16 %v1815, %v1813
      %v1844 = vpack.c.b16 %v1818, %v1816
      %v1845 = vpack.c.b16 %v1819, %v1817
      %v1846 = vpack.c.b16 %v1822, %v1820
      %v1847 = vpack.c.b16 %v1823, %v1821
      %v1848 = vpack.c.b16 %v1826, %v1824
      %v1849 = vpack.c.b16 %v1827, %v1825
      %v1850 = vpack.c.b16 %v1830, %v1828
      %v1851 = vpack.c.b16 %v1831, %v1829
      %v1852 = vpack.c.b16 %v1834, %v1832
      %v1853 = vpack.c.b16 %v1835, %v1833
      %v1854 = vpack.c.b16 %v1838, %v1836
      %v1855 = vpack.c.b16 %v1839, %v1837
      %1872 = vmatprep.subr.bf16.mxu0 %v1841
      %1873 = vmatpush1.bf16.msra.mxu0 %v1840
      %1874 = vmatprep.subr.bf16.mxu0 %v1843
      %1875 = vmatpush1.bf16.msra.mxu0 %v1842
      %1876 = vmatprep.subr.bf16.mxu0 %v1845
      %1877 = vmatpush1.bf16.msra.mxu0 %v1844
      %1878 = vmatprep.subr.bf16.mxu0 %v1847
      %1879 = vmatpush1.bf16.msra.mxu0 %v1846
      %1880 = vmatprep.subr.bf16.mxu0 %v1849
      %1881 = vmatpush1.bf16.msra.mxu0 %v1848
      %1882 = vmatprep.subr.bf16.mxu0 %v1851
      %1883 = vmatpush1.bf16.msra.mxu0 %v1850
      %1884 = vmatprep.subr.bf16.mxu0 %v1853
      %1885 = vmatpush1.bf16.msra.mxu0 %v1852
      %1886 = vmatprep.subr.bf16.mxu0 %v1855
      %1887 = vmatpush1.bf16.msra.mxu0 %v1854
      %1888 = vmatprep.subr.bf16.mxu0 0
      %1889 = vmatpush1.bf16.msra.mxu0 0
      %1890 = vmatprep.subr.bf16.mxu0 0
      %1891 = vmatpush1.bf16.msra.mxu0 0
      %1892 = vmatprep.subr.bf16.mxu0 0
      %1893 = vmatpush1.bf16.msra.mxu0 0
      %1894 = vmatprep.subr.bf16.mxu0 0
      %1895 = vmatpush1.bf16.msra.mxu0 0
      %1896 = vmatprep.subr.bf16.mxu0 0
      %1897 = vmatpush1.bf16.msra.mxu0 0
      %1898 = vmatprep.subr.bf16.mxu0 0
      %1899 = vmatpush1.bf16.msra.mxu0 0
      %1900 = vmatprep.subr.bf16.mxu0 0
      %1901 = vmatpush1.bf16.msra.mxu0 0
      %1902 = vmatprep.subr.bf16.mxu0 0
      %1903 = vmatpush1.bf16.msra.mxu0 0
      %1904 = vmatprep.mubr.bf16.mxu0 0
      %1905 = vmatmul.mubr.bf16.gmra.mrb[0].mxu0 %v1767
      %v1906 = vpop.f32.mrb[0].mxu0
      %v1907 = vadd.f32 0.0, %v1906
      %v1908 = vpop.f32.mrb[0].mxu0
      %v1909 = vadd.f32 0.0, %v1908
      %v1910 = vpop.f32.mrb[0].mxu0
      %v1911 = vadd.f32 0.0, %v1910
      %v1912 = vpop.f32.mrb[0].mxu0
      %v1913 = vadd.f32 0.0, %v1912
      %1914 = vmatprep.mubr.bf16.mxu0 0
      %1915 = vmatmul.mubr.bf16.gmra.mrb[0].mxu0 %v1768
      %v1916 = vpop.f32.mrb[0].mxu0
      %v1917 = vadd.f32 0.0, %v1916
      %v1918 = vpop.f32.mrb[0].mxu0
      %v1919 = vadd.f32 0.0, %v1918
      %v1920 = vpop.f32.mrb[0].mxu0
      %v1921 = vadd.f32 0.0, %v1920
      %v1922 = vpop.f32.mrb[0].mxu0
      %v1923 = vadd.f32 0.0, %v1922
      %1924 = vmatprep.mubr.bf16.mxu0 0
      %1925 = vmatmul.mubr.bf16.gmra.mrb[0].mxu0 %v1769
      %v1926 = vpop.f32.mrb[0].mxu0
      %v1927 = vadd.f32 0.0, %v1926
      %v1928 = vpop.f32.mrb[0].mxu0
      %v1929 = vadd.f32 0.0, %v1928
      %v1930 = vpop.f32.mrb[0].mxu0
      %v1931 = vadd.f32 0.0, %v1930
      %v1932 = vpop.f32.mrb[0].mxu0
      %v1933 = vadd.f32 0.0, %v1932
      %1934 = vmatprep.mubr.bf16.mxu0 0
      %1935 = vmatmul.mubr.bf16.gmra.mrb[0].mxu0 %v1770
      %v1936 = vpop.f32.mrb[0].mxu0
      %v1937 = vadd.f32 0.0, %v1936
      %v1938 = vpop.f32.mrb[0].mxu0
      %v1939 = vadd.f32 0.0, %v1938
      %v1940 = vpop.f32.mrb[0].mxu0
      %v1941 = vadd.f32 0.0, %v1940
      %v1942 = vpop.f32.mrb[0].mxu0
      %v1943 = vadd.f32 0.0, %v1942
      %1944 = vmatprep.mubr.bf16.mxu0 0
      %1945 = vmatmul.mubr.bf16.gmra.mrb[0].mxu0 %v1771
      %v1946 = vpop.f32.mrb[0].mxu0
      %v1947 = vadd.f32 0.0, %v1946
      %v1948 = vpop.f32.mrb[0].mxu0
      %v1949 = vadd.f32 0.0, %v1948
      %v1950 = vpop.f32.mrb[0].mxu0
      %v1951 = vadd.f32 0.0, %v1950
      %v1952 = vpop.f32.mrb[0].mxu0
      %v1953 = vadd.f32 0.0, %v1952
      %1954 = vmatprep.mubr.bf16.mxu0 0
      %1955 = vmatmul.mubr.bf16.gmra.mrb[0].mxu0 %v1772
      %v1956 = vpop.f32.mrb[0].mxu0
      %v1957 = vadd.f32 0.0, %v1956
      %v1958 = vpop.f32.mrb[0].mxu0
      %v1959 = vadd.f32 0.0, %v1958
      %v1960 = vpop.f32.mrb[0].mxu0
      %v1961 = vadd.f32 0.0, %v1960
      %v1962 = vpop.f32.mrb[0].mxu0
      %v1963 = vadd.f32 0.0, %v1962
      %1964 = vmatprep.mubr.bf16.mxu0 0
      %1965 = vmatmul.mubr.bf16.gmra.mrb[0].mxu0 %v1773
      %v1966 = vpop.f32.mrb[0].mxu0
      %v1967 = vadd.f32 0.0, %v1966
      %v1968 = vpop.f32.mrb[0].mxu0
      %v1969 = vadd.f32 0.0, %v1968
      %v1970 = vpop.f32.mrb[0].mxu0
      %v1971 = vadd.f32 0.0, %v1970
      %v1972 = vpop.f32.mrb[0].mxu0
      %v1973 = vadd.f32 0.0, %v1972
      %1974 = vmatprep.mubr.bf16.mxu0 0
      %1975 = vmatmul.mubr.bf16.gmra.mrb[0].mxu0 %v1774
      %v1976 = vpop.f32.mrb[0].mxu0
      %v1977 = vadd.f32 0.0, %v1976
      %v1978 = vpop.f32.mrb[0].mxu0
      %v1979 = vadd.f32 0.0, %v1978
      %v1980 = vpop.f32.mrb[0].mxu0
      %v1981 = vadd.f32 0.0, %v1980
      %v1982 = vpop.f32.mrb[0].mxu0
      %v1983 = vadd.f32 0.0, %v1982
      %1984 = vdwg.mxu0
      %v1985 = vadd.f32 %v1657, %v1907
      %v1986 = vadd.f32 %v1659, %v1909
      %v1987 = vadd.f32 %v1661, %v1911
      %v1988 = vadd.f32 %v1663, %v1913
      %v1989 = vadd.f32 %v1667, %v1917
      %v1990 = vadd.f32 %v1669, %v1919
      %v1991 = vadd.f32 %v1671, %v1921
      %v1992 = vadd.f32 %v1673, %v1923
      %v1993 = vadd.f32 %v1677, %v1927
      %v1994 = vadd.f32 %v1679, %v1929
      %v1995 = vadd.f32 %v1681, %v1931
      %v1996 = vadd.f32 %v1683, %v1933
      %v1997 = vadd.f32 %v1687, %v1937
      %v1998 = vadd.f32 %v1689, %v1939
      %v1999 = vadd.f32 %v1691, %v1941
      %v2000 = vadd.f32 %v1693, %v1943
      %v2001 = vadd.f32 %v1697, %v1947
      %v2002 = vadd.f32 %v1699, %v1949
      %v2003 = vadd.f32 %v1701, %v1951
      %v2004 = vadd.f32 %v1703, %v1953
      %v2005 = vadd.f32 %v1707, %v1957
      %v2006 = vadd.f32 %v1709, %v1959
      %v2007 = vadd.f32 %v1711, %v1961
      %v2008 = vadd.f32 %v1713, %v1963
      %v2009 = vadd.f32 %v1717, %v1967
      %v2010 = vadd.f32 %v1719, %v1969
      %v2011 = vadd.f32 %v1721, %v1971
      %v2012 = vadd.f32 %v1723, %v1973
      %v2013 = vadd.f32 %v1727, %v1977
      %v2014 = vadd.f32 %v1729, %v1979
      %v2015 = vadd.f32 %v1731, %v1981
      %v2016 = vadd.f32 %v1733, %v1983
      %v2017 = vld [vmem:[#allocation2 + $0x17] sm:$0xff]
      %v2018 = vld [vmem:[#allocation2 + $0x1f] sm:$0xff]
      %v2019 = vld [vmem:[#allocation2 + $0x27] sm:$0xff]
      %v2020 = vld [vmem:[#allocation2 + $0x2f] sm:$0xff]
      %v2021 = vld [vmem:[#allocation2 + $0x37] sm:$0xff]
      %v2022 = vld [vmem:[#allocation2 + $0x3f] sm:$0xff]
      %v2023 = vld [vmem:[#allocation2 + $0x47] sm:$0xff]
      %v2024 = vld [vmem:[#allocation2 + $0x4f] sm:$0xff]
      %v2025 = vld [vmem:[#allocation2 + $0x57] sm:$0xff]
      %v2026 = vld [vmem:[#allocation2 + $0x5f] sm:$0xff]
      %v2027 = vld [vmem:[#allocation2 + $0x67] sm:$0xff]
      %v2028 = vld [vmem:[#allocation2 + $0x6f] sm:$0xff]
      %v2029 = vld [vmem:[#allocation2 + $0x77] sm:$0xff]
      %v2030 = vld [vmem:[#allocation2 + $0x7f] sm:$0xff]
      %v2031 = vld [vmem:[#allocation2 + $0x87] sm:$0xff]
      %v2032 = vld [vmem:[#allocation2 + $0x8f] sm:$0xff]
      %v2033 = vmul.f32 %v2017, %v1188
      %v2034 = vmul.f32 %v2018, %v1189
      %v2035 = vmul.f32 %v2019, %v1190
      %v2036 = vmul.f32 %v2020, %v1191
      %v2037 = vmul.f32 %v2021, %v1192
      %v2038 = vmul.f32 %v2022, %v1193
      %v2039 = vmul.f32 %v2023, %v1194
      %v2040 = vmul.f32 %v2024, %v1195
      %v2041 = vmul.f32 %v2025, %v1196
      %v2042 = vmul.f32 %v2026, %v1197
      %v2043 = vmul.f32 %v2027, %v1198
      %v2044 = vmul.f32 %v2028, %v1199
      %v2045 = vmul.f32 %v2029, %v1200
      %v2046 = vmul.f32 %v2030, %v1201
      %v2047 = vmul.f32 %v2031, %v1202
      %v2048 = vmul.f32 %v2032, %v1203
      %v2049 = vpack.c.bf16 %v2034, %v2033
      %v2050 = vpack.c.bf16 %v2036, %v2035
      %v2051 = vpack.c.bf16 %v2038, %v2037
      %v2052 = vpack.c.bf16 %v2040, %v2039
      %v2053 = vpack.c.bf16 %v2042, %v2041
      %v2054 = vpack.c.bf16 %v2044, %v2043
      %v2055 = vpack.c.bf16 %v2046, %v2045
      %v2056 = vpack.c.bf16 %v2048, %v2047
      %s2057 = scalar_lea.vmem %s8, 384
      %v2058 = vld [vmem:[%s2057] sm:$0xff]
      %v2059 = vld [vmem:[%s2057 + $0x8] sm:$0xff]
      %v2060 = vld [vmem:[%s2057 + $0x10] sm:$0xff]
      %v2061 = vld [vmem:[%s2057 + $0x18] sm:$0xff]
      %v2062 = vld [vmem:[%s2057 + $0x20] sm:$0xff]
      %v2063 = vld [vmem:[%s2057 + $0x28] sm:$0xff]
      %v2064 = vld [vmem:[%s2057 + $0x30] sm:$0xff]
      %v2065 = vld [vmem:[%s2057 + $0x38] sm:$0xff]
      %v2066 = vld [vmem:[%s2057 + $0x40] sm:$0xff]
      %v2067 = vld [vmem:[%s2057 + $0x48] sm:$0xff]
      %v2068 = vld [vmem:[%s2057 + $0x50] sm:$0xff]
      %v2069 = vld [vmem:[%s2057 + $0x58] sm:$0xff]
      %v2070 = vld [vmem:[%s2057 + $0x60] sm:$0xff]
      %v2071 = vld [vmem:[%s2057 + $0x68] sm:$0xff]
      %v2072 = vld [vmem:[%s2057 + $0x70] sm:$0xff]
      %v2073 = vld [vmem:[%s2057 + $0x78] sm:$0xff]
      %v2090 = vunpack.c.l.b16 %v2058
      %v2091 = vunpack.c.h.b16 %v2058
      %v2092 = vunpack.c.l.b16 %v2059
      %v2093 = vunpack.c.h.b16 %v2059
      %v2094 = vunpack.c.l.b16 %v2060
      %v2095 = vunpack.c.h.b16 %v2060
      %v2096 = vunpack.c.l.b16 %v2061
      %v2097 = vunpack.c.h.b16 %v2061
      %v2098 = vunpack.c.l.b16 %v2062
      %v2099 = vunpack.c.h.b16 %v2062
      %v2100 = vunpack.c.l.b16 %v2063
      %v2101 = vunpack.c.h.b16 %v2063
      %v2102 = vunpack.c.l.b16 %v2064
      %v2103 = vunpack.c.h.b16 %v2064
      %v2104 = vunpack.c.l.b16 %v2065
      %v2105 = vunpack.c.h.b16 %v2065
      %v2106 = vunpack.c.l.b16 %v2066
      %v2107 = vunpack.c.h.b16 %v2066
      %v2108 = vunpack.c.l.b16 %v2067
      %v2109 = vunpack.c.h.b16 %v2067
      %v2110 = vunpack.c.l.b16 %v2068
      %v2111 = vunpack.c.h.b16 %v2068
      %v2112 = vunpack.c.l.b16 %v2069
      %v2113 = vunpack.c.h.b16 %v2069
      %v2114 = vunpack.c.l.b16 %v2070
      %v2115 = vunpack.c.h.b16 %v2070
      %v2116 = vunpack.c.l.b16 %v2071
      %v2117 = vunpack.c.h.b16 %v2071
      %v2118 = vunpack.c.l.b16 %v2072
      %v2119 = vunpack.c.h.b16 %v2072
      %v2120 = vunpack.c.l.b16 %v2073
      %v2121 = vunpack.c.h.b16 %v2073
      %v2122 = vpack.c.b16 %v2092, %v2090
      %v2123 = vpack.c.b16 %v2093, %v2091
      %v2124 = vpack.c.b16 %v2096, %v2094
      %v2125 = vpack.c.b16 %v2097, %v2095
      %v2126 = vpack.c.b16 %v2100, %v2098
      %v2127 = vpack.c.b16 %v2101, %v2099
      %v2128 = vpack.c.b16 %v2104, %v2102
      %v2129 = vpack.c.b16 %v2105, %v2103
      %v2130 = vpack.c.b16 %v2108, %v2106
      %v2131 = vpack.c.b16 %v2109, %v2107
      %v2132 = vpack.c.b16 %v2112, %v2110
      %v2133 = vpack.c.b16 %v2113, %v2111
      %v2134 = vpack.c.b16 %v2116, %v2114
      %v2135 = vpack.c.b16 %v2117, %v2115
      %v2136 = vpack.c.b16 %v2120, %v2118
      %v2137 = vpack.c.b16 %v2121, %v2119
      %2154 = vmatprep.subr.bf16.mxu0 %v2123
      %2155 = vmatpush1.bf16.msra.mxu0 %v2122
      %2156 = vmatprep.subr.bf16.mxu0 %v2125
      %2157 = vmatpush1.bf16.msra.mxu0 %v2124
      %2158 = vmatprep.subr.bf16.mxu0 %v2127
      %2159 = vmatpush1.bf16.msra.mxu0 %v2126
      %2160 = vmatprep.subr.bf16.mxu0 %v2129
      %2161 = vmatpush1.bf16.msra.mxu0 %v2128
      %2162 = vmatprep.subr.bf16.mxu0 %v2131
      %2163 = vmatpush1.bf16.msra.mxu0 %v2130
      %2164 = vmatprep.subr.bf16.mxu0 %v2133
      %2165 = vmatpush1.bf16.msra.mxu0 %v2132
      %2166 = vmatprep.subr.bf16.mxu0 %v2135
      %2167 = vmatpush1.bf16.msra.mxu0 %v2134
      %2168 = vmatprep.subr.bf16.mxu0 %v2137
      %2169 = vmatpush1.bf16.msra.mxu0 %v2136
      %2170 = vmatprep.subr.bf16.mxu0 0
      %2171 = vmatpush1.bf16.msra.mxu0 0
      %2172 = vmatprep.subr.bf16.mxu0 0
      %2173 = vmatpush1.bf16.msra.mxu0 0
      %2174 = vmatprep.subr.bf16.mxu0 0
      %2175 = vmatpush1.bf16.msra.mxu0 0
      %2176 = vmatprep.subr.bf16.mxu0 0
      %2177 = vmatpush1.bf16.msra.mxu0 0
      %2178 = vmatprep.subr.bf16.mxu0 0
      %2179 = vmatpush1.bf16.msra.mxu0 0
      %2180 = vmatprep.subr.bf16.mxu0 0
      %2181 = vmatpush1.bf16.msra.mxu0 0
      %2182 = vmatprep.subr.bf16.mxu0 0
      %2183 = vmatpush1.bf16.msra.mxu0 0
      %2184 = vmatprep.subr.bf16.mxu0 0
      %2185 = vmatpush1.bf16.msra.mxu0 0
      %2186 = vmatprep.mubr.bf16.mxu0 0
      %2187 = vmatmul.mubr.bf16.gmra.mrb[0].mxu0 %v2049
      %v2188 = vpop.f32.mrb[0].mxu0
      %v2189 = vadd.f32 0.0, %v2188
      %v2190 = vpop.f32.mrb[0].mxu0
      %v2191 = vadd.f32 0.0, %v2190
      %v2192 = vpop.f32.mrb[0].mxu0
      %v2193 = vadd.f32 0.0, %v2192
      %v2194 = vpop.f32.mrb[0].mxu0
      %v2195 = vadd.f32 0.0, %v2194
      %2196 = vmatprep.mubr.bf16.mxu0 0
      %2197 = vmatmul.mubr.bf16.gmra.mrb[0].mxu0 %v2050
      %v2198 = vpop.f32.mrb[0].mxu0
      %v2199 = vadd.f32 0.0, %v2198
      %v2200 = vpop.f32.mrb[0].mxu0
      %v2201 = vadd.f32 0.0, %v2200
      %v2202 = vpop.f32.mrb[0].mxu0
      %v2203 = vadd.f32 0.0, %v2202
      %v2204 = vpop.f32.mrb[0].mxu0
      %v2205 = vadd.f32 0.0, %v2204
      %2206 = vmatprep.mubr.bf16.mxu0 0
      %2207 = vmatmul.mubr.bf16.gmra.mrb[0].mxu0 %v2051
      %v2208 = vpop.f32.mrb[0].mxu0
      %v2209 = vadd.f32 0.0, %v2208
      %v2210 = vpop.f32.mrb[0].mxu0
      %v2211 = vadd.f32 0.0, %v2210
      %v2212 = vpop.f32.mrb[0].mxu0
      %v2213 = vadd.f32 0.0, %v2212
      %v2214 = vpop.f32.mrb[0].mxu0
      %v2215 = vadd.f32 0.0, %v2214
      %2216 = vmatprep.mubr.bf16.mxu0 0
      %2217 = vmatmul.mubr.bf16.gmra.mrb[0].mxu0 %v2052
      %v2218 = vpop.f32.mrb[0].mxu0
      %v2219 = vadd.f32 0.0, %v2218
      %v2220 = vpop.f32.mrb[0].mxu0
      %v2221 = vadd.f32 0.0, %v2220
      %v2222 = vpop.f32.mrb[0].mxu0
      %v2223 = vadd.f32 0.0, %v2222
      %v2224 = vpop.f32.mrb[0].mxu0
      %v2225 = vadd.f32 0.0, %v2224
      %2226 = vmatprep.mubr.bf16.mxu0 0
      %2227 = vmatmul.mubr.bf16.gmra.mrb[0].mxu0 %v2053
      %v2228 = vpop.f32.mrb[0].mxu0
      %v2229 = vadd.f32 0.0, %v2228
      %v2230 = vpop.f32.mrb[0].mxu0
      %v2231 = vadd.f32 0.0, %v2230
      %v2232 = vpop.f32.mrb[0].mxu0
      %v2233 = vadd.f32 0.0, %v2232
      %v2234 = vpop.f32.mrb[0].mxu0
      %v2235 = vadd.f32 0.0, %v2234
      %2236 = vmatprep.mubr.bf16.mxu0 0
      %2237 = vmatmul.mubr.bf16.gmra.mrb[0].mxu0 %v2054
      %v2238 = vpop.f32.mrb[0].mxu0
      %v2239 = vadd.f32 0.0, %v2238
      %v2240 = vpop.f32.mrb[0].mxu0
      %v2241 = vadd.f32 0.0, %v2240
      %v2242 = vpop.f32.mrb[0].mxu0
      %v2243 = vadd.f32 0.0, %v2242
      %v2244 = vpop.f32.mrb[0].mxu0
      %v2245 = vadd.f32 0.0, %v2244
      %2246 = vmatprep.mubr.bf16.mxu0 0
      %2247 = vmatmul.mubr.bf16.gmra.mrb[0].mxu0 %v2055
      %v2248 = vpop.f32.mrb[0].mxu0
      %v2249 = vadd.f32 0.0, %v2248
      %v2250 = vpop.f32.mrb[0].mxu0
      %v2251 = vadd.f32 0.0, %v2250
      %v2252 = vpop.f32.mrb[0].mxu0
      %v2253 = vadd.f32 0.0, %v2252
      %v2254 = vpop.f32.mrb[0].mxu0
      %v2255 = vadd.f32 0.0, %v2254
      %2256 = vmatprep.mubr.bf16.mxu0 0
      %2257 = vmatmul.mubr.bf16.gmra.mrb[0].mxu0 %v2056
      %v2258 = vpop.f32.mrb[0].mxu0
      %v2259 = vadd.f32 0.0, %v2258
      %v2260 = vpop.f32.mrb[0].mxu0
      %v2261 = vadd.f32 0.0, %v2260
      %v2262 = vpop.f32.mrb[0].mxu0
      %v2263 = vadd.f32 0.0, %v2262
      %v2264 = vpop.f32.mrb[0].mxu0
      %v2265 = vadd.f32 0.0, %v2264
      %2266 = vdwg.mxu0
      %v2267 = vadd.f32 %v1985, %v2189
      %v2268 = vadd.f32 %v1986, %v2191
      %v2269 = vadd.f32 %v1987, %v2193
      %v2270 = vadd.f32 %v1988, %v2195
      %v2271 = vadd.f32 %v1989, %v2199
      %v2272 = vadd.f32 %v1990, %v2201
      %v2273 = vadd.f32 %v1991, %v2203
      %v2274 = vadd.f32 %v1992, %v2205
      %v2275 = vadd.f32 %v1993, %v2209
      %v2276 = vadd.f32 %v1994, %v2211
      %v2277 = vadd.f32 %v1995, %v2213
      %v2278 = vadd.f32 %v1996, %v2215
      %v2279 = vadd.f32 %v1997, %v2219
      %v2280 = vadd.f32 %v1998, %v2221
      %v2281 = vadd.f32 %v1999, %v2223
      %v2282 = vadd.f32 %v2000, %v2225
      %v2283 = vadd.f32 %v2001, %v2229
      %v2284 = vadd.f32 %v2002, %v2231
      %v2285 = vadd.f32 %v2003, %v2233
      %v2286 = vadd.f32 %v2004, %v2235
      %v2287 = vadd.f32 %v2005, %v2239
      %v2288 = vadd.f32 %v2006, %v2241
      %v2289 = vadd.f32 %v2007, %v2243
      %v2290 = vadd.f32 %v2008, %v2245
      %v2291 = vadd.f32 %v2009, %v2249
      %v2292 = vadd.f32 %v2010, %v2251
      %v2293 = vadd.f32 %v2011, %v2253
      %v2294 = vadd.f32 %v2012, %v2255
      %v2295 = vadd.f32 %v2013, %v2259
      %v2296 = vadd.f32 %v2014, %v2261
      %v2297 = vadd.f32 %v2015, %v2263
      %v2298 = vadd.f32 %v2016, %v2265
      %v2299 = vld [vmem:[#allocation2 + $0x18] sm:$0xff]
      %v2300 = vld [vmem:[#allocation2 + $0x20] sm:$0xff]
      %v2301 = vld [vmem:[#allocation2 + $0x28] sm:$0xff]
      %v2302 = vld [vmem:[#allocation2 + $0x30] sm:$0xff]
      %v2303 = vld [vmem:[#allocation2 + $0x38] sm:$0xff]
      %v2304 = vld [vmem:[#allocation2 + $0x40] sm:$0xff]
      %v2305 = vld [vmem:[#allocation2 + $0x48] sm:$0xff]
      %v2306 = vld [vmem:[#allocation2 + $0x50] sm:$0xff]
      %v2307 = vld [vmem:[#allocation2 + $0x58] sm:$0xff]
      %v2308 = vld [vmem:[#allocation2 + $0x60] sm:$0xff]
      %v2309 = vld [vmem:[#allocation2 + $0x68] sm:$0xff]
      %v2310 = vld [vmem:[#allocation2 + $0x70] sm:$0xff]
      %v2311 = vld [vmem:[#allocation2 + $0x78] sm:$0xff]
      %v2312 = vld [vmem:[#allocation2 + $0x80] sm:$0xff]
      %v2313 = vld [vmem:[#allocation2 + $0x88] sm:$0xff]
      %v2314 = vld [vmem:[#allocation2 + $0x90] sm:$0xff]
      %v2315 = vpack.c.bf16 %v2300, %v2299
      %v2316 = vpack.c.bf16 %v2302, %v2301
      %v2317 = vpack.c.bf16 %v2304, %v2303
      %v2318 = vpack.c.bf16 %v2306, %v2305
      %v2319 = vpack.c.bf16 %v2308, %v2307
      %v2320 = vpack.c.bf16 %v2310, %v2309
      %v2321 = vpack.c.bf16 %v2312, %v2311
      %v2322 = vpack.c.bf16 %v2314, %v2313
      %s2323 = scalar_lea.vmem %s8, 512
      %v2324 = vld [vmem:[%s2323] sm:$0xff]
      %v2325 = vld [vmem:[%s2323 + $0x8] sm:$0xff]
      %v2326 = vld [vmem:[%s2323 + $0x10] sm:$0xff]
      %v2327 = vld [vmem:[%s2323 + $0x18] sm:$0xff]
      %v2328 = vld [vmem:[%s2323 + $0x20] sm:$0xff]
      %v2329 = vld [vmem:[%s2323 + $0x28] sm:$0xff]
      %v2330 = vld [vmem:[%s2323 + $0x30] sm:$0xff]
      %v2331 = vld [vmem:[%s2323 + $0x38] sm:$0xff]
      %v2332 = vld [vmem:[%s2323 + $0x40] sm:$0xff]
      %v2333 = vld [vmem:[%s2323 + $0x48] sm:$0xff]
      %v2334 = vld [vmem:[%s2323 + $0x50] sm:$0xff]
      %v2335 = vld [vmem:[%s2323 + $0x58] sm:$0xff]
      %v2336 = vld [vmem:[%s2323 + $0x60] sm:$0xff]
      %v2337 = vld [vmem:[%s2323 + $0x68] sm:$0xff]
      %v2338 = vld [vmem:[%s2323 + $0x70] sm:$0xff]
      %v2339 = vld [vmem:[%s2323 + $0x78] sm:$0xff]
      %v2356 = vunpack.c.l.b16 %v2324
      %v2357 = vunpack.c.h.b16 %v2324
      %v2358 = vunpack.c.l.b16 %v2325
      %v2359 = vunpack.c.h.b16 %v2325
      %v2360 = vunpack.c.l.b16 %v2326
      %v2361 = vunpack.c.h.b16 %v2326
      %v2362 = vunpack.c.l.b16 %v2327
      %v2363 = vunpack.c.h.b16 %v2327
      %v2364 = vunpack.c.l.b16 %v2328
      %v2365 = vunpack.c.h.b16 %v2328
      %v2366 = vunpack.c.l.b16 %v2329
      %v2367 = vunpack.c.h.b16 %v2329
      %v2368 = vunpack.c.l.b16 %v2330
      %v2369 = vunpack.c.h.b16 %v2330
      %v2370 = vunpack.c.l.b16 %v2331
      %v2371 = vunpack.c.h.b16 %v2331
      %v2372 = vunpack.c.l.b16 %v2332
      %v2373 = vunpack.c.h.b16 %v2332
      %v2374 = vunpack.c.l.b16 %v2333
      %v2375 = vunpack.c.h.b16 %v2333
      %v2376 = vunpack.c.l.b16 %v2334
      %v2377 = vunpack.c.h.b16 %v2334
      %v2378 = vunpack.c.l.b16 %v2335
      %v2379 = vunpack.c.h.b16 %v2335
      %v2380 = vunpack.c.l.b16 %v2336
      %v2381 = vunpack.c.h.b16 %v2336
      %v2382 = vunpack.c.l.b16 %v2337
      %v2383 = vunpack.c.h.b16 %v2337
      %v2384 = vunpack.c.l.b16 %v2338
      %v2385 = vunpack.c.h.b16 %v2338
      %v2386 = vunpack.c.l.b16 %v2339
      %v2387 = vunpack.c.h.b16 %v2339
      %v2388 = vpack.c.b16 %v2358, %v2356
      %v2389 = vpack.c.b16 %v2359, %v2357
      %v2390 = vpack.c.b16 %v2362, %v2360
      %v2391 = vpack.c.b16 %v2363, %v2361
      %v2392 = vpack.c.b16 %v2366, %v2364
      %v2393 = vpack.c.b16 %v2367, %v2365
      %v2394 = vpack.c.b16 %v2370, %v2368
      %v2395 = vpack.c.b16 %v2371, %v2369
      %v2396 = vpack.c.b16 %v2374, %v2372
      %v2397 = vpack.c.b16 %v2375, %v2373
      %v2398 = vpack.c.b16 %v2378, %v2376
      %v2399 = vpack.c.b16 %v2379, %v2377
      %v2400 = vpack.c.b16 %v2382, %v2380
      %v2401 = vpack.c.b16 %v2383, %v2381
      %v2402 = vpack.c.b16 %v2386, %v2384
      %v2403 = vpack.c.b16 %v2387, %v2385
      %2420 = vmatprep.subr.bf16.mxu0 %v2389
      %2421 = vmatpush1.bf16.msra.mxu0 %v2388
      %2422 = vmatprep.subr.bf16.mxu0 %v2391
      %2423 = vmatpush1.bf16.msra.mxu0 %v2390
      %2424 = vmatprep.subr.bf16.mxu0 %v2393
      %2425 = vmatpush1.bf16.msra.mxu0 %v2392
      %2426 = vmatprep.subr.bf16.mxu0 %v2395
      %2427 = vmatpush1.bf16.msra.mxu0 %v2394
      %2428 = vmatprep.subr.bf16.mxu0 %v2397
      %2429 = vmatpush1.bf16.msra.mxu0 %v2396
      %2430 = vmatprep.subr.bf16.mxu0 %v2399
      %2431 = vmatpush1.bf16.msra.mxu0 %v2398
      %2432 = vmatprep.subr.bf16.mxu0 %v2401
      %2433 = vmatpush1.bf16.msra.mxu0 %v2400
      %2434 = vmatprep.subr.bf16.mxu0 %v2403
      %2435 = vmatpush1.bf16.msra.mxu0 %v2402
      %2436 = vmatprep.subr.bf16.mxu0 0
      %2437 = vmatpush1.bf16.msra.mxu0 0
      %2438 = vmatprep.subr.bf16.mxu0 0
      %2439 = vmatpush1.bf16.msra.mxu0 0
      %2440 = vmatprep.subr.bf16.mxu0 0
      %2441 = vmatpush1.bf16.msra.mxu0 0
      %2442 = vmatprep.subr.bf16.mxu0 0
      %2443 = vmatpush1.bf16.msra.mxu0 0
      %2444 = vmatprep.subr.bf16.mxu0 0
      %2445 = vmatpush1.bf16.msra.mxu0 0
      %2446 = vmatprep.subr.bf16.mxu0 0
      %2447 = vmatpush1.bf16.msra.mxu0 0
      %2448 = vmatprep.subr.bf16.mxu0 0
      %2449 = vmatpush1.bf16.msra.mxu0 0
      %2450 = vmatprep.subr.bf16.mxu0 0
      %2451 = vmatpush1.bf16.msra.mxu0 0
      %2452 = vmatprep.mubr.bf16.mxu0 0
      %2453 = vmatmul.mubr.bf16.gmra.mrb[0].mxu0 %v2315
      %v2454 = vpop.f32.mrb[0].mxu0
      %v2455 = vadd.f32 0.0, %v2454
      %v2456 = vpop.f32.mrb[0].mxu0
      %v2457 = vadd.f32 0.0, %v2456
      %v2458 = vpop.f32.mrb[0].mxu0
      %v2459 = vadd.f32 0.0, %v2458
      %v2460 = vpop.f32.mrb[0].mxu0
      %v2461 = vadd.f32 0.0, %v2460
      %2462 = vmatprep.mubr.bf16.mxu0 0
      %2463 = vmatmul.mubr.bf16.gmra.mrb[0].mxu0 %v2316
      %v2464 = vpop.f32.mrb[0].mxu0
      %v2465 = vadd.f32 0.0, %v2464
      %v2466 = vpop.f32.mrb[0].mxu0
      %v2467 = vadd.f32 0.0, %v2466
      %v2468 = vpop.f32.mrb[0].mxu0
      %v2469 = vadd.f32 0.0, %v2468
      %v2470 = vpop.f32.mrb[0].mxu0
      %v2471 = vadd.f32 0.0, %v2470
      %2472 = vmatprep.mubr.bf16.mxu0 0
      %2473 = vmatmul.mubr.bf16.gmra.mrb[0].mxu0 %v2317
      %v2474 = vpop.f32.mrb[0].mxu0
      %v2475 = vadd.f32 0.0, %v2474
      %v2476 = vpop.f32.mrb[0].mxu0
      %v2477 = vadd.f32 0.0, %v2476
      %v2478 = vpop.f32.mrb[0].mxu0
      %v2479 = vadd.f32 0.0, %v2478
      %v2480 = vpop.f32.mrb[0].mxu0
      %v2481 = vadd.f32 0.0, %v2480
      %2482 = vmatprep.mubr.bf16.mxu0 0
      %2483 = vmatmul.mubr.bf16.gmra.mrb[0].mxu0 %v2318
      %v2484 = vpop.f32.mrb[0].mxu0
      %v2485 = vadd.f32 0.0, %v2484
      %v2486 = vpop.f32.mrb[0].mxu0
      %v2487 = vadd.f32 0.0, %v2486
      %v2488 = vpop.f32.mrb[0].mxu0
      %v2489 = vadd.f32 0.0, %v2488
      %v2490 = vpop.f32.mrb[0].mxu0
      %v2491 = vadd.f32 0.0, %v2490
      %2492 = vmatprep.mubr.bf16.mxu0 0
      %2493 = vmatmul.mubr.bf16.gmra.mrb[0].mxu0 %v2319
      %v2494 = vpop.f32.mrb[0].mxu0
      %v2495 = vadd.f32 0.0, %v2494
      %v2496 = vpop.f32.mrb[0].mxu0
      %v2497 = vadd.f32 0.0, %v2496
      %v2498 = vpop.f32.mrb[0].mxu0
      %v2499 = vadd.f32 0.0, %v2498
      %v2500 = vpop.f32.mrb[0].mxu0
      %v2501 = vadd.f32 0.0, %v2500
      %2502 = vmatprep.mubr.bf16.mxu0 0
      %2503 = vmatmul.mubr.bf16.gmra.mrb[0].mxu0 %v2320
      %v2504 = vpop.f32.mrb[0].mxu0
      %v2505 = vadd.f32 0.0, %v2504
      %v2506 = vpop.f32.mrb[0].mxu0
      %v2507 = vadd.f32 0.0, %v2506
      %v2508 = vpop.f32.mrb[0].mxu0
      %v2509 = vadd.f32 0.0, %v2508
      %v2510 = vpop.f32.mrb[0].mxu0
      %v2511 = vadd.f32 0.0, %v2510
      %2512 = vmatprep.mubr.bf16.mxu0 0
      %2513 = vmatmul.mubr.bf16.gmra.mrb[0].mxu0 %v2321
      %v2514 = vpop.f32.mrb[0].mxu0
      %v2515 = vadd.f32 0.0, %v2514
      %v2516 = vpop.f32.mrb[0].mxu0
      %v2517 = vadd.f32 0.0, %v2516
      %v2518 = vpop.f32.mrb[0].mxu0
      %v2519 = vadd.f32 0.0, %v2518
      %v2520 = vpop.f32.mrb[0].mxu0
      %v2521 = vadd.f32 0.0, %v2520
      %2522 = vmatprep.mubr.bf16.mxu0 0
      %2523 = vmatmul.mubr.bf16.gmra.mrb[0].mxu0 %v2322
      %v2524 = vpop.f32.mrb[0].mxu0
      %v2525 = vadd.f32 0.0, %v2524
      %v2526 = vpop.f32.mrb[0].mxu0
      %v2527 = vadd.f32 0.0, %v2526
      %v2528 = vpop.f32.mrb[0].mxu0
      %v2529 = vadd.f32 0.0, %v2528
      %v2530 = vpop.f32.mrb[0].mxu0
      %v2531 = vadd.f32 0.0, %v2530
      %2532 = vdwg.mxu0
      %v2533 = vadd.f32 %v2267, %v2455
      %v2534 = vadd.f32 %v2268, %v2457
      %v2535 = vadd.f32 %v2269, %v2459
      %v2536 = vadd.f32 %v2270, %v2461
      %v2537 = vadd.f32 %v2271, %v2465
      %v2538 = vadd.f32 %v2272, %v2467
      %v2539 = vadd.f32 %v2273, %v2469
      %v2540 = vadd.f32 %v2274, %v2471
      %v2541 = vadd.f32 %v2275, %v2475
      %v2542 = vadd.f32 %v2276, %v2477
      %v2543 = vadd.f32 %v2277, %v2479
      %v2544 = vadd.f32 %v2278, %v2481
      %v2545 = vadd.f32 %v2279, %v2485
      %v2546 = vadd.f32 %v2280, %v2487
      %v2547 = vadd.f32 %v2281, %v2489
      %v2548 = vadd.f32 %v2282, %v2491
      %v2549 = vadd.f32 %v2283, %v2495
      %v2550 = vadd.f32 %v2284, %v2497
      %v2551 = vadd.f32 %v2285, %v2499
      %v2552 = vadd.f32 %v2286, %v2501
      %v2553 = vadd.f32 %v2287, %v2505
      %v2554 = vadd.f32 %v2288, %v2507
      %v2555 = vadd.f32 %v2289, %v2509
      %v2556 = vadd.f32 %v2290, %v2511
      %v2557 = vadd.f32 %v2291, %v2515
      %v2558 = vadd.f32 %v2292, %v2517
      %v2559 = vadd.f32 %v2293, %v2519
      %v2560 = vadd.f32 %v2294, %v2521
      %v2561 = vadd.f32 %v2295, %v2525
      %v2562 = vadd.f32 %v2296, %v2527
      %v2563 = vadd.f32 %v2297, %v2529
      %v2564 = vadd.f32 %v2298, %v2531
      %v2565 = vld [vmem:[#allocation2 + $0x19] sm:$0xff]
      %v2566 = vld [vmem:[#allocation2 + $0x21] sm:$0xff]
      %v2567 = vld [vmem:[#allocation2 + $0x29] sm:$0xff]
      %v2568 = vld [vmem:[#allocation2 + $0x31] sm:$0xff]
      %v2569 = vld [vmem:[#allocation2 + $0x39] sm:$0xff]
      %v2570 = vld [vmem:[#allocation2 + $0x41] sm:$0xff]
      %v2571 = vld [vmem:[#allocation2 + $0x49] sm:$0xff]
      %v2572 = vld [vmem:[#allocation2 + $0x51] sm:$0xff]
      %v2573 = vld [vmem:[#allocation2 + $0x59] sm:$0xff]
      %v2574 = vld [vmem:[#allocation2 + $0x61] sm:$0xff]
      %v2575 = vld [vmem:[#allocation2 + $0x69] sm:$0xff]
      %v2576 = vld [vmem:[#allocation2 + $0x71] sm:$0xff]
      %v2577 = vld [vmem:[#allocation2 + $0x79] sm:$0xff]
      %v2578 = vld [vmem:[#allocation2 + $0x81] sm:$0xff]
      %v2579 = vld [vmem:[#allocation2 + $0x89] sm:$0xff]
      %v2580 = vld [vmem:[#allocation2 + $0x91] sm:$0xff]
      %v2581 = vmul.f32 %v2565, %v1236
      %v2582 = vmul.f32 %v2566, %v1237
      %v2583 = vmul.f32 %v2567, %v1238
      %v2584 = vmul.f32 %v2568, %v1239
      %v2585 = vmul.f32 %v2569, %v1240
      %v2586 = vmul.f32 %v2570, %v1241
      %v2587 = vmul.f32 %v2571, %v1242
      %v2588 = vmul.f32 %v2572, %v1243
      %v2589 = vmul.f32 %v2573, %v1244
      %v2590 = vmul.f32 %v2574, %v1245
      %v2591 = vmul.f32 %v2575, %v1246
      %v2592 = vmul.f32 %v2576, %v1247
      %v2593 = vmul.f32 %v2577, %v1248
      %v2594 = vmul.f32 %v2578, %v1249
      %v2595 = vmul.f32 %v2579, %v1250
      %v2596 = vmul.f32 %v2580, %v1251
      %v2597 = vpack.c.bf16 %v2582, %v2581
      %v2598 = vpack.c.bf16 %v2584, %v2583
      %v2599 = vpack.c.bf16 %v2586, %v2585
      %v2600 = vpack.c.bf16 %v2588, %v2587
      %v2601 = vpack.c.bf16 %v2590, %v2589
      %v2602 = vpack.c.bf16 %v2592, %v2591
      %v2603 = vpack.c.bf16 %v2594, %v2593
      %v2604 = vpack.c.bf16 %v2596, %v2595
      %s2605 = scalar_lea.vmem %s8, 640
      %v2606 = vld [vmem:[%s2605] sm:$0xff]
      %v2607 = vld [vmem:[%s2605 + $0x8] sm:$0xff]
      %v2608 = vld [vmem:[%s2605 + $0x10] sm:$0xff]
      %v2609 = vld [vmem:[%s2605 + $0x18] sm:$0xff]
      %v2610 = vld [vmem:[%s2605 + $0x20] sm:$0xff]
      %v2611 = vld [vmem:[%s2605 + $0x28] sm:$0xff]
      %v2612 = vld [vmem:[%s2605 + $0x30] sm:$0xff]
      %v2613 = vld [vmem:[%s2605 + $0x38] sm:$0xff]
      %v2614 = vld [vmem:[%s2605 + $0x40] sm:$0xff]
      %v2615 = vld [vmem:[%s2605 + $0x48] sm:$0xff]
      %v2616 = vld [vmem:[%s2605 + $0x50] sm:$0xff]
      %v2617 = vld [vmem:[%s2605 + $0x58] sm:$0xff]
      %v2618 = vld [vmem:[%s2605 + $0x60] sm:$0xff]
      %v2619 = vld [vmem:[%s2605 + $0x68] sm:$0xff]
      %v2620 = vld [vmem:[%s2605 + $0x70] sm:$0xff]
      %v2621 = vld [vmem:[%s2605 + $0x78] sm:$0xff]
      %v2638 = vunpack.c.l.b16 %v2606
      %v2639 = vunpack.c.h.b16 %v2606
      %v2640 = vunpack.c.l.b16 %v2607
      %v2641 = vunpack.c.h.b16 %v2607
      %v2642 = vunpack.c.l.b16 %v2608
      %v2643 = vunpack.c.h.b16 %v2608
      %v2644 = vunpack.c.l.b16 %v2609
      %v2645 = vunpack.c.h.b16 %v2609
      %v2646 = vunpack.c.l.b16 %v2610
      %v2647 = vunpack.c.h.b16 %v2610
      %v2648 = vunpack.c.l.b16 %v2611
      %v2649 = vunpack.c.h.b16 %v2611
      %v2650 = vunpack.c.l.b16 %v2612
      %v2651 = vunpack.c.h.b16 %v2612
      %v2652 = vunpack.c.l.b16 %v2613
      %v2653 = vunpack.c.h.b16 %v2613
      %v2654 = vunpack.c.l.b16 %v2614
      %v2655 = vunpack.c.h.b16 %v2614
      %v2656 = vunpack.c.l.b16 %v2615
      %v2657 = vunpack.c.h.b16 %v2615
      %v2658 = vunpack.c.l.b16 %v2616
      %v2659 = vunpack.c.h.b16 %v2616
      %v2660 = vunpack.c.l.b16 %v2617
      %v2661 = vunpack.c.h.b16 %v2617
      %v2662 = vunpack.c.l.b16 %v2618
      %v2663 = vunpack.c.h.b16 %v2618
      %v2664 = vunpack.c.l.b16 %v2619
      %v2665 = vunpack.c.h.b16 %v2619
      %v2666 = vunpack.c.l.b16 %v2620
      %v2667 = vunpack.c.h.b16 %v2620
      %v2668 = vunpack.c.l.b16 %v2621
      %v2669 = vunpack.c.h.b16 %v2621
      %v2670 = vpack.c.b16 %v2640, %v2638
      %v2671 = vpack.c.b16 %v2641, %v2639
      %v2672 = vpack.c.b16 %v2644, %v2642
      %v2673 = vpack.c.b16 %v2645, %v2643
      %v2674 = vpack.c.b16 %v2648, %v2646
      %v2675 = vpack.c.b16 %v2649, %v2647
      %v2676 = vpack.c.b16 %v2652, %v2650
      %v2677 = vpack.c.b16 %v2653, %v2651
      %v2678 = vpack.c.b16 %v2656, %v2654
      %v2679 = vpack.c.b16 %v2657, %v2655
      %v2680 = vpack.c.b16 %v2660, %v2658
      %v2681 = vpack.c.b16 %v2661, %v2659
      %v2682 = vpack.c.b16 %v2664, %v2662
      %v2683 = vpack.c.b16 %v2665, %v2663
      %v2684 = vpack.c.b16 %v2668, %v2666
      %v2685 = vpack.c.b16 %v2669, %v2667
      %2702 = vmatprep.subr.bf16.mxu0 %v2671
      %2703 = vmatpush1.bf16.msra.mxu0 %v2670
      %2704 = vmatprep.subr.bf16.mxu0 %v2673
      %2705 = vmatpush1.bf16.msra.mxu0 %v2672
      %2706 = vmatprep.subr.bf16.mxu0 %v2675
      %2707 = vmatpush1.bf16.msra.mxu0 %v2674
      %2708 = vmatprep.subr.bf16.mxu0 %v2677
      %2709 = vmatpush1.bf16.msra.mxu0 %v2676
      %2710 = vmatprep.subr.bf16.mxu0 %v2679
      %2711 = vmatpush1.bf16.msra.mxu0 %v2678
      %2712 = vmatprep.subr.bf16.mxu0 %v2681
      %2713 = vmatpush1.bf16.msra.mxu0 %v2680
      %2714 = vmatprep.subr.bf16.mxu0 %v2683
      %2715 = vmatpush1.bf16.msra.mxu0 %v2682
      %2716 = vmatprep.subr.bf16.mxu0 %v2685
      %2717 = vmatpush1.bf16.msra.mxu0 %v2684
      %2718 = vmatprep.subr.bf16.mxu0 0
      %2719 = vmatpush1.bf16.msra.mxu0 0
      %2720 = vmatprep.subr.bf16.mxu0 0
      %2721 = vmatpush1.bf16.msra.mxu0 0
      %2722 = vmatprep.subr.bf16.mxu0 0
      %2723 = vmatpush1.bf16.msra.mxu0 0
      %2724 = vmatprep.subr.bf16.mxu0 0
      %2725 = vmatpush1.bf16.msra.mxu0 0
      %2726 = vmatprep.subr.bf16.mxu0 0
      %2727 = vmatpush1.bf16.msra.mxu0 0
      %2728 = vmatprep.subr.bf16.mxu0 0
      %2729 = vmatpush1.bf16.msra.mxu0 0
      %2730 = vmatprep.subr.bf16.mxu0 0
      %2731 = vmatpush1.bf16.msra.mxu0 0
      %2732 = vmatprep.subr.bf16.mxu0 0
      %2733 = vmatpush1.bf16.msra.mxu0 0
      %2734 = vmatprep.mubr.bf16.mxu0 0
      %2735 = vmatmul.mubr.bf16.gmra.mrb[0].mxu0 %v2597
      %v2736 = vpop.f32.mrb[0].mxu0
      %v2737 = vadd.f32 0.0, %v2736
      %v2738 = vpop.f32.mrb[0].mxu0
      %v2739 = vadd.f32 0.0, %v2738
      %v2740 = vpop.f32.mrb[0].mxu0
      %v2741 = vadd.f32 0.0, %v2740
      %v2742 = vpop.f32.mrb[0].mxu0
      %v2743 = vadd.f32 0.0, %v2742
      %2744 = vmatprep.mubr.bf16.mxu0 0
      %2745 = vmatmul.mubr.bf16.gmra.mrb[0].mxu0 %v2598
      %v2746 = vpop.f32.mrb[0].mxu0
      %v2747 = vadd.f32 0.0, %v2746
      %v2748 = vpop.f32.mrb[0].mxu0
      %v2749 = vadd.f32 0.0, %v2748
      %v2750 = vpop.f32.mrb[0].mxu0
      %v2751 = vadd.f32 0.0, %v2750
      %v2752 = vpop.f32.mrb[0].mxu0
      %v2753 = vadd.f32 0.0, %v2752
      %2754 = vmatprep.mubr.bf16.mxu0 0
      %2755 = vmatmul.mubr.bf16.gmra.mrb[0].mxu0 %v2599
      %v2756 = vpop.f32.mrb[0].mxu0
      %v2757 = vadd.f32 0.0, %v2756
      %v2758 = vpop.f32.mrb[0].mxu0
      %v2759 = vadd.f32 0.0, %v2758
      %v2760 = vpop.f32.mrb[0].mxu0
      %v2761 = vadd.f32 0.0, %v2760
      %v2762 = vpop.f32.mrb[0].mxu0
      %v2763 = vadd.f32 0.0, %v2762
      %2764 = vmatprep.mubr.bf16.mxu0 0
      %2765 = vmatmul.mubr.bf16.gmra.mrb[0].mxu0 %v2600
      %v2766 = vpop.f32.mrb[0].mxu0
      %v2767 = vadd.f32 0.0, %v2766
      %v2768 = vpop.f32.mrb[0].mxu0
      %v2769 = vadd.f32 0.0, %v2768
      %v2770 = vpop.f32.mrb[0].mxu0
      %v2771 = vadd.f32 0.0, %v2770
      %v2772 = vpop.f32.mrb[0].mxu0
      %v2773 = vadd.f32 0.0, %v2772
      %2774 = vmatprep.mubr.bf16.mxu0 0
      %2775 = vmatmul.mubr.bf16.gmra.mrb[0].mxu0 %v2601
      %v2776 = vpop.f32.mrb[0].mxu0
      %v2777 = vadd.f32 0.0, %v2776
      %v2778 = vpop.f32.mrb[0].mxu0
      %v2779 = vadd.f32 0.0, %v2778
      %v2780 = vpop.f32.mrb[0].mxu0
      %v2781 = vadd.f32 0.0, %v2780
      %v2782 = vpop.f32.mrb[0].mxu0
      %v2783 = vadd.f32 0.0, %v2782
      %2784 = vmatprep.mubr.bf16.mxu0 0
      %2785 = vmatmul.mubr.bf16.gmra.mrb[0].mxu0 %v2602
      %v2786 = vpop.f32.mrb[0].mxu0
      %v2787 = vadd.f32 0.0, %v2786
      %v2788 = vpop.f32.mrb[0].mxu0
      %v2789 = vadd.f32 0.0, %v2788
      %v2790 = vpop.f32.mrb[0].mxu0
      %v2791 = vadd.f32 0.0, %v2790
      %v2792 = vpop.f32.mrb[0].mxu0
      %v2793 = vadd.f32 0.0, %v2792
      %2794 = vmatprep.mubr.bf16.mxu0 0
      %2795 = vmatmul.mubr.bf16.gmra.mrb[0].mxu0 %v2603
      %v2796 = vpop.f32.mrb[0].mxu0
      %v2797 = vadd.f32 0.0, %v2796
      %v2798 = vpop.f32.mrb[0].mxu0
      %v2799 = vadd.f32 0.0, %v2798
      %v2800 = vpop.f32.mrb[0].mxu0
      %v2801 = vadd.f32 0.0, %v2800
      %v2802 = vpop.f32.mrb[0].mxu0
      %v2803 = vadd.f32 0.0, %v2802
      %2804 = vmatprep.mubr.bf16.mxu0 0
      %2805 = vmatmul.mubr.bf16.gmra.mrb[0].mxu0 %v2604
      %v2806 = vpop.f32.mrb[0].mxu0
      %v2807 = vadd.f32 0.0, %v2806
      %v2808 = vpop.f32.mrb[0].mxu0
      %v2809 = vadd.f32 0.0, %v2808
      %v2810 = vpop.f32.mrb[0].mxu0
      %v2811 = vadd.f32 0.0, %v2810
      %v2812 = vpop.f32.mrb[0].mxu0
      %v2813 = vadd.f32 0.0, %v2812
      %2814 = vdwg.mxu0
      %v2815 = vadd.f32 %v2533, %v2737
      %v2816 = vadd.f32 %v2534, %v2739
      %v2817 = vadd.f32 %v2535, %v2741
      %v2818 = vadd.f32 %v2536, %v2743
      %v2819 = vadd.f32 %v2537, %v2747
      %v2820 = vadd.f32 %v2538, %v2749
      %v2821 = vadd.f32 %v2539, %v2751
      %v2822 = vadd.f32 %v2540, %v2753
      %v2823 = vadd.f32 %v2541, %v2757
      %v2824 = vadd.f32 %v2542, %v2759
      %v2825 = vadd.f32 %v2543, %v2761
      %v2826 = vadd.f32 %v2544, %v2763
      %v2827 = vadd.f32 %v2545, %v2767
      %v2828 = vadd.f32 %v2546, %v2769
      %v2829 = vadd.f32 %v2547, %v2771
      %v2830 = vadd.f32 %v2548, %v2773
      %v2831 = vadd.f32 %v2549, %v2777
      %v2832 = vadd.f32 %v2550, %v2779
      %v2833 = vadd.f32 %v2551, %v2781
      %v2834 = vadd.f32 %v2552, %v2783
      %v2835 = vadd.f32 %v2553, %v2787
      %v2836 = vadd.f32 %v2554, %v2789
      %v2837 = vadd.f32 %v2555, %v2791
      %v2838 = vadd.f32 %v2556, %v2793
      %v2839 = vadd.f32 %v2557, %v2797
      %v2840 = vadd.f32 %v2558, %v2799
      %v2841 = vadd.f32 %v2559, %v2801
      %v2842 = vadd.f32 %v2560, %v2803
      %v2843 = vadd.f32 %v2561, %v2807
      %v2844 = vadd.f32 %v2562, %v2809
      %v2845 = vadd.f32 %v2563, %v2811
      %v2846 = vadd.f32 %v2564, %v2813
      %v2847 = vld [vmem:[#allocation2 + $0x27] sm:$0xff]
      %v2848 = vld [vmem:[#allocation2 + $0x2f] sm:$0xff]
      %v2849 = vld [vmem:[#allocation2 + $0x37] sm:$0xff]
      %v2850 = vld [vmem:[#allocation2 + $0x3f] sm:$0xff]
      %v2851 = vld [vmem:[#allocation2 + $0x47] sm:$0xff]
      %v2852 = vld [vmem:[#allocation2 + $0x4f] sm:$0xff]
      %v2853 = vld [vmem:[#allocation2 + $0x57] sm:$0xff]
      %v2854 = vld [vmem:[#allocation2 + $0x5f] sm:$0xff]
      %v2855 = vld [vmem:[#allocation2 + $0x67] sm:$0xff]
      %v2856 = vld [vmem:[#allocation2 + $0x6f] sm:$0xff]
      %v2857 = vld [vmem:[#allocation2 + $0x77] sm:$0xff]
      %v2858 = vld [vmem:[#allocation2 + $0x7f] sm:$0xff]
      %v2859 = vld [vmem:[#allocation2 + $0x87] sm:$0xff]
      %v2860 = vld [vmem:[#allocation2 + $0x8f] sm:$0xff]
      %v2861 = vld [vmem:[#allocation2 + $0x97] sm:$0xff]
      %v2862 = vld [vmem:[#allocation2 + $0x9f] sm:$0xff]
      %v2863 = vmul.f32 %v2847, %v1188
      %v2864 = vmul.f32 %v2848, %v1189
      %v2865 = vmul.f32 %v2849, %v1190
      %v2866 = vmul.f32 %v2850, %v1191
      %v2867 = vmul.f32 %v2851, %v1192
      %v2868 = vmul.f32 %v2852, %v1193
      %v2869 = vmul.f32 %v2853, %v1194
      %v2870 = vmul.f32 %v2854, %v1195
      %v2871 = vmul.f32 %v2855, %v1196
      %v2872 = vmul.f32 %v2856, %v1197
      %v2873 = vmul.f32 %v2857, %v1198
      %v2874 = vmul.f32 %v2858, %v1199
      %v2875 = vmul.f32 %v2859, %v1200
      %v2876 = vmul.f32 %v2860, %v1201
      %v2877 = vmul.f32 %v2861, %v1202
      %v2878 = vmul.f32 %v2862, %v1203
      %v2879 = vpack.c.bf16 %v2864, %v2863
      %v2880 = vpack.c.bf16 %v2866, %v2865
      %v2881 = vpack.c.bf16 %v2868, %v2867
      %v2882 = vpack.c.bf16 %v2870, %v2869
      %v2883 = vpack.c.bf16 %v2872, %v2871
      %v2884 = vpack.c.bf16 %v2874, %v2873
      %v2885 = vpack.c.bf16 %v2876, %v2875
      %v2886 = vpack.c.bf16 %v2878, %v2877
      %s2887 = scalar_lea.vmem %s8, 768
      %v2888 = vld [vmem:[%s2887] sm:$0xff]
      %v2889 = vld [vmem:[%s2887 + $0x8] sm:$0xff]
      %v2890 = vld [vmem:[%s2887 + $0x10] sm:$0xff]
      %v2891 = vld [vmem:[%s2887 + $0x18] sm:$0xff]
      %v2892 = vld [vmem:[%s2887 + $0x20] sm:$0xff]
      %v2893 = vld [vmem:[%s2887 + $0x28] sm:$0xff]
      %v2894 = vld [vmem:[%s2887 + $0x30] sm:$0xff]
      %v2895 = vld [vmem:[%s2887 + $0x38] sm:$0xff]
      %v2896 = vld [vmem:[%s2887 + $0x40] sm:$0xff]
      %v2897 = vld [vmem:[%s2887 + $0x48] sm:$0xff]
      %v2898 = vld [vmem:[%s2887 + $0x50] sm:$0xff]
      %v2899 = vld [vmem:[%s2887 + $0x58] sm:$0xff]
      %v2900 = vld [vmem:[%s2887 + $0x60] sm:$0xff]
      %v2901 = vld [vmem:[%s2887 + $0x68] sm:$0xff]
      %v2902 = vld [vmem:[%s2887 + $0x70] sm:$0xff]
      %v2903 = vld [vmem:[%s2887 + $0x78] sm:$0xff]
      %v2920 = vunpack.c.l.b16 %v2888
      %v2921 = vunpack.c.h.b16 %v2888
      %v2922 = vunpack.c.l.b16 %v2889
      %v2923 = vunpack.c.h.b16 %v2889
      %v2924 = vunpack.c.l.b16 %v2890
      %v2925 = vunpack.c.h.b16 %v2890
      %v2926 = vunpack.c.l.b16 %v2891
      %v2927 = vunpack.c.h.b16 %v2891
      %v2928 = vunpack.c.l.b16 %v2892
      %v2929 = vunpack.c.h.b16 %v2892
      %v2930 = vunpack.c.l.b16 %v2893
      %v2931 = vunpack.c.h.b16 %v2893
      %v2932 = vunpack.c.l.b16 %v2894
      %v2933 = vunpack.c.h.b16 %v2894
      %v2934 = vunpack.c.l.b16 %v2895
      %v2935 = vunpack.c.h.b16 %v2895
      %v2936 = vunpack.c.l.b16 %v2896
      %v2937 = vunpack.c.h.b16 %v2896
      %v2938 = vunpack.c.l.b16 %v2897
      %v2939 = vunpack.c.h.b16 %v2897
      %v2940 = vunpack.c.l.b16 %v2898
      %v2941 = vunpack.c.h.b16 %v2898
      %v2942 = vunpack.c.l.b16 %v2899
      %v2943 = vunpack.c.h.b16 %v2899
      %v2944 = vunpack.c.l.b16 %v2900
      %v2945 = vunpack.c.h.b16 %v2900
      %v2946 = vunpack.c.l.b16 %v2901
      %v2947 = vunpack.c.h.b16 %v2901
      %v2948 = vunpack.c.l.b16 %v2902
      %v2949 = vunpack.c.h.b16 %v2902
      %v2950 = vunpack.c.l.b16 %v2903
      %v2951 = vunpack.c.h.b16 %v2903
      %v2952 = vpack.c.b16 %v2922, %v2920
      %v2953 = vpack.c.b16 %v2923, %v2921
      %v2954 = vpack.c.b16 %v2926, %v2924
      %v2955 = vpack.c.b16 %v2927, %v2925
      %v2956 = vpack.c.b16 %v2930, %v2928
      %v2957 = vpack.c.b16 %v2931, %v2929
      %v2958 = vpack.c.b16 %v2934, %v2932
      %v2959 = vpack.c.b16 %v2935, %v2933
      %v2960 = vpack.c.b16 %v2938, %v2936
      %v2961 = vpack.c.b16 %v2939, %v2937
      %v2962 = vpack.c.b16 %v2942, %v2940
      %v2963 = vpack.c.b16 %v2943, %v2941
      %v2964 = vpack.c.b16 %v2946, %v2944
      %v2965 = vpack.c.b16 %v2947, %v2945
      %v2966 = vpack.c.b16 %v2950, %v2948
      %v2967 = vpack.c.b16 %v2951, %v2949
      %2984 = vmatprep.subr.bf16.mxu0 %v2953
      %2985 = vmatpush1.bf16.msra.mxu0 %v2952
      %2986 = vmatprep.subr.bf16.mxu0 %v2955
      %2987 = vmatpush1.bf16.msra.mxu0 %v2954
      %2988 = vmatprep.subr.bf16.mxu0 %v2957
      %2989 = vmatpush1.bf16.msra.mxu0 %v2956
      %2990 = vmatprep.subr.bf16.mxu0 %v2959
      %2991 = vmatpush1.bf16.msra.mxu0 %v2958
      %2992 = vmatprep.subr.bf16.mxu0 %v2961
      %2993 = vmatpush1.bf16.msra.mxu0 %v2960
      %2994 = vmatprep.subr.bf16.mxu0 %v2963
      %2995 = vmatpush1.bf16.msra.mxu0 %v2962
      %2996 = vmatprep.subr.bf16.mxu0 %v2965
      %2997 = vmatpush1.bf16.msra.mxu0 %v2964
      %2998 = vmatprep.subr.bf16.mxu0 %v2967
      %2999 = vmatpush1.bf16.msra.mxu0 %v2966
      %3000 = vmatprep.subr.bf16.mxu0 0
      %3001 = vmatpush1.bf16.msra.mxu0 0
      %3002 = vmatprep.subr.bf16.mxu0 0
      %3003 = vmatpush1.bf16.msra.mxu0 0
      %3004 = vmatprep.subr.bf16.mxu0 0
      %3005 = vmatpush1.bf16.msra.mxu0 0
      %3006 = vmatprep.subr.bf16.mxu0 0
      %3007 = vmatpush1.bf16.msra.mxu0 0
      %3008 = vmatprep.subr.bf16.mxu0 0
      %3009 = vmatpush1.bf16.msra.mxu0 0
      %3010 = vmatprep.subr.bf16.mxu0 0
      %3011 = vmatpush1.bf16.msra.mxu0 0
      %3012 = vmatprep.subr.bf16.mxu0 0
      %3013 = vmatpush1.bf16.msra.mxu0 0
      %3014 = vmatprep.subr.bf16.mxu0 0
      %3015 = vmatpush1.bf16.msra.mxu0 0
      %3016 = vmatprep.mubr.bf16.mxu0 0
      %3017 = vmatmul.mubr.bf16.gmra.mrb[0].mxu0 %v2879
      %v3018 = vpop.f32.mrb[0].mxu0
      %v3019 = vadd.f32 0.0, %v3018
      %v3020 = vpop.f32.mrb[0].mxu0
      %v3021 = vadd.f32 0.0, %v3020
      %v3022 = vpop.f32.mrb[0].mxu0
      %v3023 = vadd.f32 0.0, %v3022
      %v3024 = vpop.f32.mrb[0].mxu0
      %v3025 = vadd.f32 0.0, %v3024
      %3026 = vmatprep.mubr.bf16.mxu0 0
      %3027 = vmatmul.mubr.bf16.gmra.mrb[0].mxu0 %v2880
      %v3028 = vpop.f32.mrb[0].mxu0
      %v3029 = vadd.f32 0.0, %v3028
      %v3030 = vpop.f32.mrb[0].mxu0
      %v3031 = vadd.f32 0.0, %v3030
      %v3032 = vpop.f32.mrb[0].mxu0
      %v3033 = vadd.f32 0.0, %v3032
      %v3034 = vpop.f32.mrb[0].mxu0
      %v3035 = vadd.f32 0.0, %v3034
      %3036 = vmatprep.mubr.bf16.mxu0 0
      %3037 = vmatmul.mubr.bf16.gmra.mrb[0].mxu0 %v2881
      %v3038 = vpop.f32.mrb[0].mxu0
      %v3039 = vadd.f32 0.0, %v3038
      %v3040 = vpop.f32.mrb[0].mxu0
      %v3041 = vadd.f32 0.0, %v3040
      %v3042 = vpop.f32.mrb[0].mxu0
      %v3043 = vadd.f32 0.0, %v3042
      %v3044 = vpop.f32.mrb[0].mxu0
      %v3045 = vadd.f32 0.0, %v3044
      %3046 = vmatprep.mubr.bf16.mxu0 0
      %3047 = vmatmul.mubr.bf16.gmra.mrb[0].mxu0 %v2882
      %v3048 = vpop.f32.mrb[0].mxu0
      %v3049 = vadd.f32 0.0, %v3048
      %v3050 = vpop.f32.mrb[0].mxu0
      %v3051 = vadd.f32 0.0, %v3050
      %v3052 = vpop.f32.mrb[0].mxu0
      %v3053 = vadd.f32 0.0, %v3052
      %v3054 = vpop.f32.mrb[0].mxu0
      %v3055 = vadd.f32 0.0, %v3054
      %3056 = vmatprep.mubr.bf16.mxu0 0
      %3057 = vmatmul.mubr.bf16.gmra.mrb[0].mxu0 %v2883
      %v3058 = vpop.f32.mrb[0].mxu0
      %v3059 = vadd.f32 0.0, %v3058
      %v3060 = vpop.f32.mrb[0].mxu0
      %v3061 = vadd.f32 0.0, %v3060
      %v3062 = vpop.f32.mrb[0].mxu0
      %v3063 = vadd.f32 0.0, %v3062
      %v3064 = vpop.f32.mrb[0].mxu0
      %v3065 = vadd.f32 0.0, %v3064
      %3066 = vmatprep.mubr.bf16.mxu0 0
      %3067 = vmatmul.mubr.bf16.gmra.mrb[0].mxu0 %v2884
      %v3068 = vpop.f32.mrb[0].mxu0
      %v3069 = vadd.f32 0.0, %v3068
      %v3070 = vpop.f32.mrb[0].mxu0
      %v3071 = vadd.f32 0.0, %v3070
      %v3072 = vpop.f32.mrb[0].mxu0
      %v3073 = vadd.f32 0.0, %v3072
      %v3074 = vpop.f32.mrb[0].mxu0
      %v3075 = vadd.f32 0.0, %v3074
      %3076 = vmatprep.mubr.bf16.mxu0 0
      %3077 = vmatmul.mubr.bf16.gmra.mrb[0].mxu0 %v2885
      %v3078 = vpop.f32.mrb[0].mxu0
      %v3079 = vadd.f32 0.0, %v3078
      %v3080 = vpop.f32.mrb[0].mxu0
      %v3081 = vadd.f32 0.0, %v3080
      %v3082 = vpop.f32.mrb[0].mxu0
      %v3083 = vadd.f32 0.0, %v3082
      %v3084 = vpop.f32.mrb[0].mxu0
      %v3085 = vadd.f32 0.0, %v3084
      %3086 = vmatprep.mubr.bf16.mxu0 0
      %3087 = vmatmul.mubr.bf16.gmra.mrb[0].mxu0 %v2886
      %v3088 = vpop.f32.mrb[0].mxu0
      %v3089 = vadd.f32 0.0, %v3088
      %v3090 = vpop.f32.mrb[0].mxu0
      %v3091 = vadd.f32 0.0, %v3090
      %v3092 = vpop.f32.mrb[0].mxu0
      %v3093 = vadd.f32 0.0, %v3092
      %v3094 = vpop.f32.mrb[0].mxu0
      %v3095 = vadd.f32 0.0, %v3094
      %3096 = vdwg.mxu0
      %v3097 = vadd.f32 %v2815, %v3019
      %v3098 = vadd.f32 %v2816, %v3021
      %v3099 = vadd.f32 %v2817, %v3023
      %v3100 = vadd.f32 %v2818, %v3025
      %v3101 = vadd.f32 %v2819, %v3029
      %v3102 = vadd.f32 %v2820, %v3031
      %v3103 = vadd.f32 %v2821, %v3033
      %v3104 = vadd.f32 %v2822, %v3035
      %v3105 = vadd.f32 %v2823, %v3039
      %v3106 = vadd.f32 %v2824, %v3041
      %v3107 = vadd.f32 %v2825, %v3043
      %v3108 = vadd.f32 %v2826, %v3045
      %v3109 = vadd.f32 %v2827, %v3049
      %v3110 = vadd.f32 %v2828, %v3051
      %v3111 = vadd.f32 %v2829, %v3053
      %v3112 = vadd.f32 %v2830, %v3055
      %v3113 = vadd.f32 %v2831, %v3059
      %v3114 = vadd.f32 %v2832, %v3061
      %v3115 = vadd.f32 %v2833, %v3063
      %v3116 = vadd.f32 %v2834, %v3065
      %v3117 = vadd.f32 %v2835, %v3069
      %v3118 = vadd.f32 %v2836, %v3071
      %v3119 = vadd.f32 %v2837, %v3073
      %v3120 = vadd.f32 %v2838, %v3075
      %v3121 = vadd.f32 %v2839, %v3079
      %v3122 = vadd.f32 %v2840, %v3081
      %v3123 = vadd.f32 %v2841, %v3083
      %v3124 = vadd.f32 %v2842, %v3085
      %v3125 = vadd.f32 %v2843, %v3089
      %v3126 = vadd.f32 %v2844, %v3091
      %v3127 = vadd.f32 %v2845, %v3093
      %v3128 = vadd.f32 %v2846, %v3095
      %v3129 = vld [vmem:[#allocation2 + $0x28] sm:$0xff]
      %v3130 = vld [vmem:[#allocation2 + $0x30] sm:$0xff]
      %v3131 = vld [vmem:[#allocation2 + $0x38] sm:$0xff]
      %v3132 = vld [vmem:[#allocation2 + $0x40] sm:$0xff]
      %v3133 = vld [vmem:[#allocation2 + $0x48] sm:$0xff]
      %v3134 = vld [vmem:[#allocation2 + $0x50] sm:$0xff]
      %v3135 = vld [vmem:[#allocation2 + $0x58] sm:$0xff]
      %v3136 = vld [vmem:[#allocation2 + $0x60] sm:$0xff]
      %v3137 = vld [vmem:[#allocation2 + $0x68] sm:$0xff]
      %v3138 = vld [vmem:[#allocation2 + $0x70] sm:$0xff]
      %v3139 = vld [vmem:[#allocation2 + $0x78] sm:$0xff]
      %v3140 = vld [vmem:[#allocation2 + $0x80] sm:$0xff]
      %v3141 = vld [vmem:[#allocation2 + $0x88] sm:$0xff]
      %v3142 = vld [vmem:[#allocation2 + $0x90] sm:$0xff]
      %v3143 = vld [vmem:[#allocation2 + $0x98] sm:$0xff]
      %v3144 = vld [vmem:[#allocation2 + $0xa0] sm:$0xff]
      %v3145 = vpack.c.bf16 %v3130, %v3129
      %v3146 = vpack.c.bf16 %v3132, %v3131
      %v3147 = vpack.c.bf16 %v3134, %v3133
      %v3148 = vpack.c.bf16 %v3136, %v3135
      %v3149 = vpack.c.bf16 %v3138, %v3137
      %v3150 = vpack.c.bf16 %v3140, %v3139
      %v3151 = vpack.c.bf16 %v3142, %v3141
      %v3152 = vpack.c.bf16 %v3144, %v3143
      %s3153 = scalar_lea.vmem %s8, 896
      %v3154 = vld [vmem:[%s3153] sm:$0xff]
      %v3155 = vld [vmem:[%s3153 + $0x8] sm:$0xff]
      %v3156 = vld [vmem:[%s3153 + $0x10] sm:$0xff]
      %v3157 = vld [vmem:[%s3153 + $0x18] sm:$0xff]
      %v3158 = vld [vmem:[%s3153 + $0x20] sm:$0xff]
      %v3159 = vld [vmem:[%s3153 + $0x28] sm:$0xff]
      %v3160 = vld [vmem:[%s3153 + $0x30] sm:$0xff]
      %v3161 = vld [vmem:[%s3153 + $0x38] sm:$0xff]
      %v3162 = vld [vmem:[%s3153 + $0x40] sm:$0xff]
      %v3163 = vld [vmem:[%s3153 + $0x48] sm:$0xff]
      %v3164 = vld [vmem:[%s3153 + $0x50] sm:$0xff]
      %v3165 = vld [vmem:[%s3153 + $0x58] sm:$0xff]
      %v3166 = vld [vmem:[%s3153 + $0x60] sm:$0xff]
      %v3167 = vld [vmem:[%s3153 + $0x68] sm:$0xff]
      %v3168 = vld [vmem:[%s3153 + $0x70] sm:$0xff]
      %v3169 = vld [vmem:[%s3153 + $0x78] sm:$0xff]
      %v3186 = vunpack.c.l.b16 %v3154
      %v3187 = vunpack.c.h.b16 %v3154
      %v3188 = vunpack.c.l.b16 %v3155
      %v3189 = vunpack.c.h.b16 %v3155
      %v3190 = vunpack.c.l.b16 %v3156
      %v3191 = vunpack.c.h.b16 %v3156
      %v3192 = vunpack.c.l.b16 %v3157
      %v3193 = vunpack.c.h.b16 %v3157
      %v3194 = vunpack.c.l.b16 %v3158
      %v3195 = vunpack.c.h.b16 %v3158
      %v3196 = vunpack.c.l.b16 %v3159
      %v3197 = vunpack.c.h.b16 %v3159
      %v3198 = vunpack.c.l.b16 %v3160
      %v3199 = vunpack.c.h.b16 %v3160
      %v3200 = vunpack.c.l.b16 %v3161
      %v3201 = vunpack.c.h.b16 %v3161
      %v3202 = vunpack.c.l.b16 %v3162
      %v3203 = vunpack.c.h.b16 %v3162
      %v3204 = vunpack.c.l.b16 %v3163
      %v3205 = vunpack.c.h.b16 %v3163
      %v3206 = vunpack.c.l.b16 %v3164
      %v3207 = vunpack.c.h.b16 %v3164
      %v3208 = vunpack.c.l.b16 %v3165
      %v3209 = vunpack.c.h.b16 %v3165
      %v3210 = vunpack.c.l.b16 %v3166
      %v3211 = vunpack.c.h.b16 %v3166
      %v3212 = vunpack.c.l.b16 %v3167
      %v3213 = vunpack.c.h.b16 %v3167
      %v3214 = vunpack.c.l.b16 %v3168
      %v3215 = vunpack.c.h.b16 %v3168
      %v3216 = vunpack.c.l.b16 %v3169
      %v3217 = vunpack.c.h.b16 %v3169
      %v3218 = vpack.c.b16 %v3188, %v3186
      %v3219 = vpack.c.b16 %v3189, %v3187
      %v3220 = vpack.c.b16 %v3192, %v3190
      %v3221 = vpack.c.b16 %v3193, %v3191
      %v3222 = vpack.c.b16 %v3196, %v3194
      %v3223 = vpack.c.b16 %v3197, %v3195
      %v3224 = vpack.c.b16 %v3200, %v3198
      %v3225 = vpack.c.b16 %v3201, %v3199
      %v3226 = vpack.c.b16 %v3204, %v3202
      %v3227 = vpack.c.b16 %v3205, %v3203
      %v3228 = vpack.c.b16 %v3208, %v3206
      %v3229 = vpack.c.b16 %v3209, %v3207
      %v3230 = vpack.c.b16 %v3212, %v3210
      %v3231 = vpack.c.b16 %v3213, %v3211
      %v3232 = vpack.c.b16 %v3216, %v3214
      %v3233 = vpack.c.b16 %v3217, %v3215
      %3250 = vmatprep.subr.bf16.mxu0 %v3219
      %3251 = vmatpush1.bf16.msra.mxu0 %v3218
      %3252 = vmatprep.subr.bf16.mxu0 %v3221
      %3253 = vmatpush1.bf16.msra.mxu0 %v3220
      %3254 = vmatprep.subr.bf16.mxu0 %v3223
      %3255 = vmatpush1.bf16.msra.mxu0 %v3222
      %3256 = vmatprep.subr.bf16.mxu0 %v3225
      %3257 = vmatpush1.bf16.msra.mxu0 %v3224
      %3258 = vmatprep.subr.bf16.mxu0 %v3227
      %3259 = vmatpush1.bf16.msra.mxu0 %v3226
      %3260 = vmatprep.subr.bf16.mxu0 %v3229
      %3261 = vmatpush1.bf16.msra.mxu0 %v3228
      %3262 = vmatprep.subr.bf16.mxu0 %v3231
      %3263 = vmatpush1.bf16.msra.mxu0 %v3230
      %3264 = vmatprep.subr.bf16.mxu0 %v3233
      %3265 = vmatpush1.bf16.msra.mxu0 %v3232
      %3266 = vmatprep.subr.bf16.mxu0 0
      %3267 = vmatpush1.bf16.msra.mxu0 0
      %3268 = vmatprep.subr.bf16.mxu0 0
      %3269 = vmatpush1.bf16.msra.mxu0 0
      %3270 = vmatprep.subr.bf16.mxu0 0
      %3271 = vmatpush1.bf16.msra.mxu0 0
      %3272 = vmatprep.subr.bf16.mxu0 0
      %3273 = vmatpush1.bf16.msra.mxu0 0
      %3274 = vmatprep.subr.bf16.mxu0 0
      %3275 = vmatpush1.bf16.msra.mxu0 0
      %3276 = vmatprep.subr.bf16.mxu0 0
      %3277 = vmatpush1.bf16.msra.mxu0 0
      %3278 = vmatprep.subr.bf16.mxu0 0
      %3279 = vmatpush1.bf16.msra.mxu0 0
      %3280 = vmatprep.subr.bf16.mxu0 0
      %3281 = vmatpush1.bf16.msra.mxu0 0
      %3282 = vmatprep.mubr.bf16.mxu0 0
      %3283 = vmatmul.mubr.bf16.gmra.mrb[0].mxu0 %v3145
      %v3284 = vpop.f32.mrb[0].mxu0
      %v3285 = vadd.f32 0.0, %v3284
      %v3286 = vpop.f32.mrb[0].mxu0
      %v3287 = vadd.f32 0.0, %v3286
      %v3288 = vpop.f32.mrb[0].mxu0
      %v3289 = vadd.f32 0.0, %v3288
      %v3290 = vpop.f32.mrb[0].mxu0
      %v3291 = vadd.f32 0.0, %v3290
      %3292 = vmatprep.mubr.bf16.mxu0 0
      %3293 = vmatmul.mubr.bf16.gmra.mrb[0].mxu0 %v3146
      %v3294 = vpop.f32.mrb[0].mxu0
      %v3295 = vadd.f32 0.0, %v3294
      %v3296 = vpop.f32.mrb[0].mxu0
      %v3297 = vadd.f32 0.0, %v3296
      %v3298 = vpop.f32.mrb[0].mxu0
      %v3299 = vadd.f32 0.0, %v3298
      %v3300 = vpop.f32.mrb[0].mxu0
      %v3301 = vadd.f32 0.0, %v3300
      %3302 = vmatprep.mubr.bf16.mxu0 0
      %3303 = vmatmul.mubr.bf16.gmra.mrb[0].mxu0 %v3147
      %v3304 = vpop.f32.mrb[0].mxu0
      %v3305 = vadd.f32 0.0, %v3304
      %v3306 = vpop.f32.mrb[0].mxu0
      %v3307 = vadd.f32 0.0, %v3306
      %v3308 = vpop.f32.mrb[0].mxu0
      %v3309 = vadd.f32 0.0, %v3308
      %v3310 = vpop.f32.mrb[0].mxu0
      %v3311 = vadd.f32 0.0, %v3310
      %3312 = vmatprep.mubr.bf16.mxu0 0
      %3313 = vmatmul.mubr.bf16.gmra.mrb[0].mxu0 %v3148
      %v3314 = vpop.f32.mrb[0].mxu0
      %v3315 = vadd.f32 0.0, %v3314
      %v3316 = vpop.f32.mrb[0].mxu0
      %v3317 = vadd.f32 0.0, %v3316
      %v3318 = vpop.f32.mrb[0].mxu0
      %v3319 = vadd.f32 0.0, %v3318
      %v3320 = vpop.f32.mrb[0].mxu0
      %v3321 = vadd.f32 0.0, %v3320
      %3322 = vmatprep.mubr.bf16.mxu0 0
      %3323 = vmatmul.mubr.bf16.gmra.mrb[0].mxu0 %v3149
      %v3324 = vpop.f32.mrb[0].mxu0
      %v3325 = vadd.f32 0.0, %v3324
      %v3326 = vpop.f32.mrb[0].mxu0
      %v3327 = vadd.f32 0.0, %v3326
      %v3328 = vpop.f32.mrb[0].mxu0
      %v3329 = vadd.f32 0.0, %v3328
      %v3330 = vpop.f32.mrb[0].mxu0
      %v3331 = vadd.f32 0.0, %v3330
      %3332 = vmatprep.mubr.bf16.mxu0 0
      %3333 = vmatmul.mubr.bf16.gmra.mrb[0].mxu0 %v3150
      %v3334 = vpop.f32.mrb[0].mxu0
      %v3335 = vadd.f32 0.0, %v3334
      %v3336 = vpop.f32.mrb[0].mxu0
      %v3337 = vadd.f32 0.0, %v3336
      %v3338 = vpop.f32.mrb[0].mxu0
      %v3339 = vadd.f32 0.0, %v3338
      %v3340 = vpop.f32.mrb[0].mxu0
      %v3341 = vadd.f32 0.0, %v3340
      %3342 = vmatprep.mubr.bf16.mxu0 0
      %3343 = vmatmul.mubr.bf16.gmra.mrb[0].mxu0 %v3151
      %v3344 = vpop.f32.mrb[0].mxu0
      %v3345 = vadd.f32 0.0, %v3344
      %v3346 = vpop.f32.mrb[0].mxu0
      %v3347 = vadd.f32 0.0, %v3346
      %v3348 = vpop.f32.mrb[0].mxu0
      %v3349 = vadd.f32 0.0, %v3348
      %v3350 = vpop.f32.mrb[0].mxu0
      %v3351 = vadd.f32 0.0, %v3350
      %3352 = vmatprep.mubr.bf16.mxu0 0
      %3353 = vmatmul.mubr.bf16.gmra.mrb[0].mxu0 %v3152
      %v3354 = vpop.f32.mrb[0].mxu0
      %v3355 = vadd.f32 0.0, %v3354
      %v3356 = vpop.f32.mrb[0].mxu0
      %v3357 = vadd.f32 0.0, %v3356
      %v3358 = vpop.f32.mrb[0].mxu0
      %v3359 = vadd.f32 0.0, %v3358
      %v3360 = vpop.f32.mrb[0].mxu0
      %v3361 = vadd.f32 0.0, %v3360
      %3362 = vdwg.mxu0
      %v3363 = vadd.f32 %v3097, %v3285
      %v3364 = vadd.f32 %v3098, %v3287
      %v3365 = vadd.f32 %v3099, %v3289
      %v3366 = vadd.f32 %v3100, %v3291
      %v3367 = vadd.f32 %v3101, %v3295
      %v3368 = vadd.f32 %v3102, %v3297
      %v3369 = vadd.f32 %v3103, %v3299
      %v3370 = vadd.f32 %v3104, %v3301
      %v3371 = vadd.f32 %v3105, %v3305
      %v3372 = vadd.f32 %v3106, %v3307
      %v3373 = vadd.f32 %v3107, %v3309
      %v3374 = vadd.f32 %v3108, %v3311
      %v3375 = vadd.f32 %v3109, %v3315
      %v3376 = vadd.f32 %v3110, %v3317
      %v3377 = vadd.f32 %v3111, %v3319
      %v3378 = vadd.f32 %v3112, %v3321
      %v3379 = vadd.f32 %v3113, %v3325
      %v3380 = vadd.f32 %v3114, %v3327
      %v3381 = vadd.f32 %v3115, %v3329
      %v3382 = vadd.f32 %v3116, %v3331
      %v3383 = vadd.f32 %v3117, %v3335
      %v3384 = vadd.f32 %v3118, %v3337
      %v3385 = vadd.f32 %v3119, %v3339
      %v3386 = vadd.f32 %v3120, %v3341
      %v3387 = vadd.f32 %v3121, %v3345
      %v3388 = vadd.f32 %v3122, %v3347
      %v3389 = vadd.f32 %v3123, %v3349
      %v3390 = vadd.f32 %v3124, %v3351
      %v3391 = vadd.f32 %v3125, %v3355
      %v3392 = vadd.f32 %v3126, %v3357
      %v3393 = vadd.f32 %v3127, %v3359
      %v3394 = vadd.f32 %v3128, %v3361
      %v3395 = vld [vmem:[#allocation2 + $0x29] sm:$0xff]
      %v3396 = vld [vmem:[#allocation2 + $0x31] sm:$0xff]
      %v3397 = vld [vmem:[#allocation2 + $0x39] sm:$0xff]
      %v3398 = vld [vmem:[#allocation2 + $0x41] sm:$0xff]
      %v3399 = vld [vmem:[#allocation2 + $0x49] sm:$0xff]
      %v3400 = vld [vmem:[#allocation2 + $0x51] sm:$0xff]
      %v3401 = vld [vmem:[#allocation2 + $0x59] sm:$0xff]
      %v3402 = vld [vmem:[#allocation2 + $0x61] sm:$0xff]
      %v3403 = vld [vmem:[#allocation2 + $0x69] sm:$0xff]
      %v3404 = vld [vmem:[#allocation2 + $0x71] sm:$0xff]
      %v3405 = vld [vmem:[#allocation2 + $0x79] sm:$0xff]
      %v3406 = vld [vmem:[#allocation2 + $0x81] sm:$0xff]
      %v3407 = vld [vmem:[#allocation2 + $0x89] sm:$0xff]
      %v3408 = vld [vmem:[#allocation2 + $0x91] sm:$0xff]
      %v3409 = vld [vmem:[#allocation2 + $0x99] sm:$0xff]
      %v3410 = vld [vmem:[#allocation2 + $0xa1] sm:$0xff]
      %v3411 = vmul.f32 %v3395, %v1236
      %v3412 = vmul.f32 %v3396, %v1237
      %v3413 = vmul.f32 %v3397, %v1238
      %v3414 = vmul.f32 %v3398, %v1239
      %v3415 = vmul.f32 %v3399, %v1240
      %v3416 = vmul.f32 %v3400, %v1241
      %v3417 = vmul.f32 %v3401, %v1242
      %v3418 = vmul.f32 %v3402, %v1243
      %v3419 = vmul.f32 %v3403, %v1244
      %v3420 = vmul.f32 %v3404, %v1245
      %v3421 = vmul.f32 %v3405, %v1246
      %v3422 = vmul.f32 %v3406, %v1247
      %v3423 = vmul.f32 %v3407, %v1248
      %v3424 = vmul.f32 %v3408, %v1249
      %v3425 = vmul.f32 %v3409, %v1250
      %v3426 = vmul.f32 %v3410, %v1251
      %v3427 = vpack.c.bf16 %v3412, %v3411
      %v3428 = vpack.c.bf16 %v3414, %v3413
      %v3429 = vpack.c.bf16 %v3416, %v3415
      %v3430 = vpack.c.bf16 %v3418, %v3417
      %v3431 = vpack.c.bf16 %v3420, %v3419
      %v3432 = vpack.c.bf16 %v3422, %v3421
      %v3433 = vpack.c.bf16 %v3424, %v3423
      %v3434 = vpack.c.bf16 %v3426, %v3425
      %s3435 = scalar_lea.vmem %s8, 1024
      %v3436 = vld [vmem:[%s3435] sm:$0xff]
      %v3437 = vld [vmem:[%s3435 + $0x8] sm:$0xff]
      %v3438 = vld [vmem:[%s3435 + $0x10] sm:$0xff]
      %v3439 = vld [vmem:[%s3435 + $0x18] sm:$0xff]
      %v3440 = vld [vmem:[%s3435 + $0x20] sm:$0xff]
      %v3441 = vld [vmem:[%s3435 + $0x28] sm:$0xff]
      %v3442 = vld [vmem:[%s3435 + $0x30] sm:$0xff]
      %v3443 = vld [vmem:[%s3435 + $0x38] sm:$0xff]
      %v3444 = vld [vmem:[%s3435 + $0x40] sm:$0xff]
      %v3445 = vld [vmem:[%s3435 + $0x48] sm:$0xff]
      %v3446 = vld [vmem:[%s3435 + $0x50] sm:$0xff]
      %v3447 = vld [vmem:[%s3435 + $0x58] sm:$0xff]
      %v3448 = vld [vmem:[%s3435 + $0x60] sm:$0xff]
      %v3449 = vld [vmem:[%s3435 + $0x68] sm:$0xff]
      %v3450 = vld [vmem:[%s3435 + $0x70] sm:$0xff]
      %v3451 = vld [vmem:[%s3435 + $0x78] sm:$0xff]
      %v3468 = vunpack.c.l.b16 %v3436
      %v3469 = vunpack.c.h.b16 %v3436
      %v3470 = vunpack.c.l.b16 %v3437
      %v3471 = vunpack.c.h.b16 %v3437
      %v3472 = vunpack.c.l.b16 %v3438
      %v3473 = vunpack.c.h.b16 %v3438
      %v3474 = vunpack.c.l.b16 %v3439
      %v3475 = vunpack.c.h.b16 %v3439
      %v3476 = vunpack.c.l.b16 %v3440
      %v3477 = vunpack.c.h.b16 %v3440
      %v3478 = vunpack.c.l.b16 %v3441
      %v3479 = vunpack.c.h.b16 %v3441
      %v3480 = vunpack.c.l.b16 %v3442
      %v3481 = vunpack.c.h.b16 %v3442
      %v3482 = vunpack.c.l.b16 %v3443
      %v3483 = vunpack.c.h.b16 %v3443
      %v3484 = vunpack.c.l.b16 %v3444
      %v3485 = vunpack.c.h.b16 %v3444
      %v3486 = vunpack.c.l.b16 %v3445
      %v3487 = vunpack.c.h.b16 %v3445
      %v3488 = vunpack.c.l.b16 %v3446
      %v3489 = vunpack.c.h.b16 %v3446
      %v3490 = vunpack.c.l.b16 %v3447
      %v3491 = vunpack.c.h.b16 %v3447
      %v3492 = vunpack.c.l.b16 %v3448
      %v3493 = vunpack.c.h.b16 %v3448
      %v3494 = vunpack.c.l.b16 %v3449
      %v3495 = vunpack.c.h.b16 %v3449
      %v3496 = vunpack.c.l.b16 %v3450
      %v3497 = vunpack.c.h.b16 %v3450
      %v3498 = vunpack.c.l.b16 %v3451
      %v3499 = vunpack.c.h.b16 %v3451
      %v3500 = vpack.c.b16 %v3470, %v3468
      %v3501 = vpack.c.b16 %v3471, %v3469
      %v3502 = vpack.c.b16 %v3474, %v3472
      %v3503 = vpack.c.b16 %v3475, %v3473
      %v3504 = vpack.c.b16 %v3478, %v3476
      %v3505 = vpack.c.b16 %v3479, %v3477
      %v3506 = vpack.c.b16 %v3482, %v3480
      %v3507 = vpack.c.b16 %v3483, %v3481
      %v3508 = vpack.c.b16 %v3486, %v3484
      %v3509 = vpack.c.b16 %v3487, %v3485
      %v3510 = vpack.c.b16 %v3490, %v3488
      %v3511 = vpack.c.b16 %v3491, %v3489
      %v3512 = vpack.c.b16 %v3494, %v3492
      %v3513 = vpack.c.b16 %v3495, %v3493
      %v3514 = vpack.c.b16 %v3498, %v3496
      %v3515 = vpack.c.b16 %v3499, %v3497
      %3532 = vmatprep.subr.bf16.mxu0 %v3501
      %3533 = vmatpush1.bf16.msra.mxu0 %v3500
      %3534 = vmatprep.subr.bf16.mxu0 %v3503
      %3535 = vmatpush1.bf16.msra.mxu0 %v3502
      %3536 = vmatprep.subr.bf16.mxu0 %v3505
      %3537 = vmatpush1.bf16.msra.mxu0 %v3504
      %3538 = vmatprep.subr.bf16.mxu0 %v3507
      %3539 = vmatpush1.bf16.msra.mxu0 %v3506
      %3540 = vmatprep.subr.bf16.mxu0 %v3509
      %3541 = vmatpush1.bf16.msra.mxu0 %v3508
      %3542 = vmatprep.subr.bf16.mxu0 %v3511
      %3543 = vmatpush1.bf16.msra.mxu0 %v3510
      %3544 = vmatprep.subr.bf16.mxu0 %v3513
      %3545 = vmatpush1.bf16.msra.mxu0 %v3512
      %3546 = vmatprep.subr.bf16.mxu0 %v3515
      %3547 = vmatpush1.bf16.msra.mxu0 %v3514
      %3548 = vmatprep.subr.bf16.mxu0 0
      %3549 = vmatpush1.bf16.msra.mxu0 0
      %3550 = vmatprep.subr.bf16.mxu0 0
      %3551 = vmatpush1.bf16.msra.mxu0 0
      %3552 = vmatprep.subr.bf16.mxu0 0
      %3553 = vmatpush1.bf16.msra.mxu0 0
      %3554 = vmatprep.subr.bf16.mxu0 0
      %3555 = vmatpush1.bf16.msra.mxu0 0
      %3556 = vmatprep.subr.bf16.mxu0 0
      %3557 = vmatpush1.bf16.msra.mxu0 0
      %3558 = vmatprep.subr.bf16.mxu0 0
      %3559 = vmatpush1.bf16.msra.mxu0 0
      %3560 = vmatprep.subr.bf16.mxu0 0
      %3561 = vmatpush1.bf16.msra.mxu0 0
      %3562 = vmatprep.subr.bf16.mxu0 0
      %3563 = vmatpush1.bf16.msra.mxu0 0
      %3564 = vmatprep.mubr.bf16.mxu0 0
      %3565 = vmatmul.mubr.bf16.gmra.mrb[0].mxu0 %v3427
      %v3566 = vpop.f32.mrb[0].mxu0
      %v3567 = vadd.f32 0.0, %v3566
      %v3568 = vpop.f32.mrb[0].mxu0
      %v3569 = vadd.f32 0.0, %v3568
      %v3570 = vpop.f32.mrb[0].mxu0
      %v3571 = vadd.f32 0.0, %v3570
      %v3572 = vpop.f32.mrb[0].mxu0
      %v3573 = vadd.f32 0.0, %v3572
      %3574 = vmatprep.mubr.bf16.mxu0 0
      %3575 = vmatmul.mubr.bf16.gmra.mrb[0].mxu0 %v3428
      %v3576 = vpop.f32.mrb[0].mxu0
      %v3577 = vadd.f32 0.0, %v3576
      %v3578 = vpop.f32.mrb[0].mxu0
      %v3579 = vadd.f32 0.0, %v3578
      %v3580 = vpop.f32.mrb[0].mxu0
      %v3581 = vadd.f32 0.0, %v3580
      %v3582 = vpop.f32.mrb[0].mxu0
      %v3583 = vadd.f32 0.0, %v3582
      %3584 = vmatprep.mubr.bf16.mxu0 0
      %3585 = vmatmul.mubr.bf16.gmra.mrb[0].mxu0 %v3429
      %v3586 = vpop.f32.mrb[0].mxu0
      %v3587 = vadd.f32 0.0, %v3586
      %v3588 = vpop.f32.mrb[0].mxu0
      %v3589 = vadd.f32 0.0, %v3588
      %v3590 = vpop.f32.mrb[0].mxu0
      %v3591 = vadd.f32 0.0, %v3590
      %v3592 = vpop.f32.mrb[0].mxu0
      %v3593 = vadd.f32 0.0, %v3592
      %3594 = vmatprep.mubr.bf16.mxu0 0
      %3595 = vmatmul.mubr.bf16.gmra.mrb[0].mxu0 %v3430
      %v3596 = vpop.f32.mrb[0].mxu0
      %v3597 = vadd.f32 0.0, %v3596
      %v3598 = vpop.f32.mrb[0].mxu0
      %v3599 = vadd.f32 0.0, %v3598
      %v3600 = vpop.f32.mrb[0].mxu0
      %v3601 = vadd.f32 0.0, %v3600
      %v3602 = vpop.f32.mrb[0].mxu0
      %v3603 = vadd.f32 0.0, %v3602
      %3604 = vmatprep.mubr.bf16.mxu0 0
      %3605 = vmatmul.mubr.bf16.gmra.mrb[0].mxu0 %v3431
      %v3606 = vpop.f32.mrb[0].mxu0
      %v3607 = vadd.f32 0.0, %v3606
      %v3608 = vpop.f32.mrb[0].mxu0
      %v3609 = vadd.f32 0.0, %v3608
      %v3610 = vpop.f32.mrb[0].mxu0
      %v3611 = vadd.f32 0.0, %v3610
      %v3612 = vpop.f32.mrb[0].mxu0
      %v3613 = vadd.f32 0.0, %v3612
      %3614 = vmatprep.mubr.bf16.mxu0 0
      %3615 = vmatmul.mubr.bf16.gmra.mrb[0].mxu0 %v3432
      %v3616 = vpop.f32.mrb[0].mxu0
      %v3617 = vadd.f32 0.0, %v3616
      %v3618 = vpop.f32.mrb[0].mxu0
      %v3619 = vadd.f32 0.0, %v3618
      %v3620 = vpop.f32.mrb[0].mxu0
      %v3621 = vadd.f32 0.0, %v3620
      %v3622 = vpop.f32.mrb[0].mxu0
      %v3623 = vadd.f32 0.0, %v3622
      %3624 = vmatprep.mubr.bf16.mxu0 0
      %3625 = vmatmul.mubr.bf16.gmra.mrb[0].mxu0 %v3433
      %v3626 = vpop.f32.mrb[0].mxu0
      %v3627 = vadd.f32 0.0, %v3626
      %v3628 = vpop.f32.mrb[0].mxu0
      %v3629 = vadd.f32 0.0, %v3628
      %v3630 = vpop.f32.mrb[0].mxu0
      %v3631 = vadd.f32 0.0, %v3630
      %v3632 = vpop.f32.mrb[0].mxu0
      %v3633 = vadd.f32 0.0, %v3632
      %3634 = vmatprep.mubr.bf16.mxu0 0
      %3635 = vmatmul.mubr.bf16.gmra.mrb[0].mxu0 %v3434
      %v3636 = vpop.f32.mrb[0].mxu0
      %v3637 = vadd.f32 0.0, %v3636
      %v3638 = vpop.f32.mrb[0].mxu0
      %v3639 = vadd.f32 0.0, %v3638
      %v3640 = vpop.f32.mrb[0].mxu0
      %v3641 = vadd.f32 0.0, %v3640
      %v3642 = vpop.f32.mrb[0].mxu0
      %v3643 = vadd.f32 0.0, %v3642
      %3644 = vdwg.mxu0
      %v3645 = vadd.f32 %v3363, %v3567
      %v3646 = vadd.f32 %v3364, %v3569
      %v3647 = vadd.f32 %v3365, %v3571
      %v3648 = vadd.f32 %v3366, %v3573
      %v3649 = vadd.f32 %v3367, %v3577
      %v3650 = vadd.f32 %v3368, %v3579
      %v3651 = vadd.f32 %v3369, %v3581
      %v3652 = vadd.f32 %v3370, %v3583
      %v3653 = vadd.f32 %v3371, %v3587
      %v3654 = vadd.f32 %v3372, %v3589
      %v3655 = vadd.f32 %v3373, %v3591
      %v3656 = vadd.f32 %v3374, %v3593
      %v3657 = vadd.f32 %v3375, %v3597
      %v3658 = vadd.f32 %v3376, %v3599
      %v3659 = vadd.f32 %v3377, %v3601
      %v3660 = vadd.f32 %v3378, %v3603
      %v3661 = vadd.f32 %v3379, %v3607
      %v3662 = vadd.f32 %v3380, %v3609
      %v3663 = vadd.f32 %v3381, %v3611
      %v3664 = vadd.f32 %v3382, %v3613
      %v3665 = vadd.f32 %v3383, %v3617
      %v3666 = vadd.f32 %v3384, %v3619
      %v3667 = vadd.f32 %v3385, %v3621
      %v3668 = vadd.f32 %v3386, %v3623
      %v3669 = vadd.f32 %v3387, %v3627
      %v3670 = vadd.f32 %v3388, %v3629
      %v3671 = vadd.f32 %v3389, %v3631
      %v3672 = vadd.f32 %v3390, %v3633
      %v3673 = vadd.f32 %v3391, %v3637
      %v3674 = vadd.f32 %v3392, %v3639
      %v3675 = vadd.f32 %v3393, %v3641
      %v3676 = vadd.f32 %v3394, %v3643
      %v3677 = vld [vmem:[%s9] sm:$0x3]
      %v3679 = vlaneseq
      %v3680 = vshrl.u32 %v3679, 7
      %v3681 = vsub.s32 0, %v3680
      %v3682 = vrot.slane %v3677, %v3681
      %v3683 = vlaneseq
      %v3684 = vshrl.u32 %v3683, 7
      %v3685 = vsub.s32 1, %v3684
      %v3686 = vrot.slane %v3677, %v3685
      %v3689 = vadd.f32 %v3645, %v3682
      %v3690 = vadd.f32 %v3646, %v3686
      %v3691 = vadd.f32 %v3647, %v3682
      %v3692 = vadd.f32 %v3648, %v3686
      %v3693 = vadd.f32 %v3649, %v3682
      %v3694 = vadd.f32 %v3650, %v3686
      %v3695 = vadd.f32 %v3651, %v3682
      %v3696 = vadd.f32 %v3652, %v3686
      %v3697 = vadd.f32 %v3653, %v3682
      %v3698 = vadd.f32 %v3654, %v3686
      %v3699 = vadd.f32 %v3655, %v3682
      %v3700 = vadd.f32 %v3656, %v3686
      %v3701 = vadd.f32 %v3657, %v3682
      %v3702 = vadd.f32 %v3658, %v3686
      %v3703 = vadd.f32 %v3659, %v3682
      %v3704 = vadd.f32 %v3660, %v3686
      %v3705 = vadd.f32 %v3661, %v3682
      %v3706 = vadd.f32 %v3662, %v3686
      %v3707 = vadd.f32 %v3663, %v3682
      %v3708 = vadd.f32 %v3664, %v3686
      %v3709 = vadd.f32 %v3665, %v3682
      %v3710 = vadd.f32 %v3666, %v3686
      %v3711 = vadd.f32 %v3667, %v3682
      %v3712 = vadd.f32 %v3668, %v3686
      %v3713 = vadd.f32 %v3669, %v3682
      %v3714 = vadd.f32 %v3670, %v3686
      %v3715 = vadd.f32 %v3671, %v3682
      %v3716 = vadd.f32 %v3672, %v3686
      %v3717 = vadd.f32 %v3673, %v3682
      %v3718 = vadd.f32 %v3674, %v3686
      %v3719 = vadd.f32 %v3675, %v3682
      %v3720 = vadd.f32 %v3676, %v3686
      %v3721 = vld [vmem:[%s527] sm:$0xff]
      %v3722 = vld [vmem:[%s527 + $0x8] sm:$0xff]
      %v3723 = vld [vmem:[%s527 + $0x10] sm:$0xff]
      %v3724 = vld [vmem:[%s527 + $0x18] sm:$0xff]
      %v3725 = vld [vmem:[%s527 + $0x20] sm:$0xff]
      %v3726 = vld [vmem:[%s527 + $0x28] sm:$0xff]
      %v3727 = vld [vmem:[%s527 + $0x30] sm:$0xff]
      %v3728 = vld [vmem:[%s527 + $0x38] sm:$0xff]
      %v3729 = vld [vmem:[%s527 + $0x40] sm:$0xff]
      %v3730 = vld [vmem:[%s527 + $0x48] sm:$0xff]
      %v3731 = vld [vmem:[%s527 + $0x50] sm:$0xff]
      %v3732 = vld [vmem:[%s527 + $0x58] sm:$0xff]
      %v3733 = vld [vmem:[%s527 + $0x60] sm:$0xff]
      %v3734 = vld [vmem:[%s527 + $0x68] sm:$0xff]
      %v3735 = vld [vmem:[%s527 + $0x70] sm:$0xff]
      %v3736 = vld [vmem:[%s527 + $0x78] sm:$0xff]
      %v3737 = vld [vmem:[%s531] sm:$0x1]
      %v3739 = vlaneseq
      %v3740 = vshrl.u32 %v3739, 7
      %v3741 = vsub.s32 0, %v3740
      %v3742 = vrot.slane %v3737, %v3741
      %v3744 = vsub.f32 %v3721, %v3742
      %v3745 = vsub.f32 %v3722, %v3742
      %v3746 = vsub.f32 %v3723, %v3742
      %v3747 = vsub.f32 %v3724, %v3742
      %v3748 = vsub.f32 %v3725, %v3742
      %v3749 = vsub.f32 %v3726, %v3742
      %v3750 = vsub.f32 %v3727, %v3742
      %v3751 = vsub.f32 %v3728, %v3742
      %v3752 = vsub.f32 %v3729, %v3742
      %v3753 = vsub.f32 %v3730, %v3742
      %v3754 = vsub.f32 %v3731, %v3742
      %v3755 = vsub.f32 %v3732, %v3742
      %v3756 = vsub.f32 %v3733, %v3742
      %v3757 = vsub.f32 %v3734, %v3742
      %v3758 = vsub.f32 %v3735, %v3742
      %v3759 = vsub.f32 %v3736, %v3742
      %v3760 = vld [vmem:[%s534] sm:$0x1]
      %v3762 = vlaneseq
      %v3763 = vshrl.u32 %v3762, 7
      %v3764 = vsub.s32 0, %v3763
      %v3765 = vrot.slane %v3760, %v3764
      %v3767 = vmul.f32 %v3744, %v3765
      %v3768 = vmul.f32 %v3745, %v3765
      %v3769 = vmul.f32 %v3746, %v3765
      %v3770 = vmul.f32 %v3747, %v3765
      %v3771 = vmul.f32 %v3748, %v3765
      %v3772 = vmul.f32 %v3749, %v3765
      %v3773 = vmul.f32 %v3750, %v3765
      %v3774 = vmul.f32 %v3751, %v3765
      %v3775 = vmul.f32 %v3752, %v3765
      %v3776 = vmul.f32 %v3753, %v3765
      %v3777 = vmul.f32 %v3754, %v3765
      %v3778 = vmul.f32 %v3755, %v3765
      %v3779 = vmul.f32 %v3756, %v3765
      %v3780 = vmul.f32 %v3757, %v3765
      %v3781 = vmul.f32 %v3758, %v3765
      %v3782 = vmul.f32 %v3759, %v3765
      %v3783 = vadd.f32 %v3689, 1.0
      %v3784 = vadd.f32 %v3691, 1.0
      %v3785 = vadd.f32 %v3693, 1.0
      %v3786 = vadd.f32 %v3695, 1.0
      %v3787 = vadd.f32 %v3697, 1.0
      %v3788 = vadd.f32 %v3699, 1.0
      %v3789 = vadd.f32 %v3701, 1.0
      %v3790 = vadd.f32 %v3703, 1.0
      %v3791 = vadd.f32 %v3705, 1.0
      %v3792 = vadd.f32 %v3707, 1.0
      %v3793 = vadd.f32 %v3709, 1.0
      %v3794 = vadd.f32 %v3711, 1.0
      %v3795 = vadd.f32 %v3713, 1.0
      %v3796 = vadd.f32 %v3715, 1.0
      %v3797 = vadd.f32 %v3717, 1.0
      %v3798 = vadd.f32 %v3719, 1.0
      %v3799 = vmul.f32 %v3767, %v3783
      %v3800 = vmul.f32 %v3768, %v3784
      %v3801 = vmul.f32 %v3769, %v3785
      %v3802 = vmul.f32 %v3770, %v3786
      %v3803 = vmul.f32 %v3771, %v3787
      %v3804 = vmul.f32 %v3772, %v3788
      %v3805 = vmul.f32 %v3773, %v3789
      %v3806 = vmul.f32 %v3774, %v3790
      %v3807 = vmul.f32 %v3775, %v3791
      %v3808 = vmul.f32 %v3776, %v3792
      %v3809 = vmul.f32 %v3777, %v3793
      %v3810 = vmul.f32 %v3778, %v3794
      %v3811 = vmul.f32 %v3779, %v3795
      %v3812 = vmul.f32 %v3780, %v3796
      %v3813 = vmul.f32 %v3781, %v3797
      %v3814 = vmul.f32 %v3782, %v3798
      %v3815 = vadd.f32 %v3799, %v3690
      %v3816 = vadd.f32 %v3800, %v3692
      %v3817 = vadd.f32 %v3801, %v3694
      %v3818 = vadd.f32 %v3802, %v3696
      %v3819 = vadd.f32 %v3803, %v3698
      %v3820 = vadd.f32 %v3804, %v3700
      %v3821 = vadd.f32 %v3805, %v3702
      %v3822 = vadd.f32 %v3806, %v3704
      %v3823 = vadd.f32 %v3807, %v3706
      %v3824 = vadd.f32 %v3808, %v3708
      %v3825 = vadd.f32 %v3809, %v3710
      %v3826 = vadd.f32 %v3810, %v3712
      %v3827 = vadd.f32 %v3811, %v3714
      %v3828 = vadd.f32 %v3812, %v3716
      %v3829 = vadd.f32 %v3813, %v3718
      %v3830 = vadd.f32 %v3814, %v3720
      %vm3831 = vcmask 31744
      %3832 = vst.msk [vmem:[%s589] sm:$0xff] %vm3831, %v3815
      %3833 = vst.msk [vmem:[%s589 + $0x8] sm:$0xff] %vm3831, %v3816
      %3834 = vst.msk [vmem:[%s589 + $0x10] sm:$0xff] %vm3831, %v3817
      %3835 = vst.msk [vmem:[%s589 + $0x18] sm:$0xff] %vm3831, %v3818
      %3836 = vst.msk [vmem:[%s589 + $0x20] sm:$0xff] %vm3831, %v3819
      %3837 = vst.msk [vmem:[%s589 + $0x28] sm:$0xff] %vm3831, %v3820
      %3838 = vst.msk [vmem:[%s589 + $0x30] sm:$0xff] %vm3831, %v3821
      %3839 = vst.msk [vmem:[%s589 + $0x38] sm:$0xff] %vm3831, %v3822
      %3840 = vst.msk [vmem:[%s589 + $0x40] sm:$0xff] %vm3831, %v3823
      %3841 = vst.msk [vmem:[%s589 + $0x48] sm:$0xff] %vm3831, %v3824
      %3842 = vst.msk [vmem:[%s589 + $0x50] sm:$0xff] %vm3831, %v3825
      %3843 = vst.msk [vmem:[%s589 + $0x58] sm:$0xff] %vm3831, %v3826
      %3844 = vst.msk [vmem:[%s589 + $0x60] sm:$0xff] %vm3831, %v3827
      %3845 = vst.msk [vmem:[%s589 + $0x68] sm:$0xff] %vm3831, %v3828
      %3846 = vst.msk [vmem:[%s589 + $0x70] sm:$0xff] %vm3831, %v3829
      %3847 = vst.msk [vmem:[%s589 + $0x78] sm:$0xff] %vm3831, %v3830
      %s3848 = smul.u32 16, %s26
      %p3849 = scmp.lt.s32.totalorder %s25, 1
      %s3850 = scalar_select %p3849, %s25, 1
      %p3851 = scmp.lt.s32.totalorder %s3848, 31
      %s3852 = scalar_select %p3851, %s3848, 31
      %s3853 = smul.addr %s3850, 32
      %s3854 = sadd.s32 %s3852, %s3853
      %s3855 = smul.addr %s3854, 8
      %s3856 = scalar_lea.vmem %s10, %s3855
      // Predicated region
      $region61: #{spade_forward.1} parent=59 // pred_check
        %p3857 = pneg %p317
      $region62: #{spade_forward.1} parent=59 // pred_check_branch
        %3859 = sbr.rel (%p3857) target = $region64
      $region63: #{spade_forward.1} parent=59 // pred_region
        %s3860 = smul.u32 16, %s26
      $region64: #{spade_forward.1} parent=59 // pred_fallthru
        _
    $region60: #{spade_forward.1} parent=5 // pred_fallthru
      _
    %p3861 = scmp.le.s32.totalorder 2, %s16
    // Predicated region
    $region65: #{spade_forward.1} parent=5 // pred_check
      %p3862 = pneg %p3861
    $region66: #{spade_forward.1} parent=5 // pred_check_branch
      %3864 = sbr.rel (%p3862) target = $region68
    $region67: #{spade_forward.1} parent=5 // pred_region
      %s3865 = ssub.s32 %s16, 2
      // Predicated region
      $region69: #{spade_forward.1} parent=67 // pred_check
        %p3866 = pneg %p323
      $region70: #{spade_forward.1} parent=67 // pred_check_branch
        %3868 = sbr.rel (%p3866) target = $region72
      $region71: #{spade_forward.1} parent=67 // pred_region
        %s3869 = smul.u32 16, %s28
        %p3870 = scmp.lt.s32.totalorder %s27, 1
        %s3871 = scalar_select %p3870, %s27, 1
        %p3872 = scmp.lt.s32.totalorder %s3869, 31
        %s3873 = scalar_select %p3872, %s3869, 31
        %s3874 = smul.addr %s3871, 32
        %s3875 = sadd.s32 %s3873, %s3874
        %s3876 = smul.addr %s3875, 8
        %s3877 = scalar_lea.vmem %s10, %s3876
      $region72: #{spade_forward.1} parent=67 // pred_fallthru
        _
    $region68: #{spade_forward.1} parent=5 // pred_fallthru
      _
  $region6: #{spade_forward.1} parent=0 // loop_footer
    %s20 = sadd.s32 1, %s16
  $region7: #{spade_forward.1} parent=0 // loop_footer_branch
    %15 = sbr.rel target = $region3
  $region8: #{spade_forward.1} parent=0 // loop_exit
    _

</llo_original>
